<compile_context>
chip_gen: v5e
topology: v5e:2x2
jax: 0.10.0
libtpu: 0.0.40
codegen_flags: <defaults>
</compile_context>

<pallas_src>
import functools

import jax
import jax.numpy as jnp
from jax.experimental import pallas as pl
from jax.experimental.pallas import tpu as pltpu

EPS = 1e-5


def _round_up(v, m):
    return ((v + m - 1) // m) * m


def _cdiv(a, b):
    return (a + b - 1) // b


def conv_stats_kernel(x0_ref, x1_ref, mask_ref, w_ref,
                      conv_ref, sum_ref, ssq_ref, *, taps, tm):
    """Pass 1: implicit-im2col conv tile + per-channel sum / sum-of-squares."""
    @pl.when(pl.program_id(1) == 0)
    def _():
        sum_ref[...] = jnp.zeros_like(sum_ref)
        ssq_ref[...] = jnp.zeros_like(ssq_ref)

    # Current row tile plus its halo (the next tile) -> (2*tm, C) bf16.
    xcat = jnp.concatenate([x0_ref[...], x1_ref[...]], axis=0)

    acc = jnp.zeros(conv_ref.shape, jnp.float32)
    for t, d in taps:                       # static KH*KW tap loop
        acc += jnp.dot(xcat[d:d + tm, :], w_ref[t],
                       preferred_element_type=jnp.float32)

    # Store the conv tile once (bf16); pass 2 only re-reads this, not patches.
    conv_ref[...] = acc.astype(conv_ref.dtype)

    # BN statistics over VALID output rows only (mask zeroes padding/stride
    # holes).  Sublane-sum rides the VALU/XLU, leaving the MXU to the matmuls.
    ym = acc * mask_ref[...]
    sum_ref[...] += jnp.sum(ym, axis=0, keepdims=True)
    ssq_ref[...] += jnp.sum(ym * ym, axis=0, keepdims=True)


def affine_relu_kernel(y_ref, scale_ref, shift_ref, o_ref):
    """Pass 2: folded BN affine + ReLU over the stored conv output."""
    y = y_ref[...].astype(jnp.float32)
    o_ref[...] = jnp.maximum(y * scale_ref[...] + shift_ref[...],
                             0.0).astype(o_ref.dtype)


def conv_bn_relu(x, weight, gamma, beta, *, stride=1, padding=1, tm=512):
    """x: (N, C_in, H, W) NCHW.  weight: (C_out, C_in, KH, KW) OIHW."""
    N, C, H, W = x.shape
    C_out, C_in, KH, KW = weight.shape
    assert C == C_in

    Hp, Wp = H + 2 * padding, W + 2 * padding
    Ho = (H + 2 * padding - KH) // stride + 1
    Wo = (W + 2 * padding - KW) // stride + 1

    # Largest tap row-shift; tm must cover it so the halo is a single tile.
    max_shift = (KH - 1) * Wp + (KW - 1)
    tm = max(_round_up(tm, 128), _round_up(max_shift, 128))
    assert max_shift <= tm
    # TODO(synk): derive tm per chip generation (cap when C_in/C_out tiles get
    # large so double-buffered VMEM stays inside v7x's 64 MiB); 512 fits here.

    # 128-pad small C_out (v5e-friendly); 256-granular for big layers so the
    # 2x256^2 MXU on v6e/v7x runs full-width (256 is still a 128 multiple).
    cout_p = _round_up(C_out, 128) if C_out <= 128 else _round_up(C_out, 256)

    # --- padded NHWC input flattened to "virtual output rows" (glue) --------
    xn = jnp.transpose(x, (0, 2, 3, 1)).astype(jnp.bfloat16)      # NHWC bf16
    xn = jnp.pad(xn, ((0, 0), (padding, padding), (padding, padding), (0, 0)))
    n_virt = N * Hp * Wp
    xf = xn.reshape(n_virt, C)

    n_tiles = _cdiv(n_virt, tm)
    shards = 2 if n_tiles >= 2 else 1        # v7x: 2 TCs; no-op on v5e/v6e
    n_inner = _cdiv(n_tiles, shards)
    n_tiles_p = shards * n_inner
    rows_p = n_tiles_p * tm
    r_alloc = rows_p + tm                    # +1 zero halo tile at the end
    xf = jnp.pad(xf, ((0, r_alloc - n_virt), (0, 0)))

    # Validity mask over virtual rows: only true conv output positions
    # (interior, stride-aligned) feed the BN statistics.
    hv = jnp.zeros((Hp,), jnp.float32).at[0:stride * Ho:stride].set(1.0)
    wv = jnp.zeros((Wp,), jnp.float32).at[0:stride * Wo:stride].set(1.0)
    mask = jnp.broadcast_to(hv[:, None] * wv[None, :], (N, Hp, Wp))
    mask = jnp.pad(mask.reshape(n_virt, 1), ((0, rows_p - n_virt), (0, 0)))

    # Per-tap weights: (KH*KW, C_in, cout_p); tap t=(kh,kw) pairs with row
    # shift d = kh*Wp + kw in the flattened padded input.
    w_taps = jnp.transpose(weight, (2, 3, 1, 0)).reshape(KH * KW, C_in, C_out)
    w_taps = jnp.pad(w_taps, ((0, 0), (0, 0), (0, cout_p - C_out)))
    w_taps = w_taps.astype(jnp.bfloat16)
    taps = tuple((kh * KW + kw, kh * Wp + kw)
                 for kh in range(KH) for kw in range(KW))

    kernel1 = functools.partial(conv_stats_kernel, taps=taps, tm=tm)
    conv_flops = 2 * rows_p * C_in * cout_p * KH * KW

    # ---------------- Pass 1: conv + per-channel sum / sum-of-squares -------
    conv_full, stats_sum, stats_ssq = pl.pallas_call(
        kernel1,
        out_shape=(jax.ShapeDtypeStruct((rows_p, cout_p), jnp.bfloat16),
                   jax.ShapeDtypeStruct((shards * 8, cout_p), jnp.float32),
                   jax.ShapeDtypeStruct((shards * 8, cout_p), jnp.float32)),
        grid_spec=pltpu.PrefetchScalarGridSpec(
            num_scalar_prefetch=0,
            grid=(shards, n_inner),
            in_specs=[
                pl.BlockSpec((tm, C_in), lambda c, i: (c * n_inner + i, 0)),
                pl.BlockSpec((tm, C_in), lambda c, i: (c * n_inner + i + 1, 0)),
                pl.BlockSpec((tm, 1), lambda c, i: (c * n_inner + i, 0)),
                pl.BlockSpec((KH * KW, C_in, cout_p), lambda c, i: (0, 0, 0)),
            ],
            out_specs=(
                pl.BlockSpec((tm, cout_p), lambda c, i: (c * n_inner + i, 0)),
                pl.BlockSpec((8, cout_p), lambda c, i: (c, 0)),
                pl.BlockSpec((8, cout_p), lambda c, i: (c, 0)),
            ),
        ),
        compiler_params=pltpu.CompilerParams(
            dimension_semantics=("parallel", "arbitrary")),
        cost_estimate=pl.CostEstimate(
            flops=conv_flops + 4 * rows_p * cout_p,
            transcendentals=0,
            bytes_accessed=(2 * r_alloc * C_in * 2 + rows_p * 4
                            + KH * KW * C_in * cout_p * 2
                            + rows_p * cout_p * 2
                            + 2 * shards * 8 * cout_p * 4)),
    )(xf, xf, mask, w_taps)

    # ------- Finalize BN params (tiny (cout_p,) math in plain JAX, f32) -----
    rows_valid = N * Ho * Wo
    s = stats_sum.reshape(shards, 8, cout_p)[:, 0, :].sum(axis=0)
    ss = stats_ssq.reshape(shards, 8, cout_p)[:, 0, :].sum(axis=0)
    mean = s / rows_valid
    var = jnp.maximum(ss / rows_valid - mean * mean, 0.0)  # cancellation guard
    inv = jax.lax.rsqrt(var + EPS)
    gamma_p = jnp.pad(gamma.astype(jnp.float32), (0, cout_p - C_out))
    beta_p = jnp.pad(beta.astype(jnp.float32), (0, cout_p - C_out))
    scale = (gamma_p * inv).reshape(1, cout_p)
    shift = (beta_p - mean * gamma_p * inv).reshape(1, cout_p)

    # ---------------- Pass 2: elementwise affine + ReLU (no recompute) ------
    out_full = pl.pallas_call(
        affine_relu_kernel,
        out_shape=jax.ShapeDtypeStruct((rows_p, cout_p), jnp.bfloat16),
        grid_spec=pltpu.PrefetchScalarGridSpec(
            num_scalar_prefetch=0,
            grid=(n_tiles_p,),
            in_specs=[
                pl.BlockSpec((tm, cout_p), lambda i: (i, 0)),
                pl.BlockSpec((1, cout_p), lambda i: (0, 0)),
                pl.BlockSpec((1, cout_p), lambda i: (0, 0)),
            ],
            out_specs=pl.BlockSpec((tm, cout_p), lambda i: (i, 0)),
        ),
        compiler_params=pltpu.CompilerParams(
            dimension_semantics=("parallel",)),
        cost_estimate=pl.CostEstimate(
            flops=3 * rows_p * cout_p,
            transcendentals=0,
            bytes_accessed=(2 * rows_p * cout_p * 2 + 2 * cout_p * 4
                            + rows_p * cout_p * 2)),
    )(conv_full, scale, shift)

    # Crop virtual rows -> (N, Ho, Wo, C_out), back to NCHW f32 to match the
    # PyTorch module.  An NHWC/bf16 consumer could skip this glue entirely.
    out = out_full[:n_virt].reshape(N, Hp, Wp, cout_p)
    out = out[:, 0:stride * Ho:stride, 0:stride * Wo:stride, :C_out]
    return jnp.transpose(out, (0, 3, 1, 2)).astype(jnp.float32)


def reference(x, weight, gamma, beta, *, stride=1, padding=1):
    y = jax.lax.conv_general_dilated(
        x.astype(jnp.float32), weight.astype(jnp.float32),
        window_strides=(stride, stride),
        padding=[(padding, padding), (padding, padding)],
        dimension_numbers=("NCHW", "OIHW", "NCHW"))
    mean = jnp.mean(y, axis=(0, 2, 3), keepdims=True)
    var = jnp.mean((y - mean) ** 2, axis=(0, 2, 3), keepdims=True)
    yn = (y - mean) * jax.lax.rsqrt(var + EPS)
    yn = yn * gamma.reshape(1, -1, 1, 1) + beta.reshape(1, -1, 1, 1)
    return jnp.maximum(yn, 0.0)


if __name__ == "__main__":
    key = jax.random.PRNGKey(0)
    k_x, k_w, k_g, k_b = jax.random.split(key, 4)

    N, C_in, H, W = 2, 4, 16, 16
    C_out, KH, KW = 8, 3, 3

    x = jax.random.normal(k_x, (N, C_in, H, W), dtype=jnp.float32)
    fan_in = C_in * KH * KW
    weight = jax.random.normal(k_w, (C_out, C_in, KH, KW),
                               dtype=jnp.float32) / jnp.sqrt(fan_in)
    gamma = 1.0 + 0.1 * jax.random.normal(k_g, (C_out,), dtype=jnp.float32)
    beta = 0.1 * jax.random.normal(k_b, (C_out,), dtype=jnp.float32)

    out = conv_bn_relu(x, weight, gamma, beta, stride=1, padding=1)
    out = jax.block_until_ready(out)

    ref = reference(x, weight, gamma, beta, stride=1, padding=1)
    assert out.shape == ref.shape == (N, C_out, H, W)
    # Tolerance accounts for bf16 MXU operands + bf16 conv storage + bf16
    # output (f32 accumulation and f32 BN statistics throughout).
    assert jnp.allclose(out, ref, atol=3e-2, rtol=3e-2), (
        float(jnp.max(jnp.abs(out - ref))))

    print("KERNEL_OK")
</pallas_src>

<mosaic_0001>
module attributes {stable_mosaic.version = 11 : i64} {
  func.func @conv_stats_kernel(%arg0: i32, %arg1: i32, %arg2: memref<512x4xbf16, #tpu.memory_space<vmem>>, %arg3: memref<512x4xbf16, #tpu.memory_space<vmem>>, %arg4: memref<512x1xf32, #tpu.memory_space<vmem>>, %arg5: memref<9x4x128xbf16, #tpu.memory_space<vmem>>, %arg6: memref<512x128xbf16, #tpu.memory_space<vmem>>, %arg7: memref<8x128xf32, #tpu.memory_space<vmem>>, %arg8: memref<8x128xf32, #tpu.memory_space<vmem>>) attributes {dimension_semantics = [#tpu.dimension_semantics<parallel>, #tpu.dimension_semantics<arbitrary>], iteration_bounds = array<i64: 2, 1>, scalar_prefetch = 0 : i64, scratch_operands = 0 : i64, tpu.core_type = #tpu.core_type<tc>, window_params = [{transform_indices = @transform_0, window_bounds = array<i64: 512, 4>}, {transform_indices = @transform_1, window_bounds = array<i64: 512, 4>}, {transform_indices = @transform_2, window_bounds = array<i64: 512, 1>}, {pipeline_mode = #tpu.pipeline_mode<synchronous>, transform_indices = @transform_3, window_bounds = array<i64: 9, 4, 128>}, {transform_indices = @transform_4, window_bounds = array<i64: 512, 128>}, {transform_indices = @transform_5, window_bounds = array<i64: 8, 128>}, {transform_indices = @transform_6, window_bounds = array<i64: 8, 128>}]} {
    %c0_i32 = arith.constant 0 : i32
    %0 = arith.cmpi eq, %arg1, %c0_i32 : i32
    %1 = arith.extui %0 : i1 to i32
    %c0_i32_0 = arith.constant 0 : i32
    %2 = arith.cmpi ne, %1, %c0_i32_0 : i32
    scf.if %2 {
      %cst_46 = arith.constant 0.000000e+00 : f32
      %70 = vector.broadcast %cst_46 : f32 to vector<8x128xf32>
      %c0_47 = arith.constant 0 : index
      %c0_48 = arith.constant 0 : index
      %71 = vector.load %arg7[%c0_47, %c0_48] : memref<8x128xf32, #tpu.memory_space<vmem>>, vector<8x128xf32>
      tpu.vector_store %arg7[%c0_47, %c0_48], %70 {strides = array<i32>} : memref<8x128xf32, #tpu.memory_space<vmem>>, vector<8x128xf32>,
      %cst_49 = arith.constant 0.000000e+00 : f32
      %72 = vector.broadcast %cst_49 : f32 to vector<8x128xf32>
      %c0_50 = arith.constant 0 : index
      %c0_51 = arith.constant 0 : index
      %73 = vector.load %arg8[%c0_50, %c0_51] : memref<8x128xf32, #tpu.memory_space<vmem>>, vector<8x128xf32>
      tpu.vector_store %arg8[%c0_50, %c0_51], %72 {strides = array<i32>} : memref<8x128xf32, #tpu.memory_space<vmem>>, vector<8x128xf32>,
    } else {
    }
    %c0 = arith.constant 0 : index
    %c0_1 = arith.constant 0 : index
    %3 = vector.load %arg2[%c0, %c0_1] : memref<512x4xbf16, #tpu.memory_space<vmem>>, vector<512x4xbf16>
    %c0_2 = arith.constant 0 : index
    %c0_3 = arith.constant 0 : index
    %4 = vector.load %arg3[%c0_2, %c0_3] : memref<512x4xbf16, #tpu.memory_space<vmem>>, vector<512x4xbf16>
    %5 = tpu.concatenate %3, %4 in 0 : vector<512x4xbf16>, vector<512x4xbf16> -> vector<1024x4xbf16>
    %cst = arith.constant 0.000000e+00 : f32
    %6 = vector.broadcast %cst : f32 to vector<512x128xf32>
    %7 = vector.extract_strided_slice %5 {offsets = [0, 0], sizes = [512, 4], strides = [1, 1]} : vector<1024x4xbf16> to vector<512x4xbf16>
    %c0_4 = arith.constant 0 : index
    %c0_5 = arith.constant 0 : index
    %c0_6 = arith.constant 0 : index
    %8 = vector.load %arg5[%c0_4, %c0_5, %c0_6] : memref<9x4x128xbf16, #tpu.memory_space<vmem>>, vector<1x4x128xbf16>
    %9 = vector.shape_cast %8 : vector<1x4x128xbf16> to vector<4x128xbf16>
    %cst_7 = arith.constant dense<0.000000e+00> : vector<512x128xf32>
    %10 = tpu.matmul %7, %9, %cst_7 {dimension_numbers = #tpu.dot_dimension_numbers<[1], [0], [0], [1], [0, 0, 1, 1], [], []>} : vector<512x4xbf16>, vector<4x128xbf16>, vector<512x128xf32> -> vector<512x128xf32>
    %11 = arith.addf %6, %10 : vector<512x128xf32>
    %12 = vector.extract_strided_slice %5 {offsets = [1, 0], sizes = [512, 4], strides = [1, 1]} : vector<1024x4xbf16> to vector<512x4xbf16>
    %c1 = arith.constant 1 : index
    %c0_8 = arith.constant 0 : index
    %c0_9 = arith.constant 0 : index
    %13 = vector.load %arg5[%c1, %c0_8, %c0_9] : memref<9x4x128xbf16, #tpu.memory_space<vmem>>, vector<1x4x128xbf16>
    %14 = vector.shape_cast %13 : vector<1x4x128xbf16> to vector<4x128xbf16>
    %cst_10 = arith.constant dense<0.000000e+00> : vector<512x128xf32>
    %15 = tpu.matmul %12, %14, %cst_10 {dimension_numbers = #tpu.dot_dimension_numbers<[1], [0], [0], [1], [0, 0, 1, 1], [], []>} : vector<512x4xbf16>, vector<4x128xbf16>, vector<512x128xf32> -> vector<512x128xf32>
    %16 = arith.addf %11, %15 : vector<512x128xf32>
    %17 = vector.extract_strided_slice %5 {offsets = [2, 0], sizes = [512, 4], strides = [1, 1]} : vector<1024x4xbf16> to vector<512x4xbf16>
    %c2 = arith.constant 2 : index
    %c0_11 = arith.constant 0 : index
    %c0_12 = arith.constant 0 : index
    %18 = vector.load %arg5[%c2, %c0_11, %c0_12] : memref<9x4x128xbf16, #tpu.memory_space<vmem>>, vector<1x4x128xbf16>
    %19 = vector.shape_cast %18 : vector<1x4x128xbf16> to vector<4x128xbf16>
    %cst_13 = arith.constant dense<0.000000e+00> : vector<512x128xf32>
    %20 = tpu.matmul %17, %19, %cst_13 {dimension_numbers = #tpu.dot_dimension_numbers<[1], [0], [0], [1], [0, 0, 1, 1], [], []>} : vector<512x4xbf16>, vector<4x128xbf16>, vector<512x128xf32> -> vector<512x128xf32>
    %21 = arith.addf %16, %20 : vector<512x128xf32>
    %22 = vector.extract_strided_slice %5 {offsets = [18, 0], sizes = [512, 4], strides = [1, 1]} : vector<1024x4xbf16> to vector<512x4xbf16>
    %c3 = arith.constant 3 : index
    %c0_14 = arith.constant 0 : index
    %c0_15 = arith.constant 0 : index
    %23 = vector.load %arg5[%c3, %c0_14, %c0_15] : memref<9x4x128xbf16, #tpu.memory_space<vmem>>, vector<1x4x128xbf16>
    %24 = vector.shape_cast %23 : vector<1x4x128xbf16> to vector<4x128xbf16>
    %cst_16 = arith.constant dense<0.000000e+00> : vector<512x128xf32>
    %25 = tpu.matmul %22, %24, %cst_16 {dimension_numbers = #tpu.dot_dimension_numbers<[1], [0], [0], [1], [0, 0, 1, 1], [], []>} : vector<512x4xbf16>, vector<4x128xbf16>, vector<512x128xf32> -> vector<512x128xf32>
    %26 = arith.addf %21, %25 : vector<512x128xf32>
    %27 = vector.extract_strided_slice %5 {offsets = [19, 0], sizes = [512, 4], strides = [1, 1]} : vector<1024x4xbf16> to vector<512x4xbf16>
    %c4 = arith.constant 4 : index
    %c0_17 = arith.constant 0 : index
    %c0_18 = arith.constant 0 : index
    %28 = vector.load %arg5[%c4, %c0_17, %c0_18] : memref<9x4x128xbf16, #tpu.memory_space<vmem>>, vector<1x4x128xbf16>
    %29 = vector.shape_cast %28 : vector<1x4x128xbf16> to vector<4x128xbf16>
    %cst_19 = arith.constant dense<0.000000e+00> : vector<512x128xf32>
    %30 = tpu.matmul %27, %29, %cst_19 {dimension_numbers = #tpu.dot_dimension_numbers<[1], [0], [0], [1], [0, 0, 1, 1], [], []>} : vector<512x4xbf16>, vector<4x128xbf16>, vector<512x128xf32> -> vector<512x128xf32>
    %31 = arith.addf %26, %30 : vector<512x128xf32>
    %32 = vector.extract_strided_slice %5 {offsets = [20, 0], sizes = [512, 4], strides = [1, 1]} : vector<1024x4xbf16> to vector<512x4xbf16>
    %c5 = arith.constant 5 : index
    %c0_20 = arith.constant 0 : index
    %c0_21 = arith.constant 0 : index
    %33 = vector.load %arg5[%c5, %c0_20, %c0_21] : memref<9x4x128xbf16, #tpu.memory_space<vmem>>, vector<1x4x128xbf16>
    %34 = vector.shape_cast %33 : vector<1x4x128xbf16> to vector<4x128xbf16>
    %cst_22 = arith.constant dense<0.000000e+00> : vector<512x128xf32>
    %35 = tpu.matmul %32, %34, %cst_22 {dimension_numbers = #tpu.dot_dimension_numbers<[1], [0], [0], [1], [0, 0, 1, 1], [], []>} : vector<512x4xbf16>, vector<4x128xbf16>, vector<512x128xf32> -> vector<512x128xf32>
    %36 = arith.addf %31, %35 : vector<512x128xf32>
    %37 = vector.extract_strided_slice %5 {offsets = [36, 0], sizes = [512, 4], strides = [1, 1]} : vector<1024x4xbf16> to vector<512x4xbf16>
    %c6 = arith.constant 6 : index
    %c0_23 = arith.constant 0 : index
    %c0_24 = arith.constant 0 : index
    %38 = vector.load %arg5[%c6, %c0_23, %c0_24] : memref<9x4x128xbf16, #tpu.memory_space<vmem>>, vector<1x4x128xbf16>
    %39 = vector.shape_cast %38 : vector<1x4x128xbf16> to vector<4x128xbf16>
    %cst_25 = arith.constant dense<0.000000e+00> : vector<512x128xf32>
    %40 = tpu.matmul %37, %39, %cst_25 {dimension_numbers = #tpu.dot_dimension_numbers<[1], [0], [0], [1], [0, 0, 1, 1], [], []>} : vector<512x4xbf16>, vector<4x128xbf16>, vector<512x128xf32> -> vector<512x128xf32>
    %41 = arith.addf %36, %40 : vector<512x128xf32>
    %42 = vector.extract_strided_slice %5 {offsets = [37, 0], sizes = [512, 4], strides = [1, 1]} : vector<1024x4xbf16> to vector<512x4xbf16>
    %c7 = arith.constant 7 : index
    %c0_26 = arith.constant 0 : index
    %c0_27 = arith.constant 0 : index
    %43 = vector.load %arg5[%c7, %c0_26, %c0_27] : memref<9x4x128xbf16, #tpu.memory_space<vmem>>, vector<1x4x128xbf16>
    %44 = vector.shape_cast %43 : vector<1x4x128xbf16> to vector<4x128xbf16>
    %cst_28 = arith.constant dense<0.000000e+00> : vector<512x128xf32>
    %45 = tpu.matmul %42, %44, %cst_28 {dimension_numbers = #tpu.dot_dimension_numbers<[1], [0], [0], [1], [0, 0, 1, 1], [], []>} : vector<512x4xbf16>, vector<4x128xbf16>, vector<512x128xf32> -> vector<512x128xf32>
    %46 = arith.addf %41, %45 : vector<512x128xf32>
    %47 = vector.extract_strided_slice %5 {offsets = [38, 0], sizes = [512, 4], strides = [1, 1]} : vector<1024x4xbf16> to vector<512x4xbf16>
    %c8 = arith.constant 8 : index
    %c0_29 = arith.constant 0 : index
    %c0_30 = arith.constant 0 : index
    %48 = vector.load %arg5[%c8, %c0_29, %c0_30] : memref<9x4x128xbf16, #tpu.memory_space<vmem>>, vector<1x4x128xbf16>
    %49 = vector.shape_cast %48 : vector<1x4x128xbf16> to vector<4x128xbf16>
    %cst_31 = arith.constant dense<0.000000e+00> : vector<512x128xf32>
    %50 = tpu.matmul %47, %49, %cst_31 {dimension_numbers = #tpu.dot_dimension_numbers<[1], [0], [0], [1], [0, 0, 1, 1], [], []>} : vector<512x4xbf16>, vector<4x128xbf16>, vector<512x128xf32> -> vector<512x128xf32>
    %51 = arith.addf %46, %50 : vector<512x128xf32>
    %52 = arith.truncf %51 : vector<512x128xf32> to vector<512x128xbf16>
    %c0_32 = arith.constant 0 : index
    %c0_33 = arith.constant 0 : index
    %53 = vector.load %arg6[%c0_32, %c0_33] : memref<512x128xbf16, #tpu.memory_space<vmem>>, vector<512x128xbf16>
    tpu.vector_store %arg6[%c0_32, %c0_33], %52 {strides = array<i32>} : memref<512x128xbf16, #tpu.memory_space<vmem>>, vector<512x128xbf16>,
    %c0_34 = arith.constant 0 : index
    %c0_35 = arith.constant 0 : index
    %54 = vector.load %arg4[%c0_34, %c0_35] : memref<512x1xf32, #tpu.memory_space<vmem>>, vector<512x1xf32>
    %55 = vector.broadcast %54 : vector<512x1xf32> to vector<512x128xf32>
    %56 = arith.mulf %51, %55 : vector<512x128xf32>
    %c0_36 = arith.constant 0 : index
    %c0_37 = arith.constant 0 : index
    %57 = vector.load %arg7[%c0_36, %c0_37] : memref<8x128xf32, #tpu.memory_space<vmem>>, vector<8x128xf32>
    %cst_38 = arith.constant dense<0.000000e+00> : vector<128xf32>
    %58 = vector.multi_reduction <add>, %56, %cst_38 [0] : vector<512x128xf32> to vector<128xf32>
    %59 = vector.shape_cast %58 : vector<128xf32> to vector<1x128xf32>
    %60 = vector.broadcast %59 : vector<1x128xf32> to vector<8x128xf32>
    %61 = arith.addf %57, %60 : vector<8x128xf32>
    %c0_39 = arith.constant 0 : index
    %c0_40 = arith.constant 0 : index
    %62 = vector.load %arg7[%c0_39, %c0_40] : memref<8x128xf32, #tpu.memory_space<vmem>>, vector<8x128xf32>
    tpu.vector_store %arg7[%c0_39, %c0_40], %61 {strides = array<i32>} : memref<8x128xf32, #tpu.memory_space<vmem>>, vector<8x128xf32>,
    %c0_41 = arith.constant 0 : index
    %c0_42 = arith.constant 0 : index
    %63 = vector.load %arg8[%c0_41, %c0_42] : memref<8x128xf32, #tpu.memory_space<vmem>>, vector<8x128xf32>
    %64 = arith.mulf %56, %56 : vector<512x128xf32>
    %cst_43 = arith.constant dense<0.000000e+00> : vector<128xf32>
    %65 = vector.multi_reduction <add>, %64, %cst_43 [0] : vector<512x128xf32> to vector<128xf32>
    %66 = vector.shape_cast %65 : vector<128xf32> to vector<1x128xf32>
    %67 = vector.broadcast %66 : vector<1x128xf32> to vector<8x128xf32>
    %68 = arith.addf %63, %67 : vector<8x128xf32>
    %c0_44 = arith.constant 0 : index
    %c0_45 = arith.constant 0 : index
    %69 = vector.load %arg8[%c0_44, %c0_45] : memref<8x128xf32, #tpu.memory_space<vmem>>, vector<8x128xf32>
    tpu.vector_store %arg8[%c0_44, %c0_45], %68 {strides = array<i32>} : memref<8x128xf32, #tpu.memory_space<vmem>>, vector<8x128xf32>,
    return
  }
  func.func @transform_0(%arg0: i32, %arg1: i32) -> (i32, i32) {
    %c1_i32 = arith.constant 1 : i32
    %0 = arith.muli %arg0, %c1_i32 : i32
    %1 = arith.addi %0, %arg1 : i32
    %c0_i32 = arith.constant 0 : i32
    %c0_i32_0 = arith.constant 0 : i32
    return %1, %c0_i32 : i32, i32
  }
  func.func @transform_1(%arg0: i32, %arg1: i32) -> (i32, i32) {
    %c1_i32 = arith.constant 1 : i32
    %0 = arith.muli %arg0, %c1_i32 : i32
    %1 = arith.addi %0, %arg1 : i32
    %c1_i32_0 = arith.constant 1 : i32
    %2 = arith.addi %1, %c1_i32_0 : i32
    %c0_i32 = arith.constant 0 : i32
    %c0_i32_1 = arith.constant 0 : i32
    return %2, %c0_i32 : i32, i32
  }
  func.func @transform_2(%arg0: i32, %arg1: i32) -> (i32, i32) {
    %c1_i32 = arith.constant 1 : i32
    %0 = arith.muli %arg0, %c1_i32 : i32
    %1 = arith.addi %0, %arg1 : i32
    %c0_i32 = arith.constant 0 : i32
    %c0_i32_0 = arith.constant 0 : i32
    return %1, %c0_i32 : i32, i32
  }
  func.func @transform_3(%arg0: i32, %arg1: i32) -> (i32, i32, i32) {
    %c0_i32 = arith.constant 0 : i32
    %c0_i32_0 = arith.constant 0 : i32
    %c0_i32_1 = arith.constant 0 : i32
    %c0_i32_2 = arith.constant 0 : i32
    return %c0_i32, %c0_i32_0, %c0_i32_1 : i32, i32, i32
  }
  func.func @transform_4(%arg0: i32, %arg1: i32) -> (i32, i32) {
    %c1_i32 = arith.constant 1 : i32
    %0 = arith.muli %arg0, %c1_i32 : i32
    %1 = arith.addi %0, %arg1 : i32
    %c0_i32 = arith.constant 0 : i32
    %c0_i32_0 = arith.constant 0 : i32
    return %1, %c0_i32 : i32, i32
  }
  func.func @transform_5(%arg0: i32, %arg1: i32) -> (i32, i32) {
    %c0_i32 = arith.constant 0 : i32
    %c0_i32_0 = arith.constant 0 : i32
    return %arg0, %c0_i32 : i32, i32
  }
  func.func @transform_6(%arg0: i32, %arg1: i32) -> (i32, i32) {
    %c0_i32 = arith.constant 0 : i32
    %c0_i32_0 = arith.constant 0 : i32
    return %arg0, %c0_i32 : i32, i32
  }
}

</mosaic_0001>

<llo_original>
// kernel: tpu_custom_call.1
$region0: #{tpu_custom_call.1}
  #allocation0 [shape = 'u32[]', space=smem, size = 0x4, offset = 0x4, fixed_abs, tag = 'smem constant byte address 0x4 - core index']
  #allocation1 [shape = 'u32[72,128]{1,0:T(1,128)}', space=vmem, size = 0x9000, scoped, tag = 'internal scratch']
  %s0 = inlined_call_operand.vmem [shape: bf16[1536,4], index: 0, kind: input, shape index: {}]
  %s1 = inlined_call_operand.vmem [shape: bf16[1536,4], index: 1, kind: input, shape index: {}]
  %s2 = inlined_call_operand.vmem [shape: f32[1024,1], index: 2, kind: input, shape index: {}]
  %s3 = inlined_call_operand.vmem [shape: bf16[9,4,128], index: 3, kind: input, shape index: {}]
  %s4 = inlined_call_operand.hbm [shape: bf16[1024,128], index: 4, kind: output, shape index: {0}]
  %s5 = inlined_call_operand.hbm [shape: f32[16,128], index: 5, kind: output, shape index: {1}]
  %s6 = inlined_call_operand.hbm [shape: f32[16,128], index: 6, kind: output, shape index: {2}]
  %7 = xla_tuple %s4, %s5, %s6
  %s8 = sld [smem:[#allocation0]]
  $region69: #{tpu_custom_call.1} parent=0
    _
  %s10 = ssub.s32 1, %s8
  %s11 = scalar_select 0, %s10, %s8
  $region1: #{tpu_custom_call.1} parent=0
    #allocation2 [shape = 'u8[262144]{0}', space=vmem, size = 0x40000, scoped, tag = 'output window, operand 0']
    #allocation3 [shape = 's32[2]{0}', space=sflag, size = 0x8, scoped, tag = 'scoped memory for tpu_custom_call.1']
    #allocation4 [shape = 'u8[8192]{0}', space=vmem, size = 0x2000, scoped, tag = 'output window, operand 1']
    #allocation5 [shape = 's32[2]{0}', space=sflag, size = 0x8, scoped, tag = 'scoped memory for tpu_custom_call.1']
    #allocation6 [shape = 'u8[8192]{0}', space=vmem, size = 0x2000, scoped, tag = 'output window, operand 2']
    %12 = vsyncpa [#allocation3], 0
    %s13 = scalar_lea.sflag [#allocation3], 1
    %14 = vsyncpa %s13, 0
    %15 = vsyncpa [#allocation5], 0
    %s16 = scalar_lea.sflag [#allocation5], 1
    %17 = vsyncpa %s16, 0
    loop: start=0, step=1, limit=4
    $region2: #{tpu_custom_call.1} parent=1 // loop_pre_header
      _
    $region3: #{tpu_custom_call.1} parent=1 // loop_header
      %s19 = sphi 0, %s23
      %p20 = scmp.ge.s32.totalorder %s19, 4
      %s26 = sphi 0, %s38
      %s27 = sphi 0, %s34
      %s28 = sphi 0, %s26
      %s29 = sphi 0, %s27
      %s30 = sphi 0, %s28
      %s31 = sphi 0, %s29
      %s43 = sphi 0, %s45
      %s46 = sphi 0, %s43
      %s47 = sphi 0, %s46
      %s63 = sphi 0, %s47
      %s73 = sphi 0, %s75
      %s76 = sphi 0, %s73
      %s77 = sphi 0, %s76
      %s93 = sphi 0, %s77
      %s101 = sphi 0, %s103
      %s104 = sphi 0, %s101
      %s105 = sphi 0, %s104
      %s121 = sphi 0, %s105
      %s125 = sphi 0, %s125
      %s127 = sphi 0, %s125
      %s128 = sphi 0, %s127
      %s142 = sphi 0, %s128
      %s150 = sphi 0, %s152
      %s153 = sphi 0, %s150
      %s154 = sphi 0, %s153
      %s170 = sphi 0, %s154
      %s176 = sphi 0, %s178
      %s179 = sphi 0, %s176
      %s180 = sphi 0, %s179
      %s196 = sphi 0, %s180
      %s202 = sphi 0, %s204
      %s205 = sphi 0, %s202
      %s206 = sphi 0, %s205
      %s222 = sphi 0, %s206
    $region4: #{tpu_custom_call.1} parent=1 // loop_header_branch
      %22 = sbr.rel (%p20) target = $region8
    $region5: #{tpu_custom_call.1} parent=1 // loop_body
      %s24 = ssub.s32 %s19, 1
      %s25 = ssub.s32 %s19, 2
      %s32 = sadd.s32 1, %s27
      %p33 = scmp.ge.s32.totalorder %s32, 1
      %s34 = scalar_select %p33, 0, %s32
      %s35 = sadd.s32 1, %s26
      %s36 = scalar_select %p33, %s35, %s26
      %p37 = scmp.ge.s32.totalorder %s36, 2
      %s38 = scalar_select %p37, 0, %s36
      %s39 = sadd.s32 %s26, %s27
      %s40 = sadd.s32 %s38, %s34
      %s41 = ssub.s32 %s39, %s40
      %p42 = scmp.eq.s32.totalorder %s41, 0
      %s44 = sadd.s32 %s43, 1
      %s45 = scalar_select %p42, %s43, %s44
      %p48 = pneg %p42
      %p49 = scmp.eq.s32.totalorder %s19, 1
      %p50 = por %p48, %p49
      %p51 = scmp.ne.s32.totalorder %s43, %s46
      %p52 = scmp.eq.s32.totalorder %s19, 0
      %p53 = por %p51, %p52
      %p54 = scmp.ne.s32.totalorder %s43, %s46
      %p55 = scmp.eq.s32.totalorder %s24, 1
      %p56 = por %p54, %p55
      %p57 = scmp.ne.s32.totalorder %s46, %s47
      %p58 = scmp.eq.s32.totalorder %s24, 0
      %p59 = por %p57, %p58
      %p60 = scmp.ne.s32.totalorder %s46, %s47
      %p61 = scmp.eq.s32.totalorder %s25, 1
      %p62 = por %p60, %p61
      %p64 = scmp.ne.s32.totalorder %s47, %s63
      %p65 = scmp.eq.s32.totalorder %s25, 0
      %p66 = por %p64, %p65
      %s67 = sadd.s32 %s26, %s27
      %s68 = sadd.s32 %s67, 1
      %s69 = sadd.s32 %s38, %s34
      %s70 = sadd.s32 %s69, 1
      %s71 = ssub.s32 %s68, %s70
      %p72 = scmp.eq.s32.totalorder %s71, 0
      %s74 = sadd.s32 %s73, 1
      %s75 = scalar_select %p72, %s73, %s74
      %p78 = pneg %p72
      %p79 = scmp.eq.s32.totalorder %s19, 1
      %p80 = por %p78, %p79
      %p81 = scmp.ne.s32.totalorder %s73, %s76
      %p82 = scmp.eq.s32.totalorder %s19, 0
      %p83 = por %p81, %p82
      %p84 = scmp.ne.s32.totalorder %s73, %s76
      %p85 = scmp.eq.s32.totalorder %s24, 1
      %p86 = por %p84, %p85
      %p87 = scmp.ne.s32.totalorder %s76, %s77
      %p88 = scmp.eq.s32.totalorder %s24, 0
      %p89 = por %p87, %p88
      %p90 = scmp.ne.s32.totalorder %s76, %s77
      %p91 = scmp.eq.s32.totalorder %s25, 1
      %p92 = por %p90, %p91
      %p94 = scmp.ne.s32.totalorder %s77, %s93
      %p95 = scmp.eq.s32.totalorder %s25, 0
      %p96 = por %p94, %p95
      %s97 = sadd.s32 %s26, %s27
      %s98 = sadd.s32 %s38, %s34
      %s99 = ssub.s32 %s97, %s98
      %p100 = scmp.eq.s32.totalorder %s99, 0
      %s102 = sadd.s32 %s101, 1
      %s103 = scalar_select %p100, %s101, %s102
      %p106 = pneg %p100
      %p107 = scmp.eq.s32.totalorder %s19, 1
      %p108 = por %p106, %p107
      %p109 = scmp.ne.s32.totalorder %s101, %s104
      %p110 = scmp.eq.s32.totalorder %s19, 0
      %p111 = por %p109, %p110
      %p112 = scmp.ne.s32.totalorder %s101, %s104
      %p113 = scmp.eq.s32.totalorder %s24, 1
      %p114 = por %p112, %p113
      %p115 = scmp.ne.s32.totalorder %s104, %s105
      %p116 = scmp.eq.s32.totalorder %s24, 0
      %p117 = por %p115, %p116
      %p118 = scmp.ne.s32.totalorder %s104, %s105
      %p119 = scmp.eq.s32.totalorder %s25, 1
      %p120 = por %p118, %p119
      %p122 = scmp.ne.s32.totalorder %s105, %s121
      %p123 = scmp.eq.s32.totalorder %s25, 0
      %p124 = por %p122, %p123
      %s126 = sadd.s32 %s125, 1
      %p129 = scmp.eq.s32.totalorder %s19, 1
      %p130 = scmp.ne.s32.totalorder %s125, %s127
      %p131 = scmp.eq.s32.totalorder %s19, 0
      %p132 = por %p130, %p131
      %p133 = scmp.ne.s32.totalorder %s125, %s127
      %p134 = scmp.eq.s32.totalorder %s24, 1
      %p135 = por %p133, %p134
      %p136 = scmp.ne.s32.totalorder %s127, %s128
      %p137 = scmp.eq.s32.totalorder %s24, 0
      %p138 = por %p136, %p137
      %p139 = scmp.ne.s32.totalorder %s127, %s128
      %p140 = scmp.eq.s32.totalorder %s25, 1
      %p141 = por %p139, %p140
      %p143 = scmp.ne.s32.totalorder %s128, %s142
      %p144 = scmp.eq.s32.totalorder %s25, 0
      %p145 = por %p143, %p144
      %s146 = sadd.s32 %s26, %s27
      %s147 = sadd.s32 %s38, %s34
      %s148 = ssub.s32 %s146, %s147
      %p149 = scmp.eq.s32.totalorder %s148, 0
      %s151 = sadd.s32 %s150, 1
      %s152 = scalar_select %p149, %s150, %s151
      %p155 = pneg %p149
      %p156 = scmp.eq.s32.totalorder %s19, 1
      %p157 = por %p155, %p156
      %p158 = scmp.ne.s32.totalorder %s150, %s153
      %p159 = scmp.eq.s32.totalorder %s19, 0
      %p160 = por %p158, %p159
      %p161 = scmp.ne.s32.totalorder %s150, %s153
      %p162 = scmp.eq.s32.totalorder %s24, 1
      %p163 = por %p161, %p162
      %p164 = scmp.ne.s32.totalorder %s153, %s154
      %p165 = scmp.eq.s32.totalorder %s24, 0
      %p166 = por %p164, %p165
      %p167 = scmp.ne.s32.totalorder %s153, %s154
      %p168 = scmp.eq.s32.totalorder %s25, 1
      %p169 = por %p167, %p168
      %p171 = scmp.ne.s32.totalorder %s154, %s170
      %p172 = scmp.eq.s32.totalorder %s25, 0
      %p173 = por %p171, %p172
      %s174 = ssub.s32 %s26, %s38
      %p175 = scmp.eq.s32.totalorder %s174, 0
      %s177 = sadd.s32 %s176, 1
      %s178 = scalar_select %p175, %s176, %s177
      %p181 = pneg %p175
      %p182 = scmp.eq.s32.totalorder %s19, 1
      %p183 = por %p181, %p182
      %p184 = scmp.ne.s32.totalorder %s176, %s179
      %p185 = scmp.eq.s32.totalorder %s19, 0
      %p186 = por %p184, %p185
      %p187 = scmp.ne.s32.totalorder %s176, %s179
      %p188 = scmp.eq.s32.totalorder %s24, 1
      %p189 = por %p187, %p188
      %p190 = scmp.ne.s32.totalorder %s179, %s180
      %p191 = scmp.eq.s32.totalorder %s24, 0
      %p192 = por %p190, %p191
      %p193 = scmp.ne.s32.totalorder %s179, %s180
      %p194 = scmp.eq.s32.totalorder %s25, 1
      %p195 = por %p193, %p194
      %p197 = scmp.ne.s32.totalorder %s180, %s196
      %p198 = scmp.eq.s32.totalorder %s25, 0
      %p199 = por %p197, %p198
      %s200 = ssub.s32 %s26, %s38
      %p201 = scmp.eq.s32.totalorder %s200, 0
      %s203 = sadd.s32 %s202, 1
      %s204 = scalar_select %p201, %s202, %s203
      %p207 = pneg %p201
      %p208 = scmp.eq.s32.totalorder %s19, 1
      %p209 = por %p207, %p208
      %p210 = scmp.ne.s32.totalorder %s202, %s205
      %p211 = scmp.eq.s32.totalorder %s19, 0
      %p212 = por %p210, %p211
      %p213 = scmp.ne.s32.totalorder %s202, %s205
      %p214 = scmp.eq.s32.totalorder %s24, 1
      %p215 = por %p213, %p214
      %p216 = scmp.ne.s32.totalorder %s205, %s206
      %p217 = scmp.eq.s32.totalorder %s24, 0
      %p218 = por %p216, %p217
      %p219 = scmp.ne.s32.totalorder %s205, %s206
      %p220 = scmp.eq.s32.totalorder %s25, 1
      %p221 = por %p219, %p220
      %p223 = scmp.ne.s32.totalorder %s206, %s222
      %p224 = scmp.eq.s32.totalorder %s25, 0
      %p225 = por %p223, %p224
      %p226 = scmp.le.s32.totalorder 1, %s19
      %p227 = scmp.lt.s32.totalorder %s19, 3
      %p228 = pnand %p226, %p227
      %p229 = pneg %p228
      // Predicated region
      $region9: #{tpu_custom_call.1} parent=5 // pred_check
        _
      $region10: #{tpu_custom_call.1} parent=5 // pred_check_branch
        %231 = sbr.rel (%p228) target = $region12
      $region11: #{tpu_custom_call.1} parent=5 // pred_region
        %s232 = ssub.s32 %s19, 1
        // Predicated region
        $region13: #{tpu_custom_call.1} parent=11 // pred_check
          %p233 = pneg %p138
        $region14: #{tpu_custom_call.1} parent=11 // pred_check_branch
          %235 = sbr.rel (%p233) target = $region16
        $region15: #{tpu_custom_call.1} parent=11 // pred_region
          _
        $region16: #{tpu_custom_call.1} parent=11 // pred_fallthru
          _
      $region12: #{tpu_custom_call.1} parent=5 // pred_fallthru
        _
      %p236 = scmp.lt.s32.totalorder %s19, 2
      // Predicated region
      $region17: #{tpu_custom_call.1} parent=5 // pred_check
        %p237 = pneg %p236
      $region18: #{tpu_custom_call.1} parent=5 // pred_check_branch
        %239 = sbr.rel (%p237) target = $region20
      $region19: #{tpu_custom_call.1} parent=5 // pred_region
        // Predicated region
        $region21: #{tpu_custom_call.1} parent=19 // pred_check
          %p240 = pneg %p53
        $region22: #{tpu_custom_call.1} parent=19 // pred_check_branch
          %242 = sbr.rel (%p240) target = $region24
        $region23: #{tpu_custom_call.1} parent=19 // pred_region
          %s243 = sadd.s32 %s26, %s27
          %s244 = smul.u32 64, %s243
          %p245 = scmp.lt.s32.totalorder %s244, 191
          %s246 = scalar_select %p245, %s244, 191
          %s247 = smul.addr %s246, 4
          %s248 = scalar_lea.vmem %s0, %s247
          %s249 = sadd.s32 %s26, %s27
          %s250 = smul.u32 64, %s249
        $region24: #{tpu_custom_call.1} parent=19 // pred_fallthru
          _
        // Predicated region
        $region25: #{tpu_custom_call.1} parent=19 // pred_check
          %p251 = pneg %p83
        $region26: #{tpu_custom_call.1} parent=19 // pred_check_branch
          %253 = sbr.rel (%p251) target = $region28
        $region27: #{tpu_custom_call.1} parent=19 // pred_region
          %s254 = sadd.s32 %s26, %s27
          %s255 = sadd.s32 %s254, 1
          %s256 = smul.u32 64, %s255
          %p257 = scmp.lt.s32.totalorder %s256, 191
          %s258 = scalar_select %p257, %s256, 191
          %s259 = smul.addr %s258, 4
          %s260 = scalar_lea.vmem %s1, %s259
          %s261 = sadd.s32 %s26, %s27
          %s262 = sadd.s32 %s261, 1
          %s263 = smul.u32 64, %s262
        $region28: #{tpu_custom_call.1} parent=19 // pred_fallthru
          _
        // Predicated region
        $region29: #{tpu_custom_call.1} parent=19 // pred_check
          %p264 = pneg %p111
        $region30: #{tpu_custom_call.1} parent=19 // pred_check_branch
          %266 = sbr.rel (%p264) target = $region32
        $region31: #{tpu_custom_call.1} parent=19 // pred_region
          %s267 = sadd.s32 %s26, %s27
          %s268 = smul.u32 64, %s267
          %p269 = scmp.lt.s32.totalorder %s268, 127
          %s270 = scalar_select %p269, %s268, 127
          %s271 = smul.addr %s270, 8
          %s272 = scalar_lea.vmem %s2, %s271
          %s273 = sadd.s32 %s26, %s27
          %s274 = smul.u32 64, %s273
        $region32: #{tpu_custom_call.1} parent=19 // pred_fallthru
          _
      $region20: #{tpu_custom_call.1} parent=5 // pred_fallthru
        _
      %p275 = scmp.le.s32.totalorder 1, %s19
      %p276 = scmp.lt.s32.totalorder %s19, 3
      %p277 = pnand %p275, %p276
      %p278 = pneg %p277
      // Predicated region
      $region33: #{tpu_custom_call.1} parent=5 // pred_check
        _
      $region34: #{tpu_custom_call.1} parent=5 // pred_check_branch
        %280 = sbr.rel (%p277) target = $region36
      $region35: #{tpu_custom_call.1} parent=5 // pred_region
        %s281 = ssub.s32 %s19, 1
        %s282 = sadd.s32 %s28, %s29
        %s283 = smul.u32 64, %s282
        %p284 = scmp.lt.s32.totalorder %s283, 191
        %s285 = scalar_select %p284, %s283, 191
        %s286 = smul.addr %s285, 4
        %s287 = scalar_lea.vmem %s0, %s286
        %p288 = pneg %p59
        %p289 = pneg %p56
        %s290 = sadd.s32 %s28, %s29
        %s291 = sadd.s32 %s290, 1
        %s292 = smul.u32 64, %s291
        %p293 = scmp.lt.s32.totalorder %s292, 191
        %s294 = scalar_select %p293, %s292, 191
        %s295 = smul.addr %s294, 4
        %s296 = scalar_lea.vmem %s1, %s295
        %p297 = pneg %p89
        %p298 = pneg %p86
        %s299 = sadd.s32 %s28, %s29
        %s300 = smul.u32 64, %s299
        %p301 = scmp.lt.s32.totalorder %s300, 127
        %s302 = scalar_select %p301, %s300, 127
        %s303 = smul.addr %s302, 8
        %s304 = scalar_lea.vmem %s2, %s303
        %p305 = pneg %p117
        %p306 = pneg %p114
        %p307 = pneg %p138
        %p308 = pneg %p135
        %p309 = pneg %p166
        %p310 = pneg %p163
        %s311 = sand.u32 %s153, 1
        %s312 = scalar_lea.sflag [#allocation3], %s311
        %s313 = sand.u32 %s153, 1
        %s314 = smul.addr %s313, 256
        %s315 = scalar_lea.vmem [#allocation2], %s314
        %p316 = pneg %p192
        %p317 = pneg %p189
        %s318 = sand.u32 %s24, 1
        %s319 = scalar_lea.sflag [#allocation5], %s318
        %s320 = sand.u32 %s179, 1
        %s321 = smul.addr %s320, 8
        %s322 = scalar_lea.vmem [#allocation4], %s321
        %p323 = pneg %p218
        %p324 = pneg %p215
        %s325 = sand.u32 %s24, 1
        %s326 = scalar_lea.sflag [#allocation5], %s325
        %s327 = sand.u32 %s205, 1
        %s328 = smul.addr %s327, 8
        %s329 = scalar_lea.vmem [#allocation6], %s328
        %s330 = sadd.s32 %s28, %s29
        %s331 = smul.u32 64, %s330
        %p332 = scmp.lt.s32.totalorder %s331, 191
        %s333 = scalar_select %p332, %s331, 191
        %s334 = smul.addr %s333, 4
        %s335 = scalar_lea.vmem %s0, %s334
        %s336 = sadd.s32 %s28, %s29
        %s337 = smul.u32 64, %s336
        %s338 = sadd.s32 %s28, %s29
        %s339 = sadd.s32 %s338, 1
        %s340 = smul.u32 64, %s339
        %p341 = scmp.lt.s32.totalorder %s340, 191
        %s342 = scalar_select %p341, %s340, 191
        %s343 = smul.addr %s342, 4
        %s344 = scalar_lea.vmem %s1, %s343
        %s345 = sadd.s32 %s28, %s29
        %s346 = sadd.s32 %s345, 1
        %s347 = smul.u32 64, %s346
        %s348 = sadd.s32 %s28, %s29
        %s349 = smul.u32 64, %s348
        %p350 = scmp.lt.s32.totalorder %s349, 127
        %s351 = scalar_select %p350, %s349, 127
        %s352 = smul.addr %s351, 8
        %s353 = scalar_lea.vmem %s2, %s352
        %s354 = sadd.s32 %s28, %s29
        %s355 = smul.u32 64, %s354
        %s356 = sadd.s32 %s28, %s29
        %s357 = smul.u32 64, %s356
        %p359 = scmp.eq.s32.totalorder %s29, 0
        // Predicated region
        $region37: #{tpu_custom_call.1} parent=35 // pred_check
          %p360 = pneg %p359
        $region38: #{tpu_custom_call.1} parent=35 // pred_check_branch
          %362 = sbr.rel (%p360) target = $region40
        $region39: #{tpu_custom_call.1} parent=35 // pred_region
          %363 = vst [vmem:[%s322] sm:$0xff] 0.0
          %364 = vst [vmem:[%s329] sm:$0xff] 0.0
        $region40: #{tpu_custom_call.1} parent=35 // pred_fallthru
          _
        %v365 = vld [vmem:[%s335] sm:$0xf]
        %v366 = vld [vmem:[%s335 + $0x4] sm:$0xf]
        %v367 = vld [vmem:[%s335 + $0x8] sm:$0xf]
        %v368 = vld [vmem:[%s335 + $0xc] sm:$0xf]
        %v369 = vld [vmem:[%s335 + $0x10] sm:$0xf]
        %v370 = vld [vmem:[%s335 + $0x14] sm:$0xf]
        %v371 = vld [vmem:[%s335 + $0x18] sm:$0xf]
        %v372 = vld [vmem:[%s335 + $0x1c] sm:$0xf]
        %v373 = vld [vmem:[%s335 + $0x20] sm:$0xf]
        %v374 = vld [vmem:[%s335 + $0x24] sm:$0xf]
        %v375 = vld [vmem:[%s335 + $0x28] sm:$0xf]
        %v376 = vld [vmem:[%s335 + $0x2c] sm:$0xf]
        %v377 = vld [vmem:[%s335 + $0x30] sm:$0xf]
        %v378 = vld [vmem:[%s335 + $0x34] sm:$0xf]
        %v379 = vld [vmem:[%s335 + $0x38] sm:$0xf]
        %v380 = vld [vmem:[%s335 + $0x3c] sm:$0xf]
        %v381 = vld [vmem:[%s335 + $0x40] sm:$0xf]
        %v382 = vld [vmem:[%s335 + $0x44] sm:$0xf]
        %v383 = vld [vmem:[%s335 + $0x48] sm:$0xf]
        %v384 = vld [vmem:[%s335 + $0x4c] sm:$0xf]
        %v385 = vld [vmem:[%s335 + $0x50] sm:$0xf]
        %v386 = vld [vmem:[%s335 + $0x54] sm:$0xf]
        %v387 = vld [vmem:[%s335 + $0x58] sm:$0xf]
        %v388 = vld [vmem:[%s335 + $0x5c] sm:$0xf]
        %v389 = vld [vmem:[%s335 + $0x60] sm:$0xf]
        %v390 = vld [vmem:[%s335 + $0x64] sm:$0xf]
        %v391 = vld [vmem:[%s335 + $0x68] sm:$0xf]
        %v392 = vld [vmem:[%s335 + $0x6c] sm:$0xf]
        %v393 = vld [vmem:[%s335 + $0x70] sm:$0xf]
        %v394 = vld [vmem:[%s335 + $0x74] sm:$0xf]
        %v395 = vld [vmem:[%s335 + $0x78] sm:$0xf]
        %v396 = vld [vmem:[%s335 + $0x7c] sm:$0xf]
        %v397 = vld [vmem:[%s335 + $0x80] sm:$0xf]
        %v398 = vld [vmem:[%s335 + $0x84] sm:$0xf]
        %v399 = vld [vmem:[%s335 + $0x88] sm:$0xf]
        %v400 = vld [vmem:[%s335 + $0x8c] sm:$0xf]
        %v401 = vld [vmem:[%s335 + $0x90] sm:$0xf]
        %v402 = vld [vmem:[%s335 + $0x94] sm:$0xf]
        %v403 = vld [vmem:[%s335 + $0x98] sm:$0xf]
        %v404 = vld [vmem:[%s335 + $0x9c] sm:$0xf]
        %v405 = vld [vmem:[%s335 + $0xa0] sm:$0xf]
        %v406 = vld [vmem:[%s335 + $0xa4] sm:$0xf]
        %v407 = vld [vmem:[%s335 + $0xa8] sm:$0xf]
        %v408 = vld [vmem:[%s335 + $0xac] sm:$0xf]
        %v409 = vld [vmem:[%s335 + $0xb0] sm:$0xf]
        %v410 = vld [vmem:[%s335 + $0xb4] sm:$0xf]
        %v411 = vld [vmem:[%s335 + $0xb8] sm:$0xf]
        %v412 = vld [vmem:[%s335 + $0xbc] sm:$0xf]
        %v413 = vld [vmem:[%s335 + $0xc0] sm:$0xf]
        %v414 = vld [vmem:[%s335 + $0xc4] sm:$0xf]
        %v415 = vld [vmem:[%s335 + $0xc8] sm:$0xf]
        %v416 = vld [vmem:[%s335 + $0xcc] sm:$0xf]
        %v417 = vld [vmem:[%s335 + $0xd0] sm:$0xf]
        %v418 = vld [vmem:[%s335 + $0xd4] sm:$0xf]
        %v419 = vld [vmem:[%s335 + $0xd8] sm:$0xf]
        %v420 = vld [vmem:[%s335 + $0xdc] sm:$0xf]
        %v421 = vld [vmem:[%s335 + $0xe0] sm:$0xf]
        %v422 = vld [vmem:[%s335 + $0xe4] sm:$0xf]
        %v423 = vld [vmem:[%s335 + $0xe8] sm:$0xf]
        %v424 = vld [vmem:[%s335 + $0xec] sm:$0xf]
        %v425 = vld [vmem:[%s335 + $0xf0] sm:$0xf]
        %v426 = vld [vmem:[%s335 + $0xf4] sm:$0xf]
        %v427 = vld [vmem:[%s335 + $0xf8] sm:$0xf]
        %v428 = vld [vmem:[%s335 + $0xfc] sm:$0xf]
        %v429 = vld [vmem:[%s344] sm:$0xf]
        %v430 = vld [vmem:[%s344 + $0x4] sm:$0xf]
        %v431 = vld [vmem:[%s344 + $0x8] sm:$0xf]
        %v432 = vld [vmem:[%s344 + $0xc] sm:$0xf]
        %v433 = vld [vmem:[%s344 + $0x10] sm:$0xf]
        %v434 = vld [vmem:[%s344 + $0x14] sm:$0xf]
        %v499 = vunpack.c.l.b16 %v365
        %v500 = vunpack.c.l.b16 %v366
        %v501 = vunpack.c.l.b16 %v367
        %v502 = vunpack.c.l.b16 %v368
        %v503 = vunpack.c.l.b16 %v369
        %v504 = vunpack.c.l.b16 %v370
        %v505 = vunpack.c.l.b16 %v371
        %v506 = vunpack.c.l.b16 %v372
        %v507 = vunpack.c.l.b16 %v373
        %v508 = vunpack.c.l.b16 %v374
        %v509 = vunpack.c.l.b16 %v375
        %v510 = vunpack.c.l.b16 %v376
        %v511 = vunpack.c.l.b16 %v377
        %v512 = vunpack.c.l.b16 %v378
        %v513 = vunpack.c.l.b16 %v379
        %v514 = vunpack.c.l.b16 %v380
        %v515 = vunpack.c.l.b16 %v381
        %v516 = vunpack.c.l.b16 %v382
        %v517 = vunpack.c.l.b16 %v383
        %v518 = vunpack.c.l.b16 %v384
        %v519 = vunpack.c.l.b16 %v385
        %v520 = vunpack.c.l.b16 %v386
        %v521 = vunpack.c.l.b16 %v387
        %v522 = vunpack.c.l.b16 %v388
        %v523 = vunpack.c.l.b16 %v389
        %v524 = vunpack.c.l.b16 %v390
        %v525 = vunpack.c.l.b16 %v391
        %v526 = vunpack.c.l.b16 %v392
        %v527 = vunpack.c.l.b16 %v393
        %v528 = vunpack.c.l.b16 %v394
        %v529 = vunpack.c.l.b16 %v395
        %v530 = vunpack.c.l.b16 %v396
        %v531 = vunpack.c.l.b16 %v397
        %v532 = vunpack.c.l.b16 %v398
        %v533 = vunpack.c.l.b16 %v399
        %v534 = vunpack.c.l.b16 %v400
        %v535 = vunpack.c.l.b16 %v401
        %v536 = vunpack.c.l.b16 %v402
        %v537 = vunpack.c.l.b16 %v403
        %v538 = vunpack.c.l.b16 %v404
        %v539 = vunpack.c.l.b16 %v405
        %v540 = vunpack.c.l.b16 %v406
        %v541 = vunpack.c.l.b16 %v407
        %v542 = vunpack.c.l.b16 %v408
        %v543 = vunpack.c.l.b16 %v409
        %v544 = vunpack.c.l.b16 %v410
        %v545 = vunpack.c.l.b16 %v411
        %v546 = vunpack.c.l.b16 %v412
        %v547 = vunpack.c.l.b16 %v413
        %v548 = vunpack.c.l.b16 %v414
        %v549 = vunpack.c.l.b16 %v415
        %v550 = vunpack.c.l.b16 %v416
        %v551 = vunpack.c.l.b16 %v417
        %v552 = vunpack.c.l.b16 %v418
        %v553 = vunpack.c.l.b16 %v419
        %v554 = vunpack.c.l.b16 %v420
        %v555 = vunpack.c.l.b16 %v421
        %v556 = vunpack.c.l.b16 %v422
        %v557 = vunpack.c.l.b16 %v423
        %v558 = vunpack.c.l.b16 %v424
        %v559 = vunpack.c.l.b16 %v425
        %v560 = vunpack.c.l.b16 %v426
        %v561 = vunpack.c.l.b16 %v427
        %v562 = vunpack.c.l.b16 %v428
        %v563 = vpack.c.b16 %v500, %v499
        %v564 = vpack.c.b16 %v502, %v501
        %v565 = vpack.c.b16 %v504, %v503
        %v566 = vpack.c.b16 %v506, %v505
        %v567 = vpack.c.b16 %v508, %v507
        %v568 = vpack.c.b16 %v510, %v509
        %v569 = vpack.c.b16 %v512, %v511
        %v570 = vpack.c.b16 %v514, %v513
        %v571 = vpack.c.b16 %v516, %v515
        %v572 = vpack.c.b16 %v518, %v517
        %v573 = vpack.c.b16 %v520, %v519
        %v574 = vpack.c.b16 %v522, %v521
        %v575 = vpack.c.b16 %v524, %v523
        %v576 = vpack.c.b16 %v526, %v525
        %v577 = vpack.c.b16 %v528, %v527
        %v578 = vpack.c.b16 %v530, %v529
        %v579 = vpack.c.b16 %v532, %v531
        %v580 = vpack.c.b16 %v534, %v533
        %v581 = vpack.c.b16 %v536, %v535
        %v582 = vpack.c.b16 %v538, %v537
        %v583 = vpack.c.b16 %v540, %v539
        %v584 = vpack.c.b16 %v542, %v541
        %v585 = vpack.c.b16 %v544, %v543
        %v586 = vpack.c.b16 %v546, %v545
        %v587 = vpack.c.b16 %v548, %v547
        %v588 = vpack.c.b16 %v550, %v549
        %v589 = vpack.c.b16 %v552, %v551
        %v590 = vpack.c.b16 %v554, %v553
        %v591 = vpack.c.b16 %v556, %v555
        %v592 = vpack.c.b16 %v558, %v557
        %v593 = vpack.c.b16 %v560, %v559
        %v594 = vpack.c.b16 %v562, %v561
        %v601 = vunpack.c.l.b16 %v429
        %v602 = vunpack.c.l.b16 %v430
        %v603 = vunpack.c.l.b16 %v431
        %v604 = vunpack.c.l.b16 %v432
        %v605 = vunpack.c.l.b16 %v433
        %v606 = vunpack.c.l.b16 %v434
        %v607 = vpack.c.b16 %v602, %v601
        %v608 = vpack.c.b16 %v604, %v603
        %v609 = vpack.c.b16 %v606, %v605
        %v610 = vld [vmem:[%s3] sm:$0x3]
        %s611 = scalar_lea.vmem %s3, 2
        %v612 = vld [vmem:[%s611] sm:$0x3]
        %vm613 = vsmask.f32 7424
        %v615 = vshrl.u32 %v563, 16
        %v617 = vshll.u32 %v563, 16
        %v619 = vrot.slane %v617, 1
        %v620 = vor.u32 %v615, %v619
        %v622 = vshll.u32 %v564, 16
        %v624 = vrot.slane %v622, 1
        %v625 = vsel %vm613, %v620, %v624
        %v626 = vshrl.u32 %v564, 16
        %v628 = vor.u32 %v626, %v624
        %v630 = vshll.u32 %v565, 16
        %v632 = vrot.slane %v630, 1
        %v633 = vsel %vm613, %v628, %v632
        %v634 = vshrl.u32 %v565, 16
        %v636 = vor.u32 %v634, %v632
        %v638 = vshll.u32 %v566, 16
        %v640 = vrot.slane %v638, 1
        %v641 = vsel %vm613, %v636, %v640
        %v642 = vshrl.u32 %v566, 16
        %v644 = vor.u32 %v642, %v640
        %v646 = vshll.u32 %v567, 16
        %v648 = vrot.slane %v646, 1
        %v649 = vsel %vm613, %v644, %v648
        %v650 = vshrl.u32 %v567, 16
        %v652 = vor.u32 %v650, %v648
        %v654 = vshll.u32 %v568, 16
        %v656 = vrot.slane %v654, 1
        %v657 = vsel %vm613, %v652, %v656
        %v658 = vshrl.u32 %v568, 16
        %v660 = vor.u32 %v658, %v656
        %v662 = vshll.u32 %v569, 16
        %v664 = vrot.slane %v662, 1
        %v665 = vsel %vm613, %v660, %v664
        %v666 = vshrl.u32 %v569, 16
        %v668 = vor.u32 %v666, %v664
        %v670 = vshll.u32 %v570, 16
        %v672 = vrot.slane %v670, 1
        %v673 = vsel %vm613, %v668, %v672
        %v674 = vshrl.u32 %v570, 16
        %v676 = vor.u32 %v674, %v672
        %v678 = vshll.u32 %v571, 16
        %v680 = vrot.slane %v678, 1
        %v681 = vsel %vm613, %v676, %v680
        %v682 = vshrl.u32 %v571, 16
        %v684 = vor.u32 %v682, %v680
        %v686 = vshll.u32 %v572, 16
        %v688 = vrot.slane %v686, 1
        %v689 = vsel %vm613, %v684, %v688
        %v690 = vshrl.u32 %v572, 16
        %v692 = vor.u32 %v690, %v688
        %v694 = vshll.u32 %v573, 16
        %v696 = vrot.slane %v694, 1
        %v697 = vsel %vm613, %v692, %v696
        %v698 = vshrl.u32 %v573, 16
        %v700 = vor.u32 %v698, %v696
        %v702 = vshll.u32 %v574, 16
        %v704 = vrot.slane %v702, 1
        %v705 = vsel %vm613, %v700, %v704
        %v706 = vshrl.u32 %v574, 16
        %v708 = vor.u32 %v706, %v704
        %v710 = vshll.u32 %v575, 16
        %v712 = vrot.slane %v710, 1
        %v713 = vsel %vm613, %v708, %v712
        %v714 = vshrl.u32 %v575, 16
        %v716 = vor.u32 %v714, %v712
        %v718 = vshll.u32 %v576, 16
        %v720 = vrot.slane %v718, 1
        %v721 = vsel %vm613, %v716, %v720
        %v722 = vshrl.u32 %v576, 16
        %v724 = vor.u32 %v722, %v720
        %v726 = vshll.u32 %v577, 16
        %v728 = vrot.slane %v726, 1
        %v729 = vsel %vm613, %v724, %v728
        %v730 = vshrl.u32 %v577, 16
        %v732 = vor.u32 %v730, %v728
        %v734 = vshll.u32 %v578, 16
        %v736 = vrot.slane %v734, 1
        %v737 = vsel %vm613, %v732, %v736
        %v738 = vshrl.u32 %v578, 16
        %v740 = vor.u32 %v738, %v736
        %v742 = vshll.u32 %v579, 16
        %v744 = vrot.slane %v742, 1
        %v745 = vsel %vm613, %v740, %v744
        %v746 = vshrl.u32 %v579, 16
        %v748 = vor.u32 %v746, %v744
        %v750 = vshll.u32 %v580, 16
        %v752 = vrot.slane %v750, 1
        %v753 = vsel %vm613, %v748, %v752
        %v754 = vshrl.u32 %v580, 16
        %v756 = vor.u32 %v754, %v752
        %v758 = vshll.u32 %v581, 16
        %v760 = vrot.slane %v758, 1
        %v761 = vsel %vm613, %v756, %v760
        %v762 = vshrl.u32 %v581, 16
        %v764 = vor.u32 %v762, %v760
        %v766 = vshll.u32 %v582, 16
        %v768 = vrot.slane %v766, 1
        %v769 = vsel %vm613, %v764, %v768
        %v770 = vshrl.u32 %v582, 16
        %v772 = vor.u32 %v770, %v768
        %v774 = vshll.u32 %v583, 16
        %v776 = vrot.slane %v774, 1
        %v777 = vsel %vm613, %v772, %v776
        %v778 = vshrl.u32 %v583, 16
        %v780 = vor.u32 %v778, %v776
        %v782 = vshll.u32 %v584, 16
        %v784 = vrot.slane %v782, 1
        %v785 = vsel %vm613, %v780, %v784
        %v786 = vshrl.u32 %v584, 16
        %v788 = vor.u32 %v786, %v784
        %v790 = vshll.u32 %v585, 16
        %v792 = vrot.slane %v790, 1
        %v793 = vsel %vm613, %v788, %v792
        %v794 = vshrl.u32 %v585, 16
        %v796 = vor.u32 %v794, %v792
        %v798 = vshll.u32 %v586, 16
        %v800 = vrot.slane %v798, 1
        %v801 = vsel %vm613, %v796, %v800
        %v802 = vshrl.u32 %v586, 16
        %v804 = vor.u32 %v802, %v800
        %v806 = vshll.u32 %v587, 16
        %v808 = vrot.slane %v806, 1
        %v809 = vsel %vm613, %v804, %v808
        %v810 = vshrl.u32 %v587, 16
        %v812 = vor.u32 %v810, %v808
        %v814 = vshll.u32 %v588, 16
        %v816 = vrot.slane %v814, 1
        %v817 = vsel %vm613, %v812, %v816
        %v818 = vshrl.u32 %v588, 16
        %v820 = vor.u32 %v818, %v816
        %v822 = vshll.u32 %v589, 16
        %v824 = vrot.slane %v822, 1
        %v825 = vsel %vm613, %v820, %v824
        %v826 = vshrl.u32 %v589, 16
        %v828 = vor.u32 %v826, %v824
        %v830 = vshll.u32 %v590, 16
        %v832 = vrot.slane %v830, 1
        %v833 = vsel %vm613, %v828, %v832
        %v834 = vshrl.u32 %v590, 16
        %v836 = vor.u32 %v834, %v832
        %v838 = vshll.u32 %v591, 16
        %v840 = vrot.slane %v838, 1
        %v841 = vsel %vm613, %v836, %v840
        %v842 = vshrl.u32 %v591, 16
        %v844 = vor.u32 %v842, %v840
        %v846 = vshll.u32 %v592, 16
        %v848 = vrot.slane %v846, 1
        %v849 = vsel %vm613, %v844, %v848
        %v850 = vshrl.u32 %v592, 16
        %v852 = vor.u32 %v850, %v848
        %v854 = vshll.u32 %v593, 16
        %v856 = vrot.slane %v854, 1
        %v857 = vsel %vm613, %v852, %v856
        %v858 = vshrl.u32 %v593, 16
        %v860 = vor.u32 %v858, %v856
        %v862 = vshll.u32 %v594, 16
        %v864 = vrot.slane %v862, 1
        %v865 = vsel %vm613, %v860, %v864
        %v866 = vshrl.u32 %v594, 16
        %v868 = vor.u32 %v866, %v864
        %v870 = vshll.u32 %v607, 16
        %v872 = vrot.slane %v870, 1
        %v873 = vsel %vm613, %v868, %v872
        %vm874 = vcmask 31744
        %v876 = vsel %vm874, %v625, 0
        %v879 = vsel %vm874, %v633, 0
        %v882 = vsel %vm874, %v641, 0
        %v885 = vsel %vm874, %v649, 0
        %v888 = vsel %vm874, %v657, 0
        %v891 = vsel %vm874, %v665, 0
        %v894 = vsel %vm874, %v673, 0
        %v897 = vsel %vm874, %v681, 0
        %v900 = vsel %vm874, %v689, 0
        %v903 = vsel %vm874, %v697, 0
        %v906 = vsel %vm874, %v705, 0
        %v909 = vsel %vm874, %v713, 0
        %v912 = vsel %vm874, %v721, 0
        %v915 = vsel %vm874, %v729, 0
        %v918 = vsel %vm874, %v737, 0
        %v921 = vsel %vm874, %v745, 0
        %v924 = vsel %vm874, %v753, 0
        %v927 = vsel %vm874, %v761, 0
        %v930 = vsel %vm874, %v769, 0
        %v933 = vsel %vm874, %v777, 0
        %v936 = vsel %vm874, %v785, 0
        %v939 = vsel %vm874, %v793, 0
        %v942 = vsel %vm874, %v801, 0
        %v945 = vsel %vm874, %v809, 0
        %v948 = vsel %vm874, %v817, 0
        %v951 = vsel %vm874, %v825, 0
        %v954 = vsel %vm874, %v833, 0
        %v957 = vsel %vm874, %v841, 0
        %v960 = vsel %vm874, %v849, 0
        %v963 = vsel %vm874, %v857, 0
        %v966 = vsel %vm874, %v865, 0
        %v969 = vsel %vm874, %v873, 0
        %vm971 = vcmask 1041408
        %v973 = vsel %vm971, %v612, 0
        %975 = vmatpush.bf16.msra.mxu0 0
        %976 = vmatpush.bf16.msra.mxu0 0
        %977 = vmatpush.bf16.msra.mxu0 0
        %978 = vmatpush.bf16.msra.mxu0 0
        %979 = vmatpush.bf16.msra.mxu0 0
        %980 = vmatpush.bf16.msra.mxu0 0
        %981 = vmatpush.bf16.msra.mxu0 0
        %982 = vmatpush.bf16.msra.mxu0 %v973
        %983 = vmatmul.bf16.gmra.mxu0 %v876
        %v984 = vpop.f32.mrf.mxu0
        %v985 = vadd.f32 0.0, %v984
        %v986 = vpop.f32.mrf.mxu0
        %v987 = vadd.f32 0.0, %v986
        %988 = vmatmul.bf16.gmra.mxu0 %v879
        %v989 = vpop.f32.mrf.mxu0
        %v990 = vadd.f32 0.0, %v989
        %v991 = vpop.f32.mrf.mxu0
        %v992 = vadd.f32 0.0, %v991
        %993 = vmatmul.bf16.gmra.mxu0 %v882
        %v994 = vpop.f32.mrf.mxu0
        %v995 = vadd.f32 0.0, %v994
        %v996 = vpop.f32.mrf.mxu0
        %v997 = vadd.f32 0.0, %v996
        %998 = vmatmul.bf16.gmra.mxu0 %v885
        %v999 = vpop.f32.mrf.mxu0
        %v1000 = vadd.f32 0.0, %v999
        %v1001 = vpop.f32.mrf.mxu0
        %v1002 = vadd.f32 0.0, %v1001
        %1003 = vmatmul.bf16.gmra.mxu0 %v888
        %v1004 = vpop.f32.mrf.mxu0
        %v1005 = vadd.f32 0.0, %v1004
        %v1006 = vpop.f32.mrf.mxu0
        %v1007 = vadd.f32 0.0, %v1006
        %1008 = vmatmul.bf16.gmra.mxu0 %v891
        %v1009 = vpop.f32.mrf.mxu0
        %v1010 = vadd.f32 0.0, %v1009
        %v1011 = vpop.f32.mrf.mxu0
        %v1012 = vadd.f32 0.0, %v1011
        %1013 = vmatmul.bf16.gmra.mxu0 %v894
        %v1014 = vpop.f32.mrf.mxu0
        %v1015 = vadd.f32 0.0, %v1014
        %v1016 = vpop.f32.mrf.mxu0
        %v1017 = vadd.f32 0.0, %v1016
        %1018 = vmatmul.bf16.gmra.mxu0 %v897
        %v1019 = vpop.f32.mrf.mxu0
        %v1020 = vadd.f32 0.0, %v1019
        %v1021 = vpop.f32.mrf.mxu0
        %v1022 = vadd.f32 0.0, %v1021
        %1023 = vmatmul.bf16.gmra.mxu0 %v900
        %v1024 = vpop.f32.mrf.mxu0
        %v1025 = vadd.f32 0.0, %v1024
        %v1026 = vpop.f32.mrf.mxu0
        %v1027 = vadd.f32 0.0, %v1026
        %1028 = vmatmul.bf16.gmra.mxu0 %v903
        %v1029 = vpop.f32.mrf.mxu0
        %v1030 = vadd.f32 0.0, %v1029
        %v1031 = vpop.f32.mrf.mxu0
        %v1032 = vadd.f32 0.0, %v1031
        %1033 = vmatmul.bf16.gmra.mxu0 %v906
        %v1034 = vpop.f32.mrf.mxu0
        %v1035 = vadd.f32 0.0, %v1034
        %v1036 = vpop.f32.mrf.mxu0
        %v1037 = vadd.f32 0.0, %v1036
        %1038 = vmatmul.bf16.gmra.mxu0 %v909
        %v1039 = vpop.f32.mrf.mxu0
        %v1040 = vadd.f32 0.0, %v1039
        %v1041 = vpop.f32.mrf.mxu0
        %v1042 = vadd.f32 0.0, %v1041
        %1043 = vmatmul.bf16.gmra.mxu0 %v912
        %v1044 = vpop.f32.mrf.mxu0
        %v1045 = vadd.f32 0.0, %v1044
        %v1046 = vpop.f32.mrf.mxu0
        %v1047 = vadd.f32 0.0, %v1046
        %1048 = vmatmul.bf16.gmra.mxu0 %v915
        %v1049 = vpop.f32.mrf.mxu0
        %v1050 = vadd.f32 0.0, %v1049
        %v1051 = vpop.f32.mrf.mxu0
        %v1052 = vadd.f32 0.0, %v1051
        %1053 = vmatmul.bf16.gmra.mxu0 %v918
        %v1054 = vpop.f32.mrf.mxu0
        %v1055 = vadd.f32 0.0, %v1054
        %v1056 = vpop.f32.mrf.mxu0
        %v1057 = vadd.f32 0.0, %v1056
        %1058 = vmatmul.bf16.gmra.mxu0 %v921
        %v1059 = vpop.f32.mrf.mxu0
        %v1060 = vadd.f32 0.0, %v1059
        %v1061 = vpop.f32.mrf.mxu0
        %v1062 = vadd.f32 0.0, %v1061
        %1063 = vmatmul.bf16.gmra.mxu0 %v924
        %v1064 = vpop.f32.mrf.mxu0
        %v1065 = vadd.f32 0.0, %v1064
        %v1066 = vpop.f32.mrf.mxu0
        %v1067 = vadd.f32 0.0, %v1066
        %1068 = vmatmul.bf16.gmra.mxu0 %v927
        %v1069 = vpop.f32.mrf.mxu0
        %v1070 = vadd.f32 0.0, %v1069
        %v1071 = vpop.f32.mrf.mxu0
        %v1072 = vadd.f32 0.0, %v1071
        %1073 = vmatmul.bf16.gmra.mxu0 %v930
        %v1074 = vpop.f32.mrf.mxu0
        %v1075 = vadd.f32 0.0, %v1074
        %v1076 = vpop.f32.mrf.mxu0
        %v1077 = vadd.f32 0.0, %v1076
        %1078 = vmatmul.bf16.gmra.mxu0 %v933
        %v1079 = vpop.f32.mrf.mxu0
        %v1080 = vadd.f32 0.0, %v1079
        %v1081 = vpop.f32.mrf.mxu0
        %v1082 = vadd.f32 0.0, %v1081
        %1083 = vmatmul.bf16.gmra.mxu0 %v936
        %v1084 = vpop.f32.mrf.mxu0
        %v1085 = vadd.f32 0.0, %v1084
        %v1086 = vpop.f32.mrf.mxu0
        %v1087 = vadd.f32 0.0, %v1086
        %1088 = vmatmul.bf16.gmra.mxu0 %v939
        %v1089 = vpop.f32.mrf.mxu0
        %v1090 = vadd.f32 0.0, %v1089
        %v1091 = vpop.f32.mrf.mxu0
        %v1092 = vadd.f32 0.0, %v1091
        %1093 = vmatmul.bf16.gmra.mxu0 %v942
        %v1094 = vpop.f32.mrf.mxu0
        %v1095 = vadd.f32 0.0, %v1094
        %v1096 = vpop.f32.mrf.mxu0
        %v1097 = vadd.f32 0.0, %v1096
        %1098 = vmatmul.bf16.gmra.mxu0 %v945
        %v1099 = vpop.f32.mrf.mxu0
        %v1100 = vadd.f32 0.0, %v1099
        %v1101 = vpop.f32.mrf.mxu0
        %v1102 = vadd.f32 0.0, %v1101
        %1103 = vmatmul.bf16.gmra.mxu0 %v948
        %v1104 = vpop.f32.mrf.mxu0
        %v1105 = vadd.f32 0.0, %v1104
        %v1106 = vpop.f32.mrf.mxu0
        %v1107 = vadd.f32 0.0, %v1106
        %1108 = vmatmul.bf16.gmra.mxu0 %v951
        %v1109 = vpop.f32.mrf.mxu0
        %v1110 = vadd.f32 0.0, %v1109
        %v1111 = vpop.f32.mrf.mxu0
        %v1112 = vadd.f32 0.0, %v1111
        %1113 = vmatmul.bf16.gmra.mxu0 %v954
        %v1114 = vpop.f32.mrf.mxu0
        %v1115 = vadd.f32 0.0, %v1114
        %v1116 = vpop.f32.mrf.mxu0
        %v1117 = vadd.f32 0.0, %v1116
        %1118 = vmatmul.bf16.gmra.mxu0 %v957
        %v1119 = vpop.f32.mrf.mxu0
        %v1120 = vadd.f32 0.0, %v1119
        %v1121 = vpop.f32.mrf.mxu0
        %v1122 = vadd.f32 0.0, %v1121
        %1123 = vmatmul.bf16.gmra.mxu0 %v960
        %v1124 = vpop.f32.mrf.mxu0
        %v1125 = vadd.f32 0.0, %v1124
        %v1126 = vpop.f32.mrf.mxu0
        %v1127 = vadd.f32 0.0, %v1126
        %1128 = vmatmul.bf16.gmra.mxu0 %v963
        %v1129 = vpop.f32.mrf.mxu0
        %v1130 = vadd.f32 0.0, %v1129
        %v1131 = vpop.f32.mrf.mxu0
        %v1132 = vadd.f32 0.0, %v1131
        %1133 = vmatmul.bf16.gmra.mxu0 %v966
        %v1134 = vpop.f32.mrf.mxu0
        %v1135 = vadd.f32 0.0, %v1134
        %v1136 = vpop.f32.mrf.mxu0
        %v1137 = vadd.f32 0.0, %v1136
        %1138 = vmatmul.bf16.gmra.mxu0 %v969
        %v1139 = vpop.f32.mrf.mxu0
        %v1140 = vadd.f32 0.0, %v1139
        %v1141 = vpop.f32.mrf.mxu0
        %v1142 = vadd.f32 0.0, %v1141
        %1143 = vdwg.mxu0
        %v1144 = vsel %vm874, %v563, 0
        %v1146 = vsel %vm874, %v564, 0
        %v1148 = vsel %vm874, %v565, 0
        %v1150 = vsel %vm874, %v566, 0
        %v1152 = vsel %vm874, %v567, 0
        %v1154 = vsel %vm874, %v568, 0
        %v1156 = vsel %vm874, %v569, 0
        %v1158 = vsel %vm874, %v570, 0
        %v1160 = vsel %vm874, %v571, 0
        %v1162 = vsel %vm874, %v572, 0
        %v1164 = vsel %vm874, %v573, 0
        %v1166 = vsel %vm874, %v574, 0
        %v1168 = vsel %vm874, %v575, 0
        %v1170 = vsel %vm874, %v576, 0
        %v1172 = vsel %vm874, %v577, 0
        %v1174 = vsel %vm874, %v578, 0
        %v1176 = vsel %vm874, %v579, 0
        %v1178 = vsel %vm874, %v580, 0
        %v1180 = vsel %vm874, %v581, 0
        %v1182 = vsel %vm874, %v582, 0
        %v1184 = vsel %vm874, %v583, 0
        %v1186 = vsel %vm874, %v584, 0
        %v1188 = vsel %vm874, %v585, 0
        %v1190 = vsel %vm874, %v586, 0
        %v1192 = vsel %vm874, %v587, 0
        %v1194 = vsel %vm874, %v588, 0
        %v1196 = vsel %vm874, %v589, 0
        %v1198 = vsel %vm874, %v590, 0
        %v1200 = vsel %vm874, %v591, 0
        %v1202 = vsel %vm874, %v592, 0
        %v1204 = vsel %vm874, %v593, 0
        %v1206 = vsel %vm874, %v594, 0
        %v1209 = vsel %vm971, %v610, 0
        %1211 = vmatpush.bf16.msra.mxu0 0
        %1212 = vmatpush.bf16.msra.mxu0 0
        %1213 = vmatpush.bf16.msra.mxu0 0
        %1214 = vmatpush.bf16.msra.mxu0 0
        %1215 = vmatpush.bf16.msra.mxu0 0
        %1216 = vmatpush.bf16.msra.mxu0 0
        %1217 = vmatpush.bf16.msra.mxu0 0
        %1218 = vmatpush.bf16.msra.mxu0 %v1209
        %1219 = vmatmul.bf16.gmra.mxu0 %v1144
        %v1220 = vpop.f32.mrf.mxu0
        %v1221 = vadd.f32 %v985, %v1220
        %v1222 = vpop.f32.mrf.mxu0
        %v1223 = vadd.f32 %v987, %v1222
        %1224 = vmatmul.bf16.gmra.mxu0 %v1146
        %v1225 = vpop.f32.mrf.mxu0
        %v1226 = vadd.f32 %v990, %v1225
        %v1227 = vpop.f32.mrf.mxu0
        %v1228 = vadd.f32 %v992, %v1227
        %1229 = vmatmul.bf16.gmra.mxu0 %v1148
        %v1230 = vpop.f32.mrf.mxu0
        %v1231 = vadd.f32 %v995, %v1230
        %v1232 = vpop.f32.mrf.mxu0
        %v1233 = vadd.f32 %v997, %v1232
        %1234 = vmatmul.bf16.gmra.mxu0 %v1150
        %v1235 = vpop.f32.mrf.mxu0
        %v1236 = vadd.f32 %v1000, %v1235
        %v1237 = vpop.f32.mrf.mxu0
        %v1238 = vadd.f32 %v1002, %v1237
        %1239 = vmatmul.bf16.gmra.mxu0 %v1152
        %v1240 = vpop.f32.mrf.mxu0
        %v1241 = vadd.f32 %v1005, %v1240
        %v1242 = vpop.f32.mrf.mxu0
        %v1243 = vadd.f32 %v1007, %v1242
        %1244 = vmatmul.bf16.gmra.mxu0 %v1154
        %v1245 = vpop.f32.mrf.mxu0
        %v1246 = vadd.f32 %v1010, %v1245
        %v1247 = vpop.f32.mrf.mxu0
        %v1248 = vadd.f32 %v1012, %v1247
        %1249 = vmatmul.bf16.gmra.mxu0 %v1156
        %v1250 = vpop.f32.mrf.mxu0
        %v1251 = vadd.f32 %v1015, %v1250
        %v1252 = vpop.f32.mrf.mxu0
        %v1253 = vadd.f32 %v1017, %v1252
        %1254 = vmatmul.bf16.gmra.mxu0 %v1158
        %v1255 = vpop.f32.mrf.mxu0
        %v1256 = vadd.f32 %v1020, %v1255
        %v1257 = vpop.f32.mrf.mxu0
        %v1258 = vadd.f32 %v1022, %v1257
        %1259 = vmatmul.bf16.gmra.mxu0 %v1160
        %v1260 = vpop.f32.mrf.mxu0
        %v1261 = vadd.f32 %v1025, %v1260
        %v1262 = vpop.f32.mrf.mxu0
        %v1263 = vadd.f32 %v1027, %v1262
        %1264 = vmatmul.bf16.gmra.mxu0 %v1162
        %v1265 = vpop.f32.mrf.mxu0
        %v1266 = vadd.f32 %v1030, %v1265
        %v1267 = vpop.f32.mrf.mxu0
        %v1268 = vadd.f32 %v1032, %v1267
        %1269 = vmatmul.bf16.gmra.mxu0 %v1164
        %v1270 = vpop.f32.mrf.mxu0
        %v1271 = vadd.f32 %v1035, %v1270
        %v1272 = vpop.f32.mrf.mxu0
        %v1273 = vadd.f32 %v1037, %v1272
        %1274 = vmatmul.bf16.gmra.mxu0 %v1166
        %v1275 = vpop.f32.mrf.mxu0
        %v1276 = vadd.f32 %v1040, %v1275
        %v1277 = vpop.f32.mrf.mxu0
        %v1278 = vadd.f32 %v1042, %v1277
        %1279 = vmatmul.bf16.gmra.mxu0 %v1168
        %v1280 = vpop.f32.mrf.mxu0
        %v1281 = vadd.f32 %v1045, %v1280
        %v1282 = vpop.f32.mrf.mxu0
        %v1283 = vadd.f32 %v1047, %v1282
        %1284 = vmatmul.bf16.gmra.mxu0 %v1170
        %v1285 = vpop.f32.mrf.mxu0
        %v1286 = vadd.f32 %v1050, %v1285
        %v1287 = vpop.f32.mrf.mxu0
        %v1288 = vadd.f32 %v1052, %v1287
        %1289 = vmatmul.bf16.gmra.mxu0 %v1172
        %v1290 = vpop.f32.mrf.mxu0
        %v1291 = vadd.f32 %v1055, %v1290
        %v1292 = vpop.f32.mrf.mxu0
        %v1293 = vadd.f32 %v1057, %v1292
        %1294 = vmatmul.bf16.gmra.mxu0 %v1174
        %v1295 = vpop.f32.mrf.mxu0
        %v1296 = vadd.f32 %v1060, %v1295
        %v1297 = vpop.f32.mrf.mxu0
        %v1298 = vadd.f32 %v1062, %v1297
        %1299 = vmatmul.bf16.gmra.mxu0 %v1176
        %v1300 = vpop.f32.mrf.mxu0
        %v1301 = vadd.f32 %v1065, %v1300
        %v1302 = vpop.f32.mrf.mxu0
        %v1303 = vadd.f32 %v1067, %v1302
        %1304 = vmatmul.bf16.gmra.mxu0 %v1178
        %v1305 = vpop.f32.mrf.mxu0
        %v1306 = vadd.f32 %v1070, %v1305
        %v1307 = vpop.f32.mrf.mxu0
        %v1308 = vadd.f32 %v1072, %v1307
        %1309 = vmatmul.bf16.gmra.mxu0 %v1180
        %v1310 = vpop.f32.mrf.mxu0
        %v1311 = vadd.f32 %v1075, %v1310
        %v1312 = vpop.f32.mrf.mxu0
        %v1313 = vadd.f32 %v1077, %v1312
        %1314 = vmatmul.bf16.gmra.mxu0 %v1182
        %v1315 = vpop.f32.mrf.mxu0
        %v1316 = vadd.f32 %v1080, %v1315
        %v1317 = vpop.f32.mrf.mxu0
        %v1318 = vadd.f32 %v1082, %v1317
        %1319 = vmatmul.bf16.gmra.mxu0 %v1184
        %v1320 = vpop.f32.mrf.mxu0
        %v1321 = vadd.f32 %v1085, %v1320
        %v1322 = vpop.f32.mrf.mxu0
        %v1323 = vadd.f32 %v1087, %v1322
        %1324 = vmatmul.bf16.gmra.mxu0 %v1186
        %v1325 = vpop.f32.mrf.mxu0
        %v1326 = vadd.f32 %v1090, %v1325
        %v1327 = vpop.f32.mrf.mxu0
        %v1328 = vadd.f32 %v1092, %v1327
        %1329 = vmatmul.bf16.gmra.mxu0 %v1188
        %v1330 = vpop.f32.mrf.mxu0
        %v1331 = vadd.f32 %v1095, %v1330
        %v1332 = vpop.f32.mrf.mxu0
        %v1333 = vadd.f32 %v1097, %v1332
        %1334 = vmatmul.bf16.gmra.mxu0 %v1190
        %v1335 = vpop.f32.mrf.mxu0
        %v1336 = vadd.f32 %v1100, %v1335
        %v1337 = vpop.f32.mrf.mxu0
        %v1338 = vadd.f32 %v1102, %v1337
        %1339 = vmatmul.bf16.gmra.mxu0 %v1192
        %v1340 = vpop.f32.mrf.mxu0
        %v1341 = vadd.f32 %v1105, %v1340
        %v1342 = vpop.f32.mrf.mxu0
        %v1343 = vadd.f32 %v1107, %v1342
        %1344 = vmatmul.bf16.gmra.mxu0 %v1194
        %v1345 = vpop.f32.mrf.mxu0
        %v1346 = vadd.f32 %v1110, %v1345
        %v1347 = vpop.f32.mrf.mxu0
        %v1348 = vadd.f32 %v1112, %v1347
        %1349 = vmatmul.bf16.gmra.mxu0 %v1196
        %v1350 = vpop.f32.mrf.mxu0
        %v1351 = vadd.f32 %v1115, %v1350
        %v1352 = vpop.f32.mrf.mxu0
        %v1353 = vadd.f32 %v1117, %v1352
        %1354 = vmatmul.bf16.gmra.mxu0 %v1198
        %v1355 = vpop.f32.mrf.mxu0
        %v1356 = vadd.f32 %v1120, %v1355
        %v1357 = vpop.f32.mrf.mxu0
        %v1358 = vadd.f32 %v1122, %v1357
        %1359 = vmatmul.bf16.gmra.mxu0 %v1200
        %v1360 = vpop.f32.mrf.mxu0
        %v1361 = vadd.f32 %v1125, %v1360
        %v1362 = vpop.f32.mrf.mxu0
        %v1363 = vadd.f32 %v1127, %v1362
        %1364 = vmatmul.bf16.gmra.mxu0 %v1202
        %v1365 = vpop.f32.mrf.mxu0
        %v1366 = vadd.f32 %v1130, %v1365
        %v1367 = vpop.f32.mrf.mxu0
        %v1368 = vadd.f32 %v1132, %v1367
        %1369 = vmatmul.bf16.gmra.mxu0 %v1204
        %v1370 = vpop.f32.mrf.mxu0
        %v1371 = vadd.f32 %v1135, %v1370
        %v1372 = vpop.f32.mrf.mxu0
        %v1373 = vadd.f32 %v1137, %v1372
        %1374 = vmatmul.bf16.gmra.mxu0 %v1206
        %v1375 = vpop.f32.mrf.mxu0
        %v1376 = vadd.f32 %v1140, %v1375
        %v1377 = vpop.f32.mrf.mxu0
        %v1378 = vadd.f32 %v1142, %v1377
        %1379 = vdwg.mxu0
        %s1380 = scalar_lea.vmem %s3, 4
        %v1381 = vld [vmem:[%s1380] sm:$0x3]
        %vm1382 = vcmask 1046528
        %v1383 = vrot.slane %v563, 1
        %v1384 = vrot.slane %v564, 1
        %v1385 = vsel %vm1382, %v1383, %v1384
        %v1386 = vrot.slane %v565, 1
        %v1387 = vsel %vm1382, %v1384, %v1386
        %v1388 = vrot.slane %v566, 1
        %v1389 = vsel %vm1382, %v1386, %v1388
        %v1390 = vrot.slane %v567, 1
        %v1391 = vsel %vm1382, %v1388, %v1390
        %v1392 = vrot.slane %v568, 1
        %v1393 = vsel %vm1382, %v1390, %v1392
        %v1394 = vrot.slane %v569, 1
        %v1395 = vsel %vm1382, %v1392, %v1394
        %v1396 = vrot.slane %v570, 1
        %v1397 = vsel %vm1382, %v1394, %v1396
        %v1398 = vrot.slane %v571, 1
        %v1399 = vsel %vm1382, %v1396, %v1398
        %v1400 = vrot.slane %v572, 1
        %v1401 = vsel %vm1382, %v1398, %v1400
        %v1402 = vrot.slane %v573, 1
        %v1403 = vsel %vm1382, %v1400, %v1402
        %v1404 = vrot.slane %v574, 1
        %v1405 = vsel %vm1382, %v1402, %v1404
        %v1406 = vrot.slane %v575, 1
        %v1407 = vsel %vm1382, %v1404, %v1406
        %v1408 = vrot.slane %v576, 1
        %v1409 = vsel %vm1382, %v1406, %v1408
        %v1410 = vrot.slane %v577, 1
        %v1411 = vsel %vm1382, %v1408, %v1410
        %v1412 = vrot.slane %v578, 1
        %v1413 = vsel %vm1382, %v1410, %v1412
        %v1414 = vrot.slane %v579, 1
        %v1415 = vsel %vm1382, %v1412, %v1414
        %v1416 = vrot.slane %v580, 1
        %v1417 = vsel %vm1382, %v1414, %v1416
        %v1418 = vrot.slane %v581, 1
        %v1419 = vsel %vm1382, %v1416, %v1418
        %v1420 = vrot.slane %v582, 1
        %v1421 = vsel %vm1382, %v1418, %v1420
        %v1422 = vrot.slane %v583, 1
        %v1423 = vsel %vm1382, %v1420, %v1422
        %v1424 = vrot.slane %v584, 1
        %v1425 = vsel %vm1382, %v1422, %v1424
        %v1426 = vrot.slane %v585, 1
        %v1427 = vsel %vm1382, %v1424, %v1426
        %v1428 = vrot.slane %v586, 1
        %v1429 = vsel %vm1382, %v1426, %v1428
        %v1430 = vrot.slane %v587, 1
        %v1431 = vsel %vm1382, %v1428, %v1430
        %v1432 = vrot.slane %v588, 1
        %v1433 = vsel %vm1382, %v1430, %v1432
        %v1434 = vrot.slane %v589, 1
        %v1435 = vsel %vm1382, %v1432, %v1434
        %v1436 = vrot.slane %v590, 1
        %v1437 = vsel %vm1382, %v1434, %v1436
        %v1438 = vrot.slane %v591, 1
        %v1439 = vsel %vm1382, %v1436, %v1438
        %v1440 = vrot.slane %v592, 1
        %v1441 = vsel %vm1382, %v1438, %v1440
        %v1442 = vrot.slane %v593, 1
        %v1443 = vsel %vm1382, %v1440, %v1442
        %v1444 = vrot.slane %v594, 1
        %v1445 = vsel %vm1382, %v1442, %v1444
        %v1446 = vrot.slane %v607, 1
        %v1447 = vsel %vm1382, %v1444, %v1446
        %v1449 = vsel %vm874, %v1385, 0
        %v1452 = vsel %vm874, %v1387, 0
        %v1455 = vsel %vm874, %v1389, 0
        %v1458 = vsel %vm874, %v1391, 0
        %v1461 = vsel %vm874, %v1393, 0
        %v1464 = vsel %vm874, %v1395, 0
        %v1467 = vsel %vm874, %v1397, 0
        %v1470 = vsel %vm874, %v1399, 0
        %v1473 = vsel %vm874, %v1401, 0
        %v1476 = vsel %vm874, %v1403, 0
        %v1479 = vsel %vm874, %v1405, 0
        %v1482 = vsel %vm874, %v1407, 0
        %v1485 = vsel %vm874, %v1409, 0
        %v1488 = vsel %vm874, %v1411, 0
        %v1491 = vsel %vm874, %v1413, 0
        %v1494 = vsel %vm874, %v1415, 0
        %v1497 = vsel %vm874, %v1417, 0
        %v1500 = vsel %vm874, %v1419, 0
        %v1503 = vsel %vm874, %v1421, 0
        %v1506 = vsel %vm874, %v1423, 0
        %v1509 = vsel %vm874, %v1425, 0
        %v1512 = vsel %vm874, %v1427, 0
        %v1515 = vsel %vm874, %v1429, 0
        %v1518 = vsel %vm874, %v1431, 0
        %v1521 = vsel %vm874, %v1433, 0
        %v1524 = vsel %vm874, %v1435, 0
        %v1527 = vsel %vm874, %v1437, 0
        %v1530 = vsel %vm874, %v1439, 0
        %v1533 = vsel %vm874, %v1441, 0
        %v1536 = vsel %vm874, %v1443, 0
        %v1539 = vsel %vm874, %v1445, 0
        %v1542 = vsel %vm874, %v1447, 0
        %v1545 = vsel %vm971, %v1381, 0
        %1547 = vmatpush.bf16.msra.mxu0 0
        %1548 = vmatpush.bf16.msra.mxu0 0
        %1549 = vmatpush.bf16.msra.mxu0 0
        %1550 = vmatpush.bf16.msra.mxu0 0
        %1551 = vmatpush.bf16.msra.mxu0 0
        %1552 = vmatpush.bf16.msra.mxu0 0
        %1553 = vmatpush.bf16.msra.mxu0 0
        %1554 = vmatpush.bf16.msra.mxu0 %v1545
        %1555 = vmatmul.bf16.gmra.mxu0 %v1449
        %v1556 = vpop.f32.mrf.mxu0
        %v1557 = vadd.f32 0.0, %v1556
        %v1558 = vpop.f32.mrf.mxu0
        %v1559 = vadd.f32 0.0, %v1558
        %1560 = vmatmul.bf16.gmra.mxu0 %v1452
        %v1561 = vpop.f32.mrf.mxu0
        %v1562 = vadd.f32 0.0, %v1561
        %v1563 = vpop.f32.mrf.mxu0
        %v1564 = vadd.f32 0.0, %v1563
        %1565 = vmatmul.bf16.gmra.mxu0 %v1455
        %v1566 = vpop.f32.mrf.mxu0
        %v1567 = vadd.f32 0.0, %v1566
        %v1568 = vpop.f32.mrf.mxu0
        %v1569 = vadd.f32 0.0, %v1568
        %1570 = vmatmul.bf16.gmra.mxu0 %v1458
        %v1571 = vpop.f32.mrf.mxu0
        %v1572 = vadd.f32 0.0, %v1571
        %v1573 = vpop.f32.mrf.mxu0
        %v1574 = vadd.f32 0.0, %v1573
        %1575 = vmatmul.bf16.gmra.mxu0 %v1461
        %v1576 = vpop.f32.mrf.mxu0
        %v1577 = vadd.f32 0.0, %v1576
        %v1578 = vpop.f32.mrf.mxu0
        %v1579 = vadd.f32 0.0, %v1578
        %1580 = vmatmul.bf16.gmra.mxu0 %v1464
        %v1581 = vpop.f32.mrf.mxu0
        %v1582 = vadd.f32 0.0, %v1581
        %v1583 = vpop.f32.mrf.mxu0
        %v1584 = vadd.f32 0.0, %v1583
        %1585 = vmatmul.bf16.gmra.mxu0 %v1467
        %v1586 = vpop.f32.mrf.mxu0
        %v1587 = vadd.f32 0.0, %v1586
        %v1588 = vpop.f32.mrf.mxu0
        %v1589 = vadd.f32 0.0, %v1588
        %1590 = vmatmul.bf16.gmra.mxu0 %v1470
        %v1591 = vpop.f32.mrf.mxu0
        %v1592 = vadd.f32 0.0, %v1591
        %v1593 = vpop.f32.mrf.mxu0
        %v1594 = vadd.f32 0.0, %v1593
        %1595 = vmatmul.bf16.gmra.mxu0 %v1473
        %v1596 = vpop.f32.mrf.mxu0
        %v1597 = vadd.f32 0.0, %v1596
        %v1598 = vpop.f32.mrf.mxu0
        %v1599 = vadd.f32 0.0, %v1598
        %1600 = vmatmul.bf16.gmra.mxu0 %v1476
        %v1601 = vpop.f32.mrf.mxu0
        %v1602 = vadd.f32 0.0, %v1601
        %v1603 = vpop.f32.mrf.mxu0
        %v1604 = vadd.f32 0.0, %v1603
        %1605 = vmatmul.bf16.gmra.mxu0 %v1479
        %v1606 = vpop.f32.mrf.mxu0
        %v1607 = vadd.f32 0.0, %v1606
        %v1608 = vpop.f32.mrf.mxu0
        %v1609 = vadd.f32 0.0, %v1608
        %1610 = vmatmul.bf16.gmra.mxu0 %v1482
        %v1611 = vpop.f32.mrf.mxu0
        %v1612 = vadd.f32 0.0, %v1611
        %v1613 = vpop.f32.mrf.mxu0
        %v1614 = vadd.f32 0.0, %v1613
        %1615 = vmatmul.bf16.gmra.mxu0 %v1485
        %v1616 = vpop.f32.mrf.mxu0
        %v1617 = vadd.f32 0.0, %v1616
        %v1618 = vpop.f32.mrf.mxu0
        %v1619 = vadd.f32 0.0, %v1618
        %1620 = vmatmul.bf16.gmra.mxu0 %v1488
        %v1621 = vpop.f32.mrf.mxu0
        %v1622 = vadd.f32 0.0, %v1621
        %v1623 = vpop.f32.mrf.mxu0
        %v1624 = vadd.f32 0.0, %v1623
        %1625 = vmatmul.bf16.gmra.mxu0 %v1491
        %v1626 = vpop.f32.mrf.mxu0
        %v1627 = vadd.f32 0.0, %v1626
        %v1628 = vpop.f32.mrf.mxu0
        %v1629 = vadd.f32 0.0, %v1628
        %1630 = vmatmul.bf16.gmra.mxu0 %v1494
        %v1631 = vpop.f32.mrf.mxu0
        %v1632 = vadd.f32 0.0, %v1631
        %v1633 = vpop.f32.mrf.mxu0
        %v1634 = vadd.f32 0.0, %v1633
        %1635 = vmatmul.bf16.gmra.mxu0 %v1497
        %v1636 = vpop.f32.mrf.mxu0
        %v1637 = vadd.f32 0.0, %v1636
        %v1638 = vpop.f32.mrf.mxu0
        %v1639 = vadd.f32 0.0, %v1638
        %1640 = vmatmul.bf16.gmra.mxu0 %v1500
        %v1641 = vpop.f32.mrf.mxu0
        %v1642 = vadd.f32 0.0, %v1641
        %v1643 = vpop.f32.mrf.mxu0
        %v1644 = vadd.f32 0.0, %v1643
        %1645 = vmatmul.bf16.gmra.mxu0 %v1503
        %v1646 = vpop.f32.mrf.mxu0
        %v1647 = vadd.f32 0.0, %v1646
        %v1648 = vpop.f32.mrf.mxu0
        %v1649 = vadd.f32 0.0, %v1648
        %1650 = vmatmul.bf16.gmra.mxu0 %v1506
        %v1651 = vpop.f32.mrf.mxu0
        %v1652 = vadd.f32 0.0, %v1651
        %v1653 = vpop.f32.mrf.mxu0
        %v1654 = vadd.f32 0.0, %v1653
        %1655 = vmatmul.bf16.gmra.mxu0 %v1509
        %v1656 = vpop.f32.mrf.mxu0
        %v1657 = vadd.f32 0.0, %v1656
        %v1658 = vpop.f32.mrf.mxu0
        %v1659 = vadd.f32 0.0, %v1658
        %1660 = vmatmul.bf16.gmra.mxu0 %v1512
        %v1661 = vpop.f32.mrf.mxu0
        %v1662 = vadd.f32 0.0, %v1661
        %v1663 = vpop.f32.mrf.mxu0
        %v1664 = vadd.f32 0.0, %v1663
        %1665 = vmatmul.bf16.gmra.mxu0 %v1515
        %v1666 = vpop.f32.mrf.mxu0
        %v1667 = vadd.f32 0.0, %v1666
        %v1668 = vpop.f32.mrf.mxu0
        %v1669 = vadd.f32 0.0, %v1668
        %1670 = vmatmul.bf16.gmra.mxu0 %v1518
        %v1671 = vpop.f32.mrf.mxu0
        %v1672 = vadd.f32 0.0, %v1671
        %v1673 = vpop.f32.mrf.mxu0
        %v1674 = vadd.f32 0.0, %v1673
        %1675 = vmatmul.bf16.gmra.mxu0 %v1521
        %v1676 = vpop.f32.mrf.mxu0
        %v1677 = vadd.f32 0.0, %v1676
        %v1678 = vpop.f32.mrf.mxu0
        %v1679 = vadd.f32 0.0, %v1678
        %1680 = vmatmul.bf16.gmra.mxu0 %v1524
        %v1681 = vpop.f32.mrf.mxu0
        %v1682 = vadd.f32 0.0, %v1681
        %v1683 = vpop.f32.mrf.mxu0
        %v1684 = vadd.f32 0.0, %v1683
        %1685 = vmatmul.bf16.gmra.mxu0 %v1527
        %v1686 = vpop.f32.mrf.mxu0
        %v1687 = vadd.f32 0.0, %v1686
        %v1688 = vpop.f32.mrf.mxu0
        %v1689 = vadd.f32 0.0, %v1688
        %1690 = vmatmul.bf16.gmra.mxu0 %v1530
        %v1691 = vpop.f32.mrf.mxu0
        %v1692 = vadd.f32 0.0, %v1691
        %v1693 = vpop.f32.mrf.mxu0
        %v1694 = vadd.f32 0.0, %v1693
        %1695 = vmatmul.bf16.gmra.mxu0 %v1533
        %v1696 = vpop.f32.mrf.mxu0
        %v1697 = vadd.f32 0.0, %v1696
        %v1698 = vpop.f32.mrf.mxu0
        %v1699 = vadd.f32 0.0, %v1698
        %1700 = vmatmul.bf16.gmra.mxu0 %v1536
        %v1701 = vpop.f32.mrf.mxu0
        %v1702 = vadd.f32 0.0, %v1701
        %v1703 = vpop.f32.mrf.mxu0
        %v1704 = vadd.f32 0.0, %v1703
        %1705 = vmatmul.bf16.gmra.mxu0 %v1539
        %v1706 = vpop.f32.mrf.mxu0
        %v1707 = vadd.f32 0.0, %v1706
        %v1708 = vpop.f32.mrf.mxu0
        %v1709 = vadd.f32 0.0, %v1708
        %1710 = vmatmul.bf16.gmra.mxu0 %v1542
        %v1711 = vpop.f32.mrf.mxu0
        %v1712 = vadd.f32 0.0, %v1711
        %v1713 = vpop.f32.mrf.mxu0
        %v1714 = vadd.f32 0.0, %v1713
        %1715 = vdwg.mxu0
        %v1716 = vadd.f32 %v1221, %v1557
        %v1717 = vadd.f32 %v1223, %v1559
        %v1718 = vadd.f32 %v1226, %v1562
        %v1719 = vadd.f32 %v1228, %v1564
        %v1720 = vadd.f32 %v1231, %v1567
        %v1721 = vadd.f32 %v1233, %v1569
        %v1722 = vadd.f32 %v1236, %v1572
        %v1723 = vadd.f32 %v1238, %v1574
        %v1724 = vadd.f32 %v1241, %v1577
        %v1725 = vadd.f32 %v1243, %v1579
        %v1726 = vadd.f32 %v1246, %v1582
        %v1727 = vadd.f32 %v1248, %v1584
        %v1728 = vadd.f32 %v1251, %v1587
        %v1729 = vadd.f32 %v1253, %v1589
        %v1730 = vadd.f32 %v1256, %v1592
        %v1731 = vadd.f32 %v1258, %v1594
        %v1732 = vadd.f32 %v1261, %v1597
        %v1733 = vadd.f32 %v1263, %v1599
        %v1734 = vadd.f32 %v1266, %v1602
        %v1735 = vadd.f32 %v1268, %v1604
        %v1736 = vadd.f32 %v1271, %v1607
        %v1737 = vadd.f32 %v1273, %v1609
        %v1738 = vadd.f32 %v1276, %v1612
        %v1739 = vadd.f32 %v1278, %v1614
        %v1740 = vadd.f32 %v1281, %v1617
        %v1741 = vadd.f32 %v1283, %v1619
        %v1742 = vadd.f32 %v1286, %v1622
        %v1743 = vadd.f32 %v1288, %v1624
        %v1744 = vadd.f32 %v1291, %v1627
        %v1745 = vadd.f32 %v1293, %v1629
        %v1746 = vadd.f32 %v1296, %v1632
        %v1747 = vadd.f32 %v1298, %v1634
        %v1748 = vadd.f32 %v1301, %v1637
        %v1749 = vadd.f32 %v1303, %v1639
        %v1750 = vadd.f32 %v1306, %v1642
        %v1751 = vadd.f32 %v1308, %v1644
        %v1752 = vadd.f32 %v1311, %v1647
        %v1753 = vadd.f32 %v1313, %v1649
        %v1754 = vadd.f32 %v1316, %v1652
        %v1755 = vadd.f32 %v1318, %v1654
        %v1756 = vadd.f32 %v1321, %v1657
        %v1757 = vadd.f32 %v1323, %v1659
        %v1758 = vadd.f32 %v1326, %v1662
        %v1759 = vadd.f32 %v1328, %v1664
        %v1760 = vadd.f32 %v1331, %v1667
        %v1761 = vadd.f32 %v1333, %v1669
        %v1762 = vadd.f32 %v1336, %v1672
        %v1763 = vadd.f32 %v1338, %v1674
        %v1764 = vadd.f32 %v1341, %v1677
        %v1765 = vadd.f32 %v1343, %v1679
        %v1766 = vadd.f32 %v1346, %v1682
        %v1767 = vadd.f32 %v1348, %v1684
        %v1768 = vadd.f32 %v1351, %v1687
        %v1769 = vadd.f32 %v1353, %v1689
        %v1770 = vadd.f32 %v1356, %v1692
        %v1771 = vadd.f32 %v1358, %v1694
        %v1772 = vadd.f32 %v1361, %v1697
        %v1773 = vadd.f32 %v1363, %v1699
        %v1774 = vadd.f32 %v1366, %v1702
        %v1775 = vadd.f32 %v1368, %v1704
        %v1776 = vadd.f32 %v1371, %v1707
        %v1777 = vadd.f32 %v1373, %v1709
        %v1778 = vadd.f32 %v1376, %v1712
        %v1779 = vadd.f32 %v1378, %v1714
        %s1780 = scalar_lea.vmem %s3, 6
        %v1781 = vld [vmem:[%s1780] sm:$0x3]
        %v1782 = vrot.slane %v608, 1
        %v1783 = vsel %vm1382, %v1446, %v1782
        %v1785 = vsel %vm874, %v1783, 0
        %v1788 = vsel %vm971, %v1781, 0
        %1790 = vmatpush.bf16.msra.mxu0 0
        %1791 = vmatpush.bf16.msra.mxu0 0
        %1792 = vmatpush.bf16.msra.mxu0 0
        %1793 = vmatpush.bf16.msra.mxu0 0
        %1794 = vmatpush.bf16.msra.mxu0 0
        %1795 = vmatpush.bf16.msra.mxu0 0
        %1796 = vmatpush.bf16.msra.mxu0 0
        %1797 = vmatpush.bf16.msra.mxu0 %v1788
        %1798 = vmatmul.bf16.gmra.mxu0 %v1452
        %v1799 = vpop.f32.mrf.mxu0
        %v1800 = vadd.f32 0.0, %v1799
        %v1801 = vpop.f32.mrf.mxu0
        %v1802 = vadd.f32 0.0, %v1801
        %1803 = vmatmul.bf16.gmra.mxu0 %v1455
        %v1804 = vpop.f32.mrf.mxu0
        %v1805 = vadd.f32 0.0, %v1804
        %v1806 = vpop.f32.mrf.mxu0
        %v1807 = vadd.f32 0.0, %v1806
        %1808 = vmatmul.bf16.gmra.mxu0 %v1458
        %v1809 = vpop.f32.mrf.mxu0
        %v1810 = vadd.f32 0.0, %v1809
        %v1811 = vpop.f32.mrf.mxu0
        %v1812 = vadd.f32 0.0, %v1811
        %1813 = vmatmul.bf16.gmra.mxu0 %v1461
        %v1814 = vpop.f32.mrf.mxu0
        %v1815 = vadd.f32 0.0, %v1814
        %v1816 = vpop.f32.mrf.mxu0
        %v1817 = vadd.f32 0.0, %v1816
        %1818 = vmatmul.bf16.gmra.mxu0 %v1464
        %v1819 = vpop.f32.mrf.mxu0
        %v1820 = vadd.f32 0.0, %v1819
        %v1821 = vpop.f32.mrf.mxu0
        %v1822 = vadd.f32 0.0, %v1821
        %1823 = vmatmul.bf16.gmra.mxu0 %v1467
        %v1824 = vpop.f32.mrf.mxu0
        %v1825 = vadd.f32 0.0, %v1824
        %v1826 = vpop.f32.mrf.mxu0
        %v1827 = vadd.f32 0.0, %v1826
        %1828 = vmatmul.bf16.gmra.mxu0 %v1470
        %v1829 = vpop.f32.mrf.mxu0
        %v1830 = vadd.f32 0.0, %v1829
        %v1831 = vpop.f32.mrf.mxu0
        %v1832 = vadd.f32 0.0, %v1831
        %1833 = vmatmul.bf16.gmra.mxu0 %v1473
        %v1834 = vpop.f32.mrf.mxu0
        %v1835 = vadd.f32 0.0, %v1834
        %v1836 = vpop.f32.mrf.mxu0
        %v1837 = vadd.f32 0.0, %v1836
        %1838 = vmatmul.bf16.gmra.mxu0 %v1476
        %v1839 = vpop.f32.mrf.mxu0
        %v1840 = vadd.f32 0.0, %v1839
        %v1841 = vpop.f32.mrf.mxu0
        %v1842 = vadd.f32 0.0, %v1841
        %1843 = vmatmul.bf16.gmra.mxu0 %v1479
        %v1844 = vpop.f32.mrf.mxu0
        %v1845 = vadd.f32 0.0, %v1844
        %v1846 = vpop.f32.mrf.mxu0
        %v1847 = vadd.f32 0.0, %v1846
        %1848 = vmatmul.bf16.gmra.mxu0 %v1482
        %v1849 = vpop.f32.mrf.mxu0
        %v1850 = vadd.f32 0.0, %v1849
        %v1851 = vpop.f32.mrf.mxu0
        %v1852 = vadd.f32 0.0, %v1851
        %1853 = vmatmul.bf16.gmra.mxu0 %v1485
        %v1854 = vpop.f32.mrf.mxu0
        %v1855 = vadd.f32 0.0, %v1854
        %v1856 = vpop.f32.mrf.mxu0
        %v1857 = vadd.f32 0.0, %v1856
        %1858 = vmatmul.bf16.gmra.mxu0 %v1488
        %v1859 = vpop.f32.mrf.mxu0
        %v1860 = vadd.f32 0.0, %v1859
        %v1861 = vpop.f32.mrf.mxu0
        %v1862 = vadd.f32 0.0, %v1861
        %1863 = vmatmul.bf16.gmra.mxu0 %v1491
        %v1864 = vpop.f32.mrf.mxu0
        %v1865 = vadd.f32 0.0, %v1864
        %v1866 = vpop.f32.mrf.mxu0
        %v1867 = vadd.f32 0.0, %v1866
        %1868 = vmatmul.bf16.gmra.mxu0 %v1494
        %v1869 = vpop.f32.mrf.mxu0
        %v1870 = vadd.f32 0.0, %v1869
        %v1871 = vpop.f32.mrf.mxu0
        %v1872 = vadd.f32 0.0, %v1871
        %1873 = vmatmul.bf16.gmra.mxu0 %v1497
        %v1874 = vpop.f32.mrf.mxu0
        %v1875 = vadd.f32 0.0, %v1874
        %v1876 = vpop.f32.mrf.mxu0
        %v1877 = vadd.f32 0.0, %v1876
        %1878 = vmatmul.bf16.gmra.mxu0 %v1500
        %v1879 = vpop.f32.mrf.mxu0
        %v1880 = vadd.f32 0.0, %v1879
        %v1881 = vpop.f32.mrf.mxu0
        %v1882 = vadd.f32 0.0, %v1881
        %1883 = vmatmul.bf16.gmra.mxu0 %v1503
        %v1884 = vpop.f32.mrf.mxu0
        %v1885 = vadd.f32 0.0, %v1884
        %v1886 = vpop.f32.mrf.mxu0
        %v1887 = vadd.f32 0.0, %v1886
        %1888 = vmatmul.bf16.gmra.mxu0 %v1506
        %v1889 = vpop.f32.mrf.mxu0
        %v1890 = vadd.f32 0.0, %v1889
        %v1891 = vpop.f32.mrf.mxu0
        %v1892 = vadd.f32 0.0, %v1891
        %1893 = vmatmul.bf16.gmra.mxu0 %v1509
        %v1894 = vpop.f32.mrf.mxu0
        %v1895 = vadd.f32 0.0, %v1894
        %v1896 = vpop.f32.mrf.mxu0
        %v1897 = vadd.f32 0.0, %v1896
        %1898 = vmatmul.bf16.gmra.mxu0 %v1512
        %v1899 = vpop.f32.mrf.mxu0
        %v1900 = vadd.f32 0.0, %v1899
        %v1901 = vpop.f32.mrf.mxu0
        %v1902 = vadd.f32 0.0, %v1901
        %1903 = vmatmul.bf16.gmra.mxu0 %v1515
        %v1904 = vpop.f32.mrf.mxu0
        %v1905 = vadd.f32 0.0, %v1904
        %v1906 = vpop.f32.mrf.mxu0
        %v1907 = vadd.f32 0.0, %v1906
        %1908 = vmatmul.bf16.gmra.mxu0 %v1518
        %v1909 = vpop.f32.mrf.mxu0
        %v1910 = vadd.f32 0.0, %v1909
        %v1911 = vpop.f32.mrf.mxu0
        %v1912 = vadd.f32 0.0, %v1911
        %1913 = vmatmul.bf16.gmra.mxu0 %v1521
        %v1914 = vpop.f32.mrf.mxu0
        %v1915 = vadd.f32 0.0, %v1914
        %v1916 = vpop.f32.mrf.mxu0
        %v1917 = vadd.f32 0.0, %v1916
        %1918 = vmatmul.bf16.gmra.mxu0 %v1524
        %v1919 = vpop.f32.mrf.mxu0
        %v1920 = vadd.f32 0.0, %v1919
        %v1921 = vpop.f32.mrf.mxu0
        %v1922 = vadd.f32 0.0, %v1921
        %1923 = vmatmul.bf16.gmra.mxu0 %v1527
        %v1924 = vpop.f32.mrf.mxu0
        %v1925 = vadd.f32 0.0, %v1924
        %v1926 = vpop.f32.mrf.mxu0
        %v1927 = vadd.f32 0.0, %v1926
        %1928 = vmatmul.bf16.gmra.mxu0 %v1530
        %v1929 = vpop.f32.mrf.mxu0
        %v1930 = vadd.f32 0.0, %v1929
        %v1931 = vpop.f32.mrf.mxu0
        %v1932 = vadd.f32 0.0, %v1931
        %1933 = vmatmul.bf16.gmra.mxu0 %v1533
        %v1934 = vpop.f32.mrf.mxu0
        %v1935 = vadd.f32 0.0, %v1934
        %v1936 = vpop.f32.mrf.mxu0
        %v1937 = vadd.f32 0.0, %v1936
        %1938 = vmatmul.bf16.gmra.mxu0 %v1536
        %v1939 = vpop.f32.mrf.mxu0
        %v1940 = vadd.f32 0.0, %v1939
        %v1941 = vpop.f32.mrf.mxu0
        %v1942 = vadd.f32 0.0, %v1941
        %1943 = vmatmul.bf16.gmra.mxu0 %v1539
        %v1944 = vpop.f32.mrf.mxu0
        %v1945 = vadd.f32 0.0, %v1944
        %v1946 = vpop.f32.mrf.mxu0
        %v1947 = vadd.f32 0.0, %v1946
        %1948 = vmatmul.bf16.gmra.mxu0 %v1542
        %v1949 = vpop.f32.mrf.mxu0
        %v1950 = vadd.f32 0.0, %v1949
        %v1951 = vpop.f32.mrf.mxu0
        %v1952 = vadd.f32 0.0, %v1951
        %1953 = vmatmul.bf16.gmra.mxu0 %v1785
        %v1954 = vpop.f32.mrf.mxu0
        %v1955 = vadd.f32 0.0, %v1954
        %v1956 = vpop.f32.mrf.mxu0
        %v1957 = vadd.f32 0.0, %v1956
        %1958 = vdwg.mxu0
        %v1959 = vadd.f32 %v1716, %v1800
        %v1960 = vadd.f32 %v1717, %v1802
        %v1961 = vadd.f32 %v1718, %v1805
        %v1962 = vadd.f32 %v1719, %v1807
        %v1963 = vadd.f32 %v1720, %v1810
        %v1964 = vadd.f32 %v1721, %v1812
        %v1965 = vadd.f32 %v1722, %v1815
        %v1966 = vadd.f32 %v1723, %v1817
        %v1967 = vadd.f32 %v1724, %v1820
        %v1968 = vadd.f32 %v1725, %v1822
        %v1969 = vadd.f32 %v1726, %v1825
        %v1970 = vadd.f32 %v1727, %v1827
        %v1971 = vadd.f32 %v1728, %v1830
        %v1972 = vadd.f32 %v1729, %v1832
        %v1973 = vadd.f32 %v1730, %v1835
        %v1974 = vadd.f32 %v1731, %v1837
        %v1975 = vadd.f32 %v1732, %v1840
        %v1976 = vadd.f32 %v1733, %v1842
        %v1977 = vadd.f32 %v1734, %v1845
        %v1978 = vadd.f32 %v1735, %v1847
        %v1979 = vadd.f32 %v1736, %v1850
        %v1980 = vadd.f32 %v1737, %v1852
        %v1981 = vadd.f32 %v1738, %v1855
        %v1982 = vadd.f32 %v1739, %v1857
        %v1983 = vadd.f32 %v1740, %v1860
        %v1984 = vadd.f32 %v1741, %v1862
        %v1985 = vadd.f32 %v1742, %v1865
        %v1986 = vadd.f32 %v1743, %v1867
        %v1987 = vadd.f32 %v1744, %v1870
        %v1988 = vadd.f32 %v1745, %v1872
        %v1989 = vadd.f32 %v1746, %v1875
        %v1990 = vadd.f32 %v1747, %v1877
        %v1991 = vadd.f32 %v1748, %v1880
        %v1992 = vadd.f32 %v1749, %v1882
        %v1993 = vadd.f32 %v1750, %v1885
        %v1994 = vadd.f32 %v1751, %v1887
        %v1995 = vadd.f32 %v1752, %v1890
        %v1996 = vadd.f32 %v1753, %v1892
        %v1997 = vadd.f32 %v1754, %v1895
        %v1998 = vadd.f32 %v1755, %v1897
        %v1999 = vadd.f32 %v1756, %v1900
        %v2000 = vadd.f32 %v1757, %v1902
        %v2001 = vadd.f32 %v1758, %v1905
        %v2002 = vadd.f32 %v1759, %v1907
        %v2003 = vadd.f32 %v1760, %v1910
        %v2004 = vadd.f32 %v1761, %v1912
        %v2005 = vadd.f32 %v1762, %v1915
        %v2006 = vadd.f32 %v1763, %v1917
        %v2007 = vadd.f32 %v1764, %v1920
        %v2008 = vadd.f32 %v1765, %v1922
        %v2009 = vadd.f32 %v1766, %v1925
        %v2010 = vadd.f32 %v1767, %v1927
        %v2011 = vadd.f32 %v1768, %v1930
        %v2012 = vadd.f32 %v1769, %v1932
        %v2013 = vadd.f32 %v1770, %v1935
        %v2014 = vadd.f32 %v1771, %v1937
        %v2015 = vadd.f32 %v1772, %v1940
        %v2016 = vadd.f32 %v1773, %v1942
        %v2017 = vadd.f32 %v1774, %v1945
        %v2018 = vadd.f32 %v1775, %v1947
        %v2019 = vadd.f32 %v1776, %v1950
        %v2020 = vadd.f32 %v1777, %v1952
        %v2021 = vadd.f32 %v1778, %v1955
        %v2022 = vadd.f32 %v1779, %v1957
        %s2023 = scalar_lea.vmem %s3, 8
        %v2024 = vld [vmem:[%s2023] sm:$0x3]
        %vm2025 = vsmask.f32 6400
        %v2026 = vrot.slane %v626, 1
        %v2027 = vrot.slane %v622, 2
        %v2028 = vor.u32 %v2026, %v2027
        %v2029 = vrot.slane %v634, 1
        %v2030 = vrot.slane %v630, 2
        %v2031 = vor.u32 %v2029, %v2030
        %v2032 = vsel %vm2025, %v2028, %v2031
        %v2033 = vrot.slane %v642, 1
        %v2034 = vrot.slane %v638, 2
        %v2035 = vor.u32 %v2033, %v2034
        %v2036 = vsel %vm2025, %v2031, %v2035
        %v2037 = vrot.slane %v650, 1
        %v2038 = vrot.slane %v646, 2
        %v2039 = vor.u32 %v2037, %v2038
        %v2040 = vsel %vm2025, %v2035, %v2039
        %v2041 = vrot.slane %v658, 1
        %v2042 = vrot.slane %v654, 2
        %v2043 = vor.u32 %v2041, %v2042
        %v2044 = vsel %vm2025, %v2039, %v2043
        %v2045 = vrot.slane %v666, 1
        %v2046 = vrot.slane %v662, 2
        %v2047 = vor.u32 %v2045, %v2046
        %v2048 = vsel %vm2025, %v2043, %v2047
        %v2049 = vrot.slane %v674, 1
        %v2050 = vrot.slane %v670, 2
        %v2051 = vor.u32 %v2049, %v2050
        %v2052 = vsel %vm2025, %v2047, %v2051
        %v2053 = vrot.slane %v682, 1
        %v2054 = vrot.slane %v678, 2
        %v2055 = vor.u32 %v2053, %v2054
        %v2056 = vsel %vm2025, %v2051, %v2055
        %v2057 = vrot.slane %v690, 1
        %v2058 = vrot.slane %v686, 2
        %v2059 = vor.u32 %v2057, %v2058
        %v2060 = vsel %vm2025, %v2055, %v2059
        %v2061 = vrot.slane %v698, 1
        %v2062 = vrot.slane %v694, 2
        %v2063 = vor.u32 %v2061, %v2062
        %v2064 = vsel %vm2025, %v2059, %v2063
        %v2065 = vrot.slane %v706, 1
        %v2066 = vrot.slane %v702, 2
        %v2067 = vor.u32 %v2065, %v2066
        %v2068 = vsel %vm2025, %v2063, %v2067
        %v2069 = vrot.slane %v714, 1
        %v2070 = vrot.slane %v710, 2
        %v2071 = vor.u32 %v2069, %v2070
        %v2072 = vsel %vm2025, %v2067, %v2071
        %v2073 = vrot.slane %v722, 1
        %v2074 = vrot.slane %v718, 2
        %v2075 = vor.u32 %v2073, %v2074
        %v2076 = vsel %vm2025, %v2071, %v2075
        %v2077 = vrot.slane %v730, 1
        %v2078 = vrot.slane %v726, 2
        %v2079 = vor.u32 %v2077, %v2078
        %v2080 = vsel %vm2025, %v2075, %v2079
        %v2081 = vrot.slane %v738, 1
        %v2082 = vrot.slane %v734, 2
        %v2083 = vor.u32 %v2081, %v2082
        %v2084 = vsel %vm2025, %v2079, %v2083
        %v2085 = vrot.slane %v746, 1
        %v2086 = vrot.slane %v742, 2
        %v2087 = vor.u32 %v2085, %v2086
        %v2088 = vsel %vm2025, %v2083, %v2087
        %v2089 = vrot.slane %v754, 1
        %v2090 = vrot.slane %v750, 2
        %v2091 = vor.u32 %v2089, %v2090
        %v2092 = vsel %vm2025, %v2087, %v2091
        %v2093 = vrot.slane %v762, 1
        %v2094 = vrot.slane %v758, 2
        %v2095 = vor.u32 %v2093, %v2094
        %v2096 = vsel %vm2025, %v2091, %v2095
        %v2097 = vrot.slane %v770, 1
        %v2098 = vrot.slane %v766, 2
        %v2099 = vor.u32 %v2097, %v2098
        %v2100 = vsel %vm2025, %v2095, %v2099
        %v2101 = vrot.slane %v778, 1
        %v2102 = vrot.slane %v774, 2
        %v2103 = vor.u32 %v2101, %v2102
        %v2104 = vsel %vm2025, %v2099, %v2103
        %v2105 = vrot.slane %v786, 1
        %v2106 = vrot.slane %v782, 2
        %v2107 = vor.u32 %v2105, %v2106
        %v2108 = vsel %vm2025, %v2103, %v2107
        %v2109 = vrot.slane %v794, 1
        %v2110 = vrot.slane %v790, 2
        %v2111 = vor.u32 %v2109, %v2110
        %v2112 = vsel %vm2025, %v2107, %v2111
        %v2113 = vrot.slane %v802, 1
        %v2114 = vrot.slane %v798, 2
        %v2115 = vor.u32 %v2113, %v2114
        %v2116 = vsel %vm2025, %v2111, %v2115
        %v2117 = vrot.slane %v810, 1
        %v2118 = vrot.slane %v806, 2
        %v2119 = vor.u32 %v2117, %v2118
        %v2120 = vsel %vm2025, %v2115, %v2119
        %v2121 = vrot.slane %v818, 1
        %v2122 = vrot.slane %v814, 2
        %v2123 = vor.u32 %v2121, %v2122
        %v2124 = vsel %vm2025, %v2119, %v2123
        %v2125 = vrot.slane %v826, 1
        %v2126 = vrot.slane %v822, 2
        %v2127 = vor.u32 %v2125, %v2126
        %v2128 = vsel %vm2025, %v2123, %v2127
        %v2129 = vrot.slane %v834, 1
        %v2130 = vrot.slane %v830, 2
        %v2131 = vor.u32 %v2129, %v2130
        %v2132 = vsel %vm2025, %v2127, %v2131
        %v2133 = vrot.slane %v842, 1
        %v2134 = vrot.slane %v838, 2
        %v2135 = vor.u32 %v2133, %v2134
        %v2136 = vsel %vm2025, %v2131, %v2135
        %v2137 = vrot.slane %v850, 1
        %v2138 = vrot.slane %v846, 2
        %v2139 = vor.u32 %v2137, %v2138
        %v2140 = vsel %vm2025, %v2135, %v2139
        %v2141 = vrot.slane %v858, 1
        %v2142 = vrot.slane %v854, 2
        %v2143 = vor.u32 %v2141, %v2142
        %v2144 = vsel %vm2025, %v2139, %v2143
        %v2145 = vrot.slane %v866, 1
        %v2146 = vrot.slane %v862, 2
        %v2147 = vor.u32 %v2145, %v2146
        %v2148 = vsel %vm2025, %v2143, %v2147
        %v2149 = vshrl.u32 %v607, 16
        %v2151 = vrot.slane %v2149, 1
        %v2152 = vrot.slane %v870, 2
        %v2153 = vor.u32 %v2151, %v2152
        %v2154 = vsel %vm2025, %v2147, %v2153
        %v2156 = vshrl.u32 %v608, 16
        %v2158 = vrot.slane %v2156, 1
        %v2159 = vshll.u32 %v608, 16
        %v2161 = vrot.slane %v2159, 2
        %v2162 = vor.u32 %v2158, %v2161
        %v2163 = vsel %vm2025, %v2153, %v2162
        %v2165 = vsel %vm874, %v2032, 0
        %v2168 = vsel %vm874, %v2036, 0
        %v2171 = vsel %vm874, %v2040, 0
        %v2174 = vsel %vm874, %v2044, 0
        %v2177 = vsel %vm874, %v2048, 0
        %v2180 = vsel %vm874, %v2052, 0
        %v2183 = vsel %vm874, %v2056, 0
        %v2186 = vsel %vm874, %v2060, 0
        %v2189 = vsel %vm874, %v2064, 0
        %v2192 = vsel %vm874, %v2068, 0
        %v2195 = vsel %vm874, %v2072, 0
        %v2198 = vsel %vm874, %v2076, 0
        %v2201 = vsel %vm874, %v2080, 0
        %v2204 = vsel %vm874, %v2084, 0
        %v2207 = vsel %vm874, %v2088, 0
        %v2210 = vsel %vm874, %v2092, 0
        %v2213 = vsel %vm874, %v2096, 0
        %v2216 = vsel %vm874, %v2100, 0
        %v2219 = vsel %vm874, %v2104, 0
        %v2222 = vsel %vm874, %v2108, 0
        %v2225 = vsel %vm874, %v2112, 0
        %v2228 = vsel %vm874, %v2116, 0
        %v2231 = vsel %vm874, %v2120, 0
        %v2234 = vsel %vm874, %v2124, 0
        %v2237 = vsel %vm874, %v2128, 0
        %v2240 = vsel %vm874, %v2132, 0
        %v2243 = vsel %vm874, %v2136, 0
        %v2246 = vsel %vm874, %v2140, 0
        %v2249 = vsel %vm874, %v2144, 0
        %v2252 = vsel %vm874, %v2148, 0
        %v2255 = vsel %vm874, %v2154, 0
        %v2258 = vsel %vm874, %v2163, 0
        %v2261 = vsel %vm971, %v2024, 0
        %2263 = vmatpush.bf16.msra.mxu0 0
        %2264 = vmatpush.bf16.msra.mxu0 0
        %2265 = vmatpush.bf16.msra.mxu0 0
        %2266 = vmatpush.bf16.msra.mxu0 0
        %2267 = vmatpush.bf16.msra.mxu0 0
        %2268 = vmatpush.bf16.msra.mxu0 0
        %2269 = vmatpush.bf16.msra.mxu0 0
        %2270 = vmatpush.bf16.msra.mxu0 %v2261
        %2271 = vmatmul.bf16.gmra.mxu0 %v2165
        %v2272 = vpop.f32.mrf.mxu0
        %v2273 = vadd.f32 0.0, %v2272
        %v2274 = vpop.f32.mrf.mxu0
        %v2275 = vadd.f32 0.0, %v2274
        %2276 = vmatmul.bf16.gmra.mxu0 %v2168
        %v2277 = vpop.f32.mrf.mxu0
        %v2278 = vadd.f32 0.0, %v2277
        %v2279 = vpop.f32.mrf.mxu0
        %v2280 = vadd.f32 0.0, %v2279
        %2281 = vmatmul.bf16.gmra.mxu0 %v2171
        %v2282 = vpop.f32.mrf.mxu0
        %v2283 = vadd.f32 0.0, %v2282
        %v2284 = vpop.f32.mrf.mxu0
        %v2285 = vadd.f32 0.0, %v2284
        %2286 = vmatmul.bf16.gmra.mxu0 %v2174
        %v2287 = vpop.f32.mrf.mxu0
        %v2288 = vadd.f32 0.0, %v2287
        %v2289 = vpop.f32.mrf.mxu0
        %v2290 = vadd.f32 0.0, %v2289
        %2291 = vmatmul.bf16.gmra.mxu0 %v2177
        %v2292 = vpop.f32.mrf.mxu0
        %v2293 = vadd.f32 0.0, %v2292
        %v2294 = vpop.f32.mrf.mxu0
        %v2295 = vadd.f32 0.0, %v2294
        %2296 = vmatmul.bf16.gmra.mxu0 %v2180
        %v2297 = vpop.f32.mrf.mxu0
        %v2298 = vadd.f32 0.0, %v2297
        %v2299 = vpop.f32.mrf.mxu0
        %v2300 = vadd.f32 0.0, %v2299
        %2301 = vmatmul.bf16.gmra.mxu0 %v2183
        %v2302 = vpop.f32.mrf.mxu0
        %v2303 = vadd.f32 0.0, %v2302
        %v2304 = vpop.f32.mrf.mxu0
        %v2305 = vadd.f32 0.0, %v2304
        %2306 = vmatmul.bf16.gmra.mxu0 %v2186
        %v2307 = vpop.f32.mrf.mxu0
        %v2308 = vadd.f32 0.0, %v2307
        %v2309 = vpop.f32.mrf.mxu0
        %v2310 = vadd.f32 0.0, %v2309
        %2311 = vmatmul.bf16.gmra.mxu0 %v2189
        %v2312 = vpop.f32.mrf.mxu0
        %v2313 = vadd.f32 0.0, %v2312
        %v2314 = vpop.f32.mrf.mxu0
        %v2315 = vadd.f32 0.0, %v2314
        %2316 = vmatmul.bf16.gmra.mxu0 %v2192
        %v2317 = vpop.f32.mrf.mxu0
        %v2318 = vadd.f32 0.0, %v2317
        %v2319 = vpop.f32.mrf.mxu0
        %v2320 = vadd.f32 0.0, %v2319
        %2321 = vmatmul.bf16.gmra.mxu0 %v2195
        %v2322 = vpop.f32.mrf.mxu0
        %v2323 = vadd.f32 0.0, %v2322
        %v2324 = vpop.f32.mrf.mxu0
        %v2325 = vadd.f32 0.0, %v2324
        %2326 = vmatmul.bf16.gmra.mxu0 %v2198
        %v2327 = vpop.f32.mrf.mxu0
        %v2328 = vadd.f32 0.0, %v2327
        %v2329 = vpop.f32.mrf.mxu0
        %v2330 = vadd.f32 0.0, %v2329
        %2331 = vmatmul.bf16.gmra.mxu0 %v2201
        %v2332 = vpop.f32.mrf.mxu0
        %v2333 = vadd.f32 0.0, %v2332
        %v2334 = vpop.f32.mrf.mxu0
        %v2335 = vadd.f32 0.0, %v2334
        %2336 = vmatmul.bf16.gmra.mxu0 %v2204
        %v2337 = vpop.f32.mrf.mxu0
        %v2338 = vadd.f32 0.0, %v2337
        %v2339 = vpop.f32.mrf.mxu0
        %v2340 = vadd.f32 0.0, %v2339
        %2341 = vmatmul.bf16.gmra.mxu0 %v2207
        %v2342 = vpop.f32.mrf.mxu0
        %v2343 = vadd.f32 0.0, %v2342
        %v2344 = vpop.f32.mrf.mxu0
        %v2345 = vadd.f32 0.0, %v2344
        %2346 = vmatmul.bf16.gmra.mxu0 %v2210
        %v2347 = vpop.f32.mrf.mxu0
        %v2348 = vadd.f32 0.0, %v2347
        %v2349 = vpop.f32.mrf.mxu0
        %v2350 = vadd.f32 0.0, %v2349
        %2351 = vmatmul.bf16.gmra.mxu0 %v2213
        %v2352 = vpop.f32.mrf.mxu0
        %v2353 = vadd.f32 0.0, %v2352
        %v2354 = vpop.f32.mrf.mxu0
        %v2355 = vadd.f32 0.0, %v2354
        %2356 = vmatmul.bf16.gmra.mxu0 %v2216
        %v2357 = vpop.f32.mrf.mxu0
        %v2358 = vadd.f32 0.0, %v2357
        %v2359 = vpop.f32.mrf.mxu0
        %v2360 = vadd.f32 0.0, %v2359
        %2361 = vmatmul.bf16.gmra.mxu0 %v2219
        %v2362 = vpop.f32.mrf.mxu0
        %v2363 = vadd.f32 0.0, %v2362
        %v2364 = vpop.f32.mrf.mxu0
        %v2365 = vadd.f32 0.0, %v2364
        %2366 = vmatmul.bf16.gmra.mxu0 %v2222
        %v2367 = vpop.f32.mrf.mxu0
        %v2368 = vadd.f32 0.0, %v2367
        %v2369 = vpop.f32.mrf.mxu0
        %v2370 = vadd.f32 0.0, %v2369
        %2371 = vmatmul.bf16.gmra.mxu0 %v2225
        %v2372 = vpop.f32.mrf.mxu0
        %v2373 = vadd.f32 0.0, %v2372
        %v2374 = vpop.f32.mrf.mxu0
        %v2375 = vadd.f32 0.0, %v2374
        %2376 = vmatmul.bf16.gmra.mxu0 %v2228
        %v2377 = vpop.f32.mrf.mxu0
        %v2378 = vadd.f32 0.0, %v2377
        %v2379 = vpop.f32.mrf.mxu0
        %v2380 = vadd.f32 0.0, %v2379
        %2381 = vmatmul.bf16.gmra.mxu0 %v2231
        %v2382 = vpop.f32.mrf.mxu0
        %v2383 = vadd.f32 0.0, %v2382
        %v2384 = vpop.f32.mrf.mxu0
        %v2385 = vadd.f32 0.0, %v2384
        %2386 = vmatmul.bf16.gmra.mxu0 %v2234
        %v2387 = vpop.f32.mrf.mxu0
        %v2388 = vadd.f32 0.0, %v2387
        %v2389 = vpop.f32.mrf.mxu0
        %v2390 = vadd.f32 0.0, %v2389
        %2391 = vmatmul.bf16.gmra.mxu0 %v2237
        %v2392 = vpop.f32.mrf.mxu0
        %v2393 = vadd.f32 0.0, %v2392
        %v2394 = vpop.f32.mrf.mxu0
        %v2395 = vadd.f32 0.0, %v2394
        %2396 = vmatmul.bf16.gmra.mxu0 %v2240
        %v2397 = vpop.f32.mrf.mxu0
        %v2398 = vadd.f32 0.0, %v2397
        %v2399 = vpop.f32.mrf.mxu0
        %v2400 = vadd.f32 0.0, %v2399
        %2401 = vmatmul.bf16.gmra.mxu0 %v2243
        %v2402 = vpop.f32.mrf.mxu0
        %v2403 = vadd.f32 0.0, %v2402
        %v2404 = vpop.f32.mrf.mxu0
        %v2405 = vadd.f32 0.0, %v2404
        %2406 = vmatmul.bf16.gmra.mxu0 %v2246
        %v2407 = vpop.f32.mrf.mxu0
        %v2408 = vadd.f32 0.0, %v2407
        %v2409 = vpop.f32.mrf.mxu0
        %v2410 = vadd.f32 0.0, %v2409
        %2411 = vmatmul.bf16.gmra.mxu0 %v2249
        %v2412 = vpop.f32.mrf.mxu0
        %v2413 = vadd.f32 0.0, %v2412
        %v2414 = vpop.f32.mrf.mxu0
        %v2415 = vadd.f32 0.0, %v2414
        %2416 = vmatmul.bf16.gmra.mxu0 %v2252
        %v2417 = vpop.f32.mrf.mxu0
        %v2418 = vadd.f32 0.0, %v2417
        %v2419 = vpop.f32.mrf.mxu0
        %v2420 = vadd.f32 0.0, %v2419
        %2421 = vmatmul.bf16.gmra.mxu0 %v2255
        %v2422 = vpop.f32.mrf.mxu0
        %v2423 = vadd.f32 0.0, %v2422
        %v2424 = vpop.f32.mrf.mxu0
        %v2425 = vadd.f32 0.0, %v2424
        %2426 = vmatmul.bf16.gmra.mxu0 %v2258
        %v2427 = vpop.f32.mrf.mxu0
        %v2428 = vadd.f32 0.0, %v2427
        %v2429 = vpop.f32.mrf.mxu0
        %v2430 = vadd.f32 0.0, %v2429
        %2431 = vdwg.mxu0
        %v2432 = vadd.f32 %v1959, %v2273
        %v2433 = vadd.f32 %v1960, %v2275
        %v2434 = vadd.f32 %v1961, %v2278
        %v2435 = vadd.f32 %v1962, %v2280
        %v2436 = vadd.f32 %v1963, %v2283
        %v2437 = vadd.f32 %v1964, %v2285
        %v2438 = vadd.f32 %v1965, %v2288
        %v2439 = vadd.f32 %v1966, %v2290
        %v2440 = vadd.f32 %v1967, %v2293
        %v2441 = vadd.f32 %v1968, %v2295
        %v2442 = vadd.f32 %v1969, %v2298
        %v2443 = vadd.f32 %v1970, %v2300
        %v2444 = vadd.f32 %v1971, %v2303
        %v2445 = vadd.f32 %v1972, %v2305
        %v2446 = vadd.f32 %v1973, %v2308
        %v2447 = vadd.f32 %v1974, %v2310
        %v2448 = vadd.f32 %v1975, %v2313
        %v2449 = vadd.f32 %v1976, %v2315
        %v2450 = vadd.f32 %v1977, %v2318
        %v2451 = vadd.f32 %v1978, %v2320
        %v2452 = vadd.f32 %v1979, %v2323
        %v2453 = vadd.f32 %v1980, %v2325
        %v2454 = vadd.f32 %v1981, %v2328
        %v2455 = vadd.f32 %v1982, %v2330
        %v2456 = vadd.f32 %v1983, %v2333
        %v2457 = vadd.f32 %v1984, %v2335
        %v2458 = vadd.f32 %v1985, %v2338
        %v2459 = vadd.f32 %v1986, %v2340
        %v2460 = vadd.f32 %v1987, %v2343
        %v2461 = vadd.f32 %v1988, %v2345
        %v2462 = vadd.f32 %v1989, %v2348
        %v2463 = vadd.f32 %v1990, %v2350
        %v2464 = vadd.f32 %v1991, %v2353
        %v2465 = vadd.f32 %v1992, %v2355
        %v2466 = vadd.f32 %v1993, %v2358
        %v2467 = vadd.f32 %v1994, %v2360
        %v2468 = vadd.f32 %v1995, %v2363
        %v2469 = vadd.f32 %v1996, %v2365
        %v2470 = vadd.f32 %v1997, %v2368
        %v2471 = vadd.f32 %v1998, %v2370
        %v2472 = vadd.f32 %v1999, %v2373
        %v2473 = vadd.f32 %v2000, %v2375
        %v2474 = vadd.f32 %v2001, %v2378
        %v2475 = vadd.f32 %v2002, %v2380
        %v2476 = vadd.f32 %v2003, %v2383
        %v2477 = vadd.f32 %v2004, %v2385
        %v2478 = vadd.f32 %v2005, %v2388
        %v2479 = vadd.f32 %v2006, %v2390
        %v2480 = vadd.f32 %v2007, %v2393
        %v2481 = vadd.f32 %v2008, %v2395
        %v2482 = vadd.f32 %v2009, %v2398
        %v2483 = vadd.f32 %v2010, %v2400
        %v2484 = vadd.f32 %v2011, %v2403
        %v2485 = vadd.f32 %v2012, %v2405
        %v2486 = vadd.f32 %v2013, %v2408
        %v2487 = vadd.f32 %v2014, %v2410
        %v2488 = vadd.f32 %v2015, %v2413
        %v2489 = vadd.f32 %v2016, %v2415
        %v2490 = vadd.f32 %v2017, %v2418
        %v2491 = vadd.f32 %v2018, %v2420
        %v2492 = vadd.f32 %v2019, %v2423
        %v2493 = vadd.f32 %v2020, %v2425
        %v2494 = vadd.f32 %v2021, %v2428
        %v2495 = vadd.f32 %v2022, %v2430
        %s2496 = scalar_lea.vmem %s3, 10
        %v2497 = vld [vmem:[%s2496] sm:$0x3]
        %vm2498 = vcmask 1045504
        %v2499 = vrot.slane %v564, 2
        %v2500 = vrot.slane %v565, 2
        %v2501 = vsel %vm2498, %v2499, %v2500
        %v2502 = vrot.slane %v566, 2
        %v2503 = vsel %vm2498, %v2500, %v2502
        %v2504 = vrot.slane %v567, 2
        %v2505 = vsel %vm2498, %v2502, %v2504
        %v2506 = vrot.slane %v568, 2
        %v2507 = vsel %vm2498, %v2504, %v2506
        %v2508 = vrot.slane %v569, 2
        %v2509 = vsel %vm2498, %v2506, %v2508
        %v2510 = vrot.slane %v570, 2
        %v2511 = vsel %vm2498, %v2508, %v2510
        %v2512 = vrot.slane %v571, 2
        %v2513 = vsel %vm2498, %v2510, %v2512
        %v2514 = vrot.slane %v572, 2
        %v2515 = vsel %vm2498, %v2512, %v2514
        %v2516 = vrot.slane %v573, 2
        %v2517 = vsel %vm2498, %v2514, %v2516
        %v2518 = vrot.slane %v574, 2
        %v2519 = vsel %vm2498, %v2516, %v2518
        %v2520 = vrot.slane %v575, 2
        %v2521 = vsel %vm2498, %v2518, %v2520
        %v2522 = vrot.slane %v576, 2
        %v2523 = vsel %vm2498, %v2520, %v2522
        %v2524 = vrot.slane %v577, 2
        %v2525 = vsel %vm2498, %v2522, %v2524
        %v2526 = vrot.slane %v578, 2
        %v2527 = vsel %vm2498, %v2524, %v2526
        %v2528 = vrot.slane %v579, 2
        %v2529 = vsel %vm2498, %v2526, %v2528
        %v2530 = vrot.slane %v580, 2
        %v2531 = vsel %vm2498, %v2528, %v2530
        %v2532 = vrot.slane %v581, 2
        %v2533 = vsel %vm2498, %v2530, %v2532
        %v2534 = vrot.slane %v582, 2
        %v2535 = vsel %vm2498, %v2532, %v2534
        %v2536 = vrot.slane %v583, 2
        %v2537 = vsel %vm2498, %v2534, %v2536
        %v2538 = vrot.slane %v584, 2
        %v2539 = vsel %vm2498, %v2536, %v2538
        %v2540 = vrot.slane %v585, 2
        %v2541 = vsel %vm2498, %v2538, %v2540
        %v2542 = vrot.slane %v586, 2
        %v2543 = vsel %vm2498, %v2540, %v2542
        %v2544 = vrot.slane %v587, 2
        %v2545 = vsel %vm2498, %v2542, %v2544
        %v2546 = vrot.slane %v588, 2
        %v2547 = vsel %vm2498, %v2544, %v2546
        %v2548 = vrot.slane %v589, 2
        %v2549 = vsel %vm2498, %v2546, %v2548
        %v2550 = vrot.slane %v590, 2
        %v2551 = vsel %vm2498, %v2548, %v2550
        %v2552 = vrot.slane %v591, 2
        %v2553 = vsel %vm2498, %v2550, %v2552
        %v2554 = vrot.slane %v592, 2
        %v2555 = vsel %vm2498, %v2552, %v2554
        %v2556 = vrot.slane %v593, 2
        %v2557 = vsel %vm2498, %v2554, %v2556
        %v2558 = vrot.slane %v594, 2
        %v2559 = vsel %vm2498, %v2556, %v2558
        %v2560 = vrot.slane %v607, 2
        %v2561 = vsel %vm2498, %v2558, %v2560
        %v2562 = vrot.slane %v608, 2
        %v2563 = vsel %vm2498, %v2560, %v2562
        %v2565 = vsel %vm874, %v2501, 0
        %v2568 = vsel %vm874, %v2503, 0
        %v2571 = vsel %vm874, %v2505, 0
        %v2574 = vsel %vm874, %v2507, 0
        %v2577 = vsel %vm874, %v2509, 0
        %v2580 = vsel %vm874, %v2511, 0
        %v2583 = vsel %vm874, %v2513, 0
        %v2586 = vsel %vm874, %v2515, 0
        %v2589 = vsel %vm874, %v2517, 0
        %v2592 = vsel %vm874, %v2519, 0
        %v2595 = vsel %vm874, %v2521, 0
        %v2598 = vsel %vm874, %v2523, 0
        %v2601 = vsel %vm874, %v2525, 0
        %v2604 = vsel %vm874, %v2527, 0
        %v2607 = vsel %vm874, %v2529, 0
        %v2610 = vsel %vm874, %v2531, 0
        %v2613 = vsel %vm874, %v2533, 0
        %v2616 = vsel %vm874, %v2535, 0
        %v2619 = vsel %vm874, %v2537, 0
        %v2622 = vsel %vm874, %v2539, 0
        %v2625 = vsel %vm874, %v2541, 0
        %v2628 = vsel %vm874, %v2543, 0
        %v2631 = vsel %vm874, %v2545, 0
        %v2634 = vsel %vm874, %v2547, 0
        %v2637 = vsel %vm874, %v2549, 0
        %v2640 = vsel %vm874, %v2551, 0
        %v2643 = vsel %vm874, %v2553, 0
        %v2646 = vsel %vm874, %v2555, 0
        %v2649 = vsel %vm874, %v2557, 0
        %v2652 = vsel %vm874, %v2559, 0
        %v2655 = vsel %vm874, %v2561, 0
        %v2658 = vsel %vm874, %v2563, 0
        %v2661 = vsel %vm971, %v2497, 0
        %2663 = vmatpush.bf16.msra.mxu0 0
        %2664 = vmatpush.bf16.msra.mxu0 0
        %2665 = vmatpush.bf16.msra.mxu0 0
        %2666 = vmatpush.bf16.msra.mxu0 0
        %2667 = vmatpush.bf16.msra.mxu0 0
        %2668 = vmatpush.bf16.msra.mxu0 0
        %2669 = vmatpush.bf16.msra.mxu0 0
        %2670 = vmatpush.bf16.msra.mxu0 %v2661
        %2671 = vmatmul.bf16.gmra.mxu0 %v2565
        %v2672 = vpop.f32.mrf.mxu0
        %v2673 = vadd.f32 0.0, %v2672
        %v2674 = vpop.f32.mrf.mxu0
        %v2675 = vadd.f32 0.0, %v2674
        %2676 = vmatmul.bf16.gmra.mxu0 %v2568
        %v2677 = vpop.f32.mrf.mxu0
        %v2678 = vadd.f32 0.0, %v2677
        %v2679 = vpop.f32.mrf.mxu0
        %v2680 = vadd.f32 0.0, %v2679
        %2681 = vmatmul.bf16.gmra.mxu0 %v2571
        %v2682 = vpop.f32.mrf.mxu0
        %v2683 = vadd.f32 0.0, %v2682
        %v2684 = vpop.f32.mrf.mxu0
        %v2685 = vadd.f32 0.0, %v2684
        %2686 = vmatmul.bf16.gmra.mxu0 %v2574
        %v2687 = vpop.f32.mrf.mxu0
        %v2688 = vadd.f32 0.0, %v2687
        %v2689 = vpop.f32.mrf.mxu0
        %v2690 = vadd.f32 0.0, %v2689
        %2691 = vmatmul.bf16.gmra.mxu0 %v2577
        %v2692 = vpop.f32.mrf.mxu0
        %v2693 = vadd.f32 0.0, %v2692
        %v2694 = vpop.f32.mrf.mxu0
        %v2695 = vadd.f32 0.0, %v2694
        %2696 = vmatmul.bf16.gmra.mxu0 %v2580
        %v2697 = vpop.f32.mrf.mxu0
        %v2698 = vadd.f32 0.0, %v2697
        %v2699 = vpop.f32.mrf.mxu0
        %v2700 = vadd.f32 0.0, %v2699
        %2701 = vmatmul.bf16.gmra.mxu0 %v2583
        %v2702 = vpop.f32.mrf.mxu0
        %v2703 = vadd.f32 0.0, %v2702
        %v2704 = vpop.f32.mrf.mxu0
        %v2705 = vadd.f32 0.0, %v2704
        %2706 = vmatmul.bf16.gmra.mxu0 %v2586
        %v2707 = vpop.f32.mrf.mxu0
        %v2708 = vadd.f32 0.0, %v2707
        %v2709 = vpop.f32.mrf.mxu0
        %v2710 = vadd.f32 0.0, %v2709
        %2711 = vmatmul.bf16.gmra.mxu0 %v2589
        %v2712 = vpop.f32.mrf.mxu0
        %v2713 = vadd.f32 0.0, %v2712
        %v2714 = vpop.f32.mrf.mxu0
        %v2715 = vadd.f32 0.0, %v2714
        %2716 = vmatmul.bf16.gmra.mxu0 %v2592
        %v2717 = vpop.f32.mrf.mxu0
        %v2718 = vadd.f32 0.0, %v2717
        %v2719 = vpop.f32.mrf.mxu0
        %v2720 = vadd.f32 0.0, %v2719
        %2721 = vmatmul.bf16.gmra.mxu0 %v2595
        %v2722 = vpop.f32.mrf.mxu0
        %v2723 = vadd.f32 0.0, %v2722
        %v2724 = vpop.f32.mrf.mxu0
        %v2725 = vadd.f32 0.0, %v2724
        %2726 = vmatmul.bf16.gmra.mxu0 %v2598
        %v2727 = vpop.f32.mrf.mxu0
        %v2728 = vadd.f32 0.0, %v2727
        %v2729 = vpop.f32.mrf.mxu0
        %v2730 = vadd.f32 0.0, %v2729
        %2731 = vmatmul.bf16.gmra.mxu0 %v2601
        %v2732 = vpop.f32.mrf.mxu0
        %v2733 = vadd.f32 0.0, %v2732
        %v2734 = vpop.f32.mrf.mxu0
        %v2735 = vadd.f32 0.0, %v2734
        %2736 = vmatmul.bf16.gmra.mxu0 %v2604
        %v2737 = vpop.f32.mrf.mxu0
        %v2738 = vadd.f32 0.0, %v2737
        %v2739 = vpop.f32.mrf.mxu0
        %v2740 = vadd.f32 0.0, %v2739
        %2741 = vmatmul.bf16.gmra.mxu0 %v2607
        %v2742 = vpop.f32.mrf.mxu0
        %v2743 = vadd.f32 0.0, %v2742
        %v2744 = vpop.f32.mrf.mxu0
        %v2745 = vadd.f32 0.0, %v2744
        %2746 = vmatmul.bf16.gmra.mxu0 %v2610
        %v2747 = vpop.f32.mrf.mxu0
        %v2748 = vadd.f32 0.0, %v2747
        %v2749 = vpop.f32.mrf.mxu0
        %v2750 = vadd.f32 0.0, %v2749
        %2751 = vmatmul.bf16.gmra.mxu0 %v2613
        %v2752 = vpop.f32.mrf.mxu0
        %v2753 = vadd.f32 0.0, %v2752
        %v2754 = vpop.f32.mrf.mxu0
        %v2755 = vadd.f32 0.0, %v2754
        %2756 = vmatmul.bf16.gmra.mxu0 %v2616
        %v2757 = vpop.f32.mrf.mxu0
        %v2758 = vadd.f32 0.0, %v2757
        %v2759 = vpop.f32.mrf.mxu0
        %v2760 = vadd.f32 0.0, %v2759
        %2761 = vmatmul.bf16.gmra.mxu0 %v2619
        %v2762 = vpop.f32.mrf.mxu0
        %v2763 = vadd.f32 0.0, %v2762
        %v2764 = vpop.f32.mrf.mxu0
        %v2765 = vadd.f32 0.0, %v2764
        %2766 = vmatmul.bf16.gmra.mxu0 %v2622
        %v2767 = vpop.f32.mrf.mxu0
        %v2768 = vadd.f32 0.0, %v2767
        %v2769 = vpop.f32.mrf.mxu0
        %v2770 = vadd.f32 0.0, %v2769
        %2771 = vmatmul.bf16.gmra.mxu0 %v2625
        %v2772 = vpop.f32.mrf.mxu0
        %v2773 = vadd.f32 0.0, %v2772
        %v2774 = vpop.f32.mrf.mxu0
        %v2775 = vadd.f32 0.0, %v2774
        %2776 = vmatmul.bf16.gmra.mxu0 %v2628
        %v2777 = vpop.f32.mrf.mxu0
        %v2778 = vadd.f32 0.0, %v2777
        %v2779 = vpop.f32.mrf.mxu0
        %v2780 = vadd.f32 0.0, %v2779
        %2781 = vmatmul.bf16.gmra.mxu0 %v2631
        %v2782 = vpop.f32.mrf.mxu0
        %v2783 = vadd.f32 0.0, %v2782
        %v2784 = vpop.f32.mrf.mxu0
        %v2785 = vadd.f32 0.0, %v2784
        %2786 = vmatmul.bf16.gmra.mxu0 %v2634
        %v2787 = vpop.f32.mrf.mxu0
        %v2788 = vadd.f32 0.0, %v2787
        %v2789 = vpop.f32.mrf.mxu0
        %v2790 = vadd.f32 0.0, %v2789
        %2791 = vmatmul.bf16.gmra.mxu0 %v2637
        %v2792 = vpop.f32.mrf.mxu0
        %v2793 = vadd.f32 0.0, %v2792
        %v2794 = vpop.f32.mrf.mxu0
        %v2795 = vadd.f32 0.0, %v2794
        %2796 = vmatmul.bf16.gmra.mxu0 %v2640
        %v2797 = vpop.f32.mrf.mxu0
        %v2798 = vadd.f32 0.0, %v2797
        %v2799 = vpop.f32.mrf.mxu0
        %v2800 = vadd.f32 0.0, %v2799
        %2801 = vmatmul.bf16.gmra.mxu0 %v2643
        %v2802 = vpop.f32.mrf.mxu0
        %v2803 = vadd.f32 0.0, %v2802
        %v2804 = vpop.f32.mrf.mxu0
        %v2805 = vadd.f32 0.0, %v2804
        %2806 = vmatmul.bf16.gmra.mxu0 %v2646
        %v2807 = vpop.f32.mrf.mxu0
        %v2808 = vadd.f32 0.0, %v2807
        %v2809 = vpop.f32.mrf.mxu0
        %v2810 = vadd.f32 0.0, %v2809
        %2811 = vmatmul.bf16.gmra.mxu0 %v2649
        %v2812 = vpop.f32.mrf.mxu0
        %v2813 = vadd.f32 0.0, %v2812
        %v2814 = vpop.f32.mrf.mxu0
        %v2815 = vadd.f32 0.0, %v2814
        %2816 = vmatmul.bf16.gmra.mxu0 %v2652
        %v2817 = vpop.f32.mrf.mxu0
        %v2818 = vadd.f32 0.0, %v2817
        %v2819 = vpop.f32.mrf.mxu0
        %v2820 = vadd.f32 0.0, %v2819
        %2821 = vmatmul.bf16.gmra.mxu0 %v2655
        %v2822 = vpop.f32.mrf.mxu0
        %v2823 = vadd.f32 0.0, %v2822
        %v2824 = vpop.f32.mrf.mxu0
        %v2825 = vadd.f32 0.0, %v2824
        %2826 = vmatmul.bf16.gmra.mxu0 %v2658
        %v2827 = vpop.f32.mrf.mxu0
        %v2828 = vadd.f32 0.0, %v2827
        %v2829 = vpop.f32.mrf.mxu0
        %v2830 = vadd.f32 0.0, %v2829
        %2831 = vdwg.mxu0
        %v2832 = vadd.f32 %v2432, %v2673
        %v2833 = vadd.f32 %v2433, %v2675
        %v2834 = vadd.f32 %v2434, %v2678
        %v2835 = vadd.f32 %v2435, %v2680
        %v2836 = vadd.f32 %v2436, %v2683
        %v2837 = vadd.f32 %v2437, %v2685
        %v2838 = vadd.f32 %v2438, %v2688
        %v2839 = vadd.f32 %v2439, %v2690
        %v2840 = vadd.f32 %v2440, %v2693
        %v2841 = vadd.f32 %v2441, %v2695
        %v2842 = vadd.f32 %v2442, %v2698
        %v2843 = vadd.f32 %v2443, %v2700
        %v2844 = vadd.f32 %v2444, %v2703
        %v2845 = vadd.f32 %v2445, %v2705
        %v2846 = vadd.f32 %v2446, %v2708
        %v2847 = vadd.f32 %v2447, %v2710
        %v2848 = vadd.f32 %v2448, %v2713
        %v2849 = vadd.f32 %v2449, %v2715
        %v2850 = vadd.f32 %v2450, %v2718
        %v2851 = vadd.f32 %v2451, %v2720
        %v2852 = vadd.f32 %v2452, %v2723
        %v2853 = vadd.f32 %v2453, %v2725
        %v2854 = vadd.f32 %v2454, %v2728
        %v2855 = vadd.f32 %v2455, %v2730
        %v2856 = vadd.f32 %v2456, %v2733
        %v2857 = vadd.f32 %v2457, %v2735
        %v2858 = vadd.f32 %v2458, %v2738
        %v2859 = vadd.f32 %v2459, %v2740
        %v2860 = vadd.f32 %v2460, %v2743
        %v2861 = vadd.f32 %v2461, %v2745
        %v2862 = vadd.f32 %v2462, %v2748
        %v2863 = vadd.f32 %v2463, %v2750
        %v2864 = vadd.f32 %v2464, %v2753
        %v2865 = vadd.f32 %v2465, %v2755
        %v2866 = vadd.f32 %v2466, %v2758
        %v2867 = vadd.f32 %v2467, %v2760
        %v2868 = vadd.f32 %v2468, %v2763
        %v2869 = vadd.f32 %v2469, %v2765
        %v2870 = vadd.f32 %v2470, %v2768
        %v2871 = vadd.f32 %v2471, %v2770
        %v2872 = vadd.f32 %v2472, %v2773
        %v2873 = vadd.f32 %v2473, %v2775
        %v2874 = vadd.f32 %v2474, %v2778
        %v2875 = vadd.f32 %v2475, %v2780
        %v2876 = vadd.f32 %v2476, %v2783
        %v2877 = vadd.f32 %v2477, %v2785
        %v2878 = vadd.f32 %v2478, %v2788
        %v2879 = vadd.f32 %v2479, %v2790
        %v2880 = vadd.f32 %v2480, %v2793
        %v2881 = vadd.f32 %v2481, %v2795
        %v2882 = vadd.f32 %v2482, %v2798
        %v2883 = vadd.f32 %v2483, %v2800
        %v2884 = vadd.f32 %v2484, %v2803
        %v2885 = vadd.f32 %v2485, %v2805
        %v2886 = vadd.f32 %v2486, %v2808
        %v2887 = vadd.f32 %v2487, %v2810
        %v2888 = vadd.f32 %v2488, %v2813
        %v2889 = vadd.f32 %v2489, %v2815
        %v2890 = vadd.f32 %v2490, %v2818
        %v2891 = vadd.f32 %v2491, %v2820
        %v2892 = vadd.f32 %v2492, %v2823
        %v2893 = vadd.f32 %v2493, %v2825
        %v2894 = vadd.f32 %v2494, %v2828
        %v2895 = vadd.f32 %v2495, %v2830
        %s2896 = scalar_lea.vmem %s3, 12
        %v2897 = vld [vmem:[%s2896] sm:$0x3]
        %v2898 = vrot.slane %v609, 2
        %v2899 = vsel %vm2498, %v2562, %v2898
        %v2901 = vsel %vm874, %v2899, 0
        %v2904 = vsel %vm971, %v2897, 0
        %2906 = vmatpush.bf16.msra.mxu0 0
        %2907 = vmatpush.bf16.msra.mxu0 0
        %2908 = vmatpush.bf16.msra.mxu0 0
        %2909 = vmatpush.bf16.msra.mxu0 0
        %2910 = vmatpush.bf16.msra.mxu0 0
        %2911 = vmatpush.bf16.msra.mxu0 0
        %2912 = vmatpush.bf16.msra.mxu0 0
        %2913 = vmatpush.bf16.msra.mxu0 %v2904
        %2914 = vmatmul.bf16.gmra.mxu0 %v2568
        %v2915 = vpop.f32.mrf.mxu0
        %v2916 = vadd.f32 0.0, %v2915
        %v2917 = vpop.f32.mrf.mxu0
        %v2918 = vadd.f32 0.0, %v2917
        %2919 = vmatmul.bf16.gmra.mxu0 %v2571
        %v2920 = vpop.f32.mrf.mxu0
        %v2921 = vadd.f32 0.0, %v2920
        %v2922 = vpop.f32.mrf.mxu0
        %v2923 = vadd.f32 0.0, %v2922
        %2924 = vmatmul.bf16.gmra.mxu0 %v2574
        %v2925 = vpop.f32.mrf.mxu0
        %v2926 = vadd.f32 0.0, %v2925
        %v2927 = vpop.f32.mrf.mxu0
        %v2928 = vadd.f32 0.0, %v2927
        %2929 = vmatmul.bf16.gmra.mxu0 %v2577
        %v2930 = vpop.f32.mrf.mxu0
        %v2931 = vadd.f32 0.0, %v2930
        %v2932 = vpop.f32.mrf.mxu0
        %v2933 = vadd.f32 0.0, %v2932
        %2934 = vmatmul.bf16.gmra.mxu0 %v2580
        %v2935 = vpop.f32.mrf.mxu0
        %v2936 = vadd.f32 0.0, %v2935
        %v2937 = vpop.f32.mrf.mxu0
        %v2938 = vadd.f32 0.0, %v2937
        %2939 = vmatmul.bf16.gmra.mxu0 %v2583
        %v2940 = vpop.f32.mrf.mxu0
        %v2941 = vadd.f32 0.0, %v2940
        %v2942 = vpop.f32.mrf.mxu0
        %v2943 = vadd.f32 0.0, %v2942
        %2944 = vmatmul.bf16.gmra.mxu0 %v2586
        %v2945 = vpop.f32.mrf.mxu0
        %v2946 = vadd.f32 0.0, %v2945
        %v2947 = vpop.f32.mrf.mxu0
        %v2948 = vadd.f32 0.0, %v2947
        %2949 = vmatmul.bf16.gmra.mxu0 %v2589
        %v2950 = vpop.f32.mrf.mxu0
        %v2951 = vadd.f32 0.0, %v2950
        %v2952 = vpop.f32.mrf.mxu0
        %v2953 = vadd.f32 0.0, %v2952
        %2954 = vmatmul.bf16.gmra.mxu0 %v2592
        %v2955 = vpop.f32.mrf.mxu0
        %v2956 = vadd.f32 0.0, %v2955
        %v2957 = vpop.f32.mrf.mxu0
        %v2958 = vadd.f32 0.0, %v2957
        %2959 = vmatmul.bf16.gmra.mxu0 %v2595
        %v2960 = vpop.f32.mrf.mxu0
        %v2961 = vadd.f32 0.0, %v2960
        %v2962 = vpop.f32.mrf.mxu0
        %v2963 = vadd.f32 0.0, %v2962
        %2964 = vmatmul.bf16.gmra.mxu0 %v2598
        %v2965 = vpop.f32.mrf.mxu0
        %v2966 = vadd.f32 0.0, %v2965
        %v2967 = vpop.f32.mrf.mxu0
        %v2968 = vadd.f32 0.0, %v2967
        %2969 = vmatmul.bf16.gmra.mxu0 %v2601
        %v2970 = vpop.f32.mrf.mxu0
        %v2971 = vadd.f32 0.0, %v2970
        %v2972 = vpop.f32.mrf.mxu0
        %v2973 = vadd.f32 0.0, %v2972
        %2974 = vmatmul.bf16.gmra.mxu0 %v2604
        %v2975 = vpop.f32.mrf.mxu0
        %v2976 = vadd.f32 0.0, %v2975
        %v2977 = vpop.f32.mrf.mxu0
        %v2978 = vadd.f32 0.0, %v2977
        %2979 = vmatmul.bf16.gmra.mxu0 %v2607
        %v2980 = vpop.f32.mrf.mxu0
        %v2981 = vadd.f32 0.0, %v2980
        %v2982 = vpop.f32.mrf.mxu0
        %v2983 = vadd.f32 0.0, %v2982
        %2984 = vmatmul.bf16.gmra.mxu0 %v2610
        %v2985 = vpop.f32.mrf.mxu0
        %v2986 = vadd.f32 0.0, %v2985
        %v2987 = vpop.f32.mrf.mxu0
        %v2988 = vadd.f32 0.0, %v2987
        %2989 = vmatmul.bf16.gmra.mxu0 %v2613
        %v2990 = vpop.f32.mrf.mxu0
        %v2991 = vadd.f32 0.0, %v2990
        %v2992 = vpop.f32.mrf.mxu0
        %v2993 = vadd.f32 0.0, %v2992
        %2994 = vmatmul.bf16.gmra.mxu0 %v2616
        %v2995 = vpop.f32.mrf.mxu0
        %v2996 = vadd.f32 0.0, %v2995
        %v2997 = vpop.f32.mrf.mxu0
        %v2998 = vadd.f32 0.0, %v2997
        %2999 = vmatmul.bf16.gmra.mxu0 %v2619
        %v3000 = vpop.f32.mrf.mxu0
        %v3001 = vadd.f32 0.0, %v3000
        %v3002 = vpop.f32.mrf.mxu0
        %v3003 = vadd.f32 0.0, %v3002
        %3004 = vmatmul.bf16.gmra.mxu0 %v2622
        %v3005 = vpop.f32.mrf.mxu0
        %v3006 = vadd.f32 0.0, %v3005
        %v3007 = vpop.f32.mrf.mxu0
        %v3008 = vadd.f32 0.0, %v3007
        %3009 = vmatmul.bf16.gmra.mxu0 %v2625
        %v3010 = vpop.f32.mrf.mxu0
        %v3011 = vadd.f32 0.0, %v3010
        %v3012 = vpop.f32.mrf.mxu0
        %v3013 = vadd.f32 0.0, %v3012
        %3014 = vmatmul.bf16.gmra.mxu0 %v2628
        %v3015 = vpop.f32.mrf.mxu0
        %v3016 = vadd.f32 0.0, %v3015
        %v3017 = vpop.f32.mrf.mxu0
        %v3018 = vadd.f32 0.0, %v3017
        %3019 = vmatmul.bf16.gmra.mxu0 %v2631
        %v3020 = vpop.f32.mrf.mxu0
        %v3021 = vadd.f32 0.0, %v3020
        %v3022 = vpop.f32.mrf.mxu0
        %v3023 = vadd.f32 0.0, %v3022
        %3024 = vmatmul.bf16.gmra.mxu0 %v2634
        %v3025 = vpop.f32.mrf.mxu0
        %v3026 = vadd.f32 0.0, %v3025
        %v3027 = vpop.f32.mrf.mxu0
        %v3028 = vadd.f32 0.0, %v3027
        %3029 = vmatmul.bf16.gmra.mxu0 %v2637
        %v3030 = vpop.f32.mrf.mxu0
        %v3031 = vadd.f32 0.0, %v3030
        %v3032 = vpop.f32.mrf.mxu0
        %v3033 = vadd.f32 0.0, %v3032
        %3034 = vmatmul.bf16.gmra.mxu0 %v2640
        %v3035 = vpop.f32.mrf.mxu0
        %v3036 = vadd.f32 0.0, %v3035
        %v3037 = vpop.f32.mrf.mxu0
        %v3038 = vadd.f32 0.0, %v3037
        %3039 = vmatmul.bf16.gmra.mxu0 %v2643
        %v3040 = vpop.f32.mrf.mxu0
        %v3041 = vadd.f32 0.0, %v3040
        %v3042 = vpop.f32.mrf.mxu0
        %v3043 = vadd.f32 0.0, %v3042
        %3044 = vmatmul.bf16.gmra.mxu0 %v2646
        %v3045 = vpop.f32.mrf.mxu0
        %v3046 = vadd.f32 0.0, %v3045
        %v3047 = vpop.f32.mrf.mxu0
        %v3048 = vadd.f32 0.0, %v3047
        %3049 = vmatmul.bf16.gmra.mxu0 %v2649
        %v3050 = vpop.f32.mrf.mxu0
        %v3051 = vadd.f32 0.0, %v3050
        %v3052 = vpop.f32.mrf.mxu0
        %v3053 = vadd.f32 0.0, %v3052
        %3054 = vmatmul.bf16.gmra.mxu0 %v2652
        %v3055 = vpop.f32.mrf.mxu0
        %v3056 = vadd.f32 0.0, %v3055
        %v3057 = vpop.f32.mrf.mxu0
        %v3058 = vadd.f32 0.0, %v3057
        %3059 = vmatmul.bf16.gmra.mxu0 %v2655
        %v3060 = vpop.f32.mrf.mxu0
        %v3061 = vadd.f32 0.0, %v3060
        %v3062 = vpop.f32.mrf.mxu0
        %v3063 = vadd.f32 0.0, %v3062
        %3064 = vmatmul.bf16.gmra.mxu0 %v2658
        %v3065 = vpop.f32.mrf.mxu0
        %v3066 = vadd.f32 0.0, %v3065
        %v3067 = vpop.f32.mrf.mxu0
        %v3068 = vadd.f32 0.0, %v3067
        %3069 = vmatmul.bf16.gmra.mxu0 %v2901
        %v3070 = vpop.f32.mrf.mxu0
        %v3071 = vadd.f32 0.0, %v3070
        %v3072 = vpop.f32.mrf.mxu0
        %v3073 = vadd.f32 0.0, %v3072
        %3074 = vdwg.mxu0
        %v3075 = vadd.f32 %v2832, %v2916
        %v3076 = vadd.f32 %v2833, %v2918
        %v3077 = vadd.f32 %v2834, %v2921
        %v3078 = vadd.f32 %v2835, %v2923
        %v3079 = vadd.f32 %v2836, %v2926
        %v3080 = vadd.f32 %v2837, %v2928
        %v3081 = vadd.f32 %v2838, %v2931
        %v3082 = vadd.f32 %v2839, %v2933
        %v3083 = vadd.f32 %v2840, %v2936
        %v3084 = vadd.f32 %v2841, %v2938
        %v3085 = vadd.f32 %v2842, %v2941
        %v3086 = vadd.f32 %v2843, %v2943
        %v3087 = vadd.f32 %v2844, %v2946
        %v3088 = vadd.f32 %v2845, %v2948
        %v3089 = vadd.f32 %v2846, %v2951
        %v3090 = vadd.f32 %v2847, %v2953
        %v3091 = vadd.f32 %v2848, %v2956
        %v3092 = vadd.f32 %v2849, %v2958
        %v3093 = vadd.f32 %v2850, %v2961
        %v3094 = vadd.f32 %v2851, %v2963
        %v3095 = vadd.f32 %v2852, %v2966
        %v3096 = vadd.f32 %v2853, %v2968
        %v3097 = vadd.f32 %v2854, %v2971
        %v3098 = vadd.f32 %v2855, %v2973
        %v3099 = vadd.f32 %v2856, %v2976
        %v3100 = vadd.f32 %v2857, %v2978
        %v3101 = vadd.f32 %v2858, %v2981
        %v3102 = vadd.f32 %v2859, %v2983
        %v3103 = vadd.f32 %v2860, %v2986
        %v3104 = vadd.f32 %v2861, %v2988
        %v3105 = vadd.f32 %v2862, %v2991
        %v3106 = vadd.f32 %v2863, %v2993
        %v3107 = vadd.f32 %v2864, %v2996
        %v3108 = vadd.f32 %v2865, %v2998
        %v3109 = vadd.f32 %v2866, %v3001
        %v3110 = vadd.f32 %v2867, %v3003
        %v3111 = vadd.f32 %v2868, %v3006
        %v3112 = vadd.f32 %v2869, %v3008
        %v3113 = vadd.f32 %v2870, %v3011
        %v3114 = vadd.f32 %v2871, %v3013
        %v3115 = vadd.f32 %v2872, %v3016
        %v3116 = vadd.f32 %v2873, %v3018
        %v3117 = vadd.f32 %v2874, %v3021
        %v3118 = vadd.f32 %v2875, %v3023
        %v3119 = vadd.f32 %v2876, %v3026
        %v3120 = vadd.f32 %v2877, %v3028
        %v3121 = vadd.f32 %v2878, %v3031
        %v3122 = vadd.f32 %v2879, %v3033
        %v3123 = vadd.f32 %v2880, %v3036
        %v3124 = vadd.f32 %v2881, %v3038
        %v3125 = vadd.f32 %v2882, %v3041
        %v3126 = vadd.f32 %v2883, %v3043
        %v3127 = vadd.f32 %v2884, %v3046
        %v3128 = vadd.f32 %v2885, %v3048
        %v3129 = vadd.f32 %v2886, %v3051
        %v3130 = vadd.f32 %v2887, %v3053
        %v3131 = vadd.f32 %v2888, %v3056
        %v3132 = vadd.f32 %v2889, %v3058
        %v3133 = vadd.f32 %v2890, %v3061
        %v3134 = vadd.f32 %v2891, %v3063
        %v3135 = vadd.f32 %v2892, %v3066
        %v3136 = vadd.f32 %v2893, %v3068
        %v3137 = vadd.f32 %v2894, %v3071
        %v3138 = vadd.f32 %v2895, %v3073
        %s3139 = scalar_lea.vmem %s3, 14
        %v3140 = vld [vmem:[%s3139] sm:$0x3]
        %vm3141 = vsmask.f32 5376
        %v3142 = vrot.slane %v634, 2
        %v3143 = vrot.slane %v630, 3
        %v3144 = vor.u32 %v3142, %v3143
        %v3145 = vrot.slane %v642, 2
        %v3146 = vrot.slane %v638, 3
        %v3147 = vor.u32 %v3145, %v3146
        %v3148 = vsel %vm3141, %v3144, %v3147
        %v3149 = vrot.slane %v650, 2
        %v3150 = vrot.slane %v646, 3
        %v3151 = vor.u32 %v3149, %v3150
        %v3152 = vsel %vm3141, %v3147, %v3151
        %v3153 = vrot.slane %v658, 2
        %v3154 = vrot.slane %v654, 3
        %v3155 = vor.u32 %v3153, %v3154
        %v3156 = vsel %vm3141, %v3151, %v3155
        %v3157 = vrot.slane %v666, 2
        %v3158 = vrot.slane %v662, 3
        %v3159 = vor.u32 %v3157, %v3158
        %v3160 = vsel %vm3141, %v3155, %v3159
        %v3161 = vrot.slane %v674, 2
        %v3162 = vrot.slane %v670, 3
        %v3163 = vor.u32 %v3161, %v3162
        %v3164 = vsel %vm3141, %v3159, %v3163
        %v3165 = vrot.slane %v682, 2
        %v3166 = vrot.slane %v678, 3
        %v3167 = vor.u32 %v3165, %v3166
        %v3168 = vsel %vm3141, %v3163, %v3167
        %v3169 = vrot.slane %v690, 2
        %v3170 = vrot.slane %v686, 3
        %v3171 = vor.u32 %v3169, %v3170
        %v3172 = vsel %vm3141, %v3167, %v3171
        %v3173 = vrot.slane %v698, 2
        %v3174 = vrot.slane %v694, 3
        %v3175 = vor.u32 %v3173, %v3174
        %v3176 = vsel %vm3141, %v3171, %v3175
        %v3177 = vrot.slane %v706, 2
        %v3178 = vrot.slane %v702, 3
        %v3179 = vor.u32 %v3177, %v3178
        %v3180 = vsel %vm3141, %v3175, %v3179
        %v3181 = vrot.slane %v714, 2
        %v3182 = vrot.slane %v710, 3
        %v3183 = vor.u32 %v3181, %v3182
        %v3184 = vsel %vm3141, %v3179, %v3183
        %v3185 = vrot.slane %v722, 2
        %v3186 = vrot.slane %v718, 3
        %v3187 = vor.u32 %v3185, %v3186
        %v3188 = vsel %vm3141, %v3183, %v3187
        %v3189 = vrot.slane %v730, 2
        %v3190 = vrot.slane %v726, 3
        %v3191 = vor.u32 %v3189, %v3190
        %v3192 = vsel %vm3141, %v3187, %v3191
        %v3193 = vrot.slane %v738, 2
        %v3194 = vrot.slane %v734, 3
        %v3195 = vor.u32 %v3193, %v3194
        %v3196 = vsel %vm3141, %v3191, %v3195
        %v3197 = vrot.slane %v746, 2
        %v3198 = vrot.slane %v742, 3
        %v3199 = vor.u32 %v3197, %v3198
        %v3200 = vsel %vm3141, %v3195, %v3199
        %v3201 = vrot.slane %v754, 2
        %v3202 = vrot.slane %v750, 3
        %v3203 = vor.u32 %v3201, %v3202
        %v3204 = vsel %vm3141, %v3199, %v3203
        %v3205 = vrot.slane %v762, 2
        %v3206 = vrot.slane %v758, 3
        %v3207 = vor.u32 %v3205, %v3206
        %v3208 = vsel %vm3141, %v3203, %v3207
        %v3209 = vrot.slane %v770, 2
        %v3210 = vrot.slane %v766, 3
        %v3211 = vor.u32 %v3209, %v3210
        %v3212 = vsel %vm3141, %v3207, %v3211
        %v3213 = vrot.slane %v778, 2
        %v3214 = vrot.slane %v774, 3
        %v3215 = vor.u32 %v3213, %v3214
        %v3216 = vsel %vm3141, %v3211, %v3215
        %v3217 = vrot.slane %v786, 2
        %v3218 = vrot.slane %v782, 3
        %v3219 = vor.u32 %v3217, %v3218
        %v3220 = vsel %vm3141, %v3215, %v3219
        %v3221 = vrot.slane %v794, 2
        %v3222 = vrot.slane %v790, 3
        %v3223 = vor.u32 %v3221, %v3222
        %v3224 = vsel %vm3141, %v3219, %v3223
        %v3225 = vrot.slane %v802, 2
        %v3226 = vrot.slane %v798, 3
        %v3227 = vor.u32 %v3225, %v3226
        %v3228 = vsel %vm3141, %v3223, %v3227
        %v3229 = vrot.slane %v810, 2
        %v3230 = vrot.slane %v806, 3
        %v3231 = vor.u32 %v3229, %v3230
        %v3232 = vsel %vm3141, %v3227, %v3231
        %v3233 = vrot.slane %v818, 2
        %v3234 = vrot.slane %v814, 3
        %v3235 = vor.u32 %v3233, %v3234
        %v3236 = vsel %vm3141, %v3231, %v3235
        %v3237 = vrot.slane %v826, 2
        %v3238 = vrot.slane %v822, 3
        %v3239 = vor.u32 %v3237, %v3238
        %v3240 = vsel %vm3141, %v3235, %v3239
        %v3241 = vrot.slane %v834, 2
        %v3242 = vrot.slane %v830, 3
        %v3243 = vor.u32 %v3241, %v3242
        %v3244 = vsel %vm3141, %v3239, %v3243
        %v3245 = vrot.slane %v842, 2
        %v3246 = vrot.slane %v838, 3
        %v3247 = vor.u32 %v3245, %v3246
        %v3248 = vsel %vm3141, %v3243, %v3247
        %v3249 = vrot.slane %v850, 2
        %v3250 = vrot.slane %v846, 3
        %v3251 = vor.u32 %v3249, %v3250
        %v3252 = vsel %vm3141, %v3247, %v3251
        %v3253 = vrot.slane %v858, 2
        %v3254 = vrot.slane %v854, 3
        %v3255 = vor.u32 %v3253, %v3254
        %v3256 = vsel %vm3141, %v3251, %v3255
        %v3257 = vrot.slane %v866, 2
        %v3258 = vrot.slane %v862, 3
        %v3259 = vor.u32 %v3257, %v3258
        %v3260 = vsel %vm3141, %v3255, %v3259
        %v3261 = vrot.slane %v2149, 2
        %v3262 = vrot.slane %v870, 3
        %v3263 = vor.u32 %v3261, %v3262
        %v3264 = vsel %vm3141, %v3259, %v3263
        %v3265 = vrot.slane %v2156, 2
        %v3266 = vrot.slane %v2159, 3
        %v3267 = vor.u32 %v3265, %v3266
        %v3268 = vsel %vm3141, %v3263, %v3267
        %v3270 = vshrl.u32 %v609, 16
        %v3272 = vrot.slane %v3270, 2
        %v3273 = vshll.u32 %v609, 16
        %v3275 = vrot.slane %v3273, 3
        %v3276 = vor.u32 %v3272, %v3275
        %v3277 = vsel %vm3141, %v3267, %v3276
        %v3279 = vsel %vm874, %v3148, 0
        %v3282 = vsel %vm874, %v3152, 0
        %v3285 = vsel %vm874, %v3156, 0
        %v3288 = vsel %vm874, %v3160, 0
        %v3291 = vsel %vm874, %v3164, 0
        %v3294 = vsel %vm874, %v3168, 0
        %v3297 = vsel %vm874, %v3172, 0
        %v3300 = vsel %vm874, %v3176, 0
        %v3303 = vsel %vm874, %v3180, 0
        %v3306 = vsel %vm874, %v3184, 0
        %v3309 = vsel %vm874, %v3188, 0
        %v3312 = vsel %vm874, %v3192, 0
        %v3315 = vsel %vm874, %v3196, 0
        %v3318 = vsel %vm874, %v3200, 0
        %v3321 = vsel %vm874, %v3204, 0
        %v3324 = vsel %vm874, %v3208, 0
        %v3327 = vsel %vm874, %v3212, 0
        %v3330 = vsel %vm874, %v3216, 0
        %v3333 = vsel %vm874, %v3220, 0
        %v3336 = vsel %vm874, %v3224, 0
        %v3339 = vsel %vm874, %v3228, 0
        %v3342 = vsel %vm874, %v3232, 0
        %v3345 = vsel %vm874, %v3236, 0
        %v3348 = vsel %vm874, %v3240, 0
        %v3351 = vsel %vm874, %v3244, 0
        %v3354 = vsel %vm874, %v3248, 0
        %v3357 = vsel %vm874, %v3252, 0
        %v3360 = vsel %vm874, %v3256, 0
        %v3363 = vsel %vm874, %v3260, 0
        %v3366 = vsel %vm874, %v3264, 0
        %v3369 = vsel %vm874, %v3268, 0
        %v3372 = vsel %vm874, %v3277, 0
        %v3375 = vsel %vm971, %v3140, 0
        %3377 = vmatpush.bf16.msra.mxu0 0
        %3378 = vmatpush.bf16.msra.mxu0 0
        %3379 = vmatpush.bf16.msra.mxu0 0
        %3380 = vmatpush.bf16.msra.mxu0 0
        %3381 = vmatpush.bf16.msra.mxu0 0
        %3382 = vmatpush.bf16.msra.mxu0 0
        %3383 = vmatpush.bf16.msra.mxu0 0
        %3384 = vmatpush.bf16.msra.mxu0 %v3375
        %3385 = vmatmul.bf16.gmra.mxu0 %v3279
        %v3386 = vpop.f32.mrf.mxu0
        %v3387 = vadd.f32 0.0, %v3386
        %v3388 = vpop.f32.mrf.mxu0
        %v3389 = vadd.f32 0.0, %v3388
        %3390 = vmatmul.bf16.gmra.mxu0 %v3282
        %v3391 = vpop.f32.mrf.mxu0
        %v3392 = vadd.f32 0.0, %v3391
        %v3393 = vpop.f32.mrf.mxu0
        %v3394 = vadd.f32 0.0, %v3393
        %3395 = vmatmul.bf16.gmra.mxu0 %v3285
        %v3396 = vpop.f32.mrf.mxu0
        %v3397 = vadd.f32 0.0, %v3396
        %v3398 = vpop.f32.mrf.mxu0
        %v3399 = vadd.f32 0.0, %v3398
        %3400 = vmatmul.bf16.gmra.mxu0 %v3288
        %v3401 = vpop.f32.mrf.mxu0
        %v3402 = vadd.f32 0.0, %v3401
        %v3403 = vpop.f32.mrf.mxu0
        %v3404 = vadd.f32 0.0, %v3403
        %3405 = vmatmul.bf16.gmra.mxu0 %v3291
        %v3406 = vpop.f32.mrf.mxu0
        %v3407 = vadd.f32 0.0, %v3406
        %v3408 = vpop.f32.mrf.mxu0
        %v3409 = vadd.f32 0.0, %v3408
        %3410 = vmatmul.bf16.gmra.mxu0 %v3294
        %v3411 = vpop.f32.mrf.mxu0
        %v3412 = vadd.f32 0.0, %v3411
        %v3413 = vpop.f32.mrf.mxu0
        %v3414 = vadd.f32 0.0, %v3413
        %3415 = vmatmul.bf16.gmra.mxu0 %v3297
        %v3416 = vpop.f32.mrf.mxu0
        %v3417 = vadd.f32 0.0, %v3416
        %v3418 = vpop.f32.mrf.mxu0
        %v3419 = vadd.f32 0.0, %v3418
        %3420 = vmatmul.bf16.gmra.mxu0 %v3300
        %v3421 = vpop.f32.mrf.mxu0
        %v3422 = vadd.f32 0.0, %v3421
        %v3423 = vpop.f32.mrf.mxu0
        %v3424 = vadd.f32 0.0, %v3423
        %3425 = vmatmul.bf16.gmra.mxu0 %v3303
        %v3426 = vpop.f32.mrf.mxu0
        %v3427 = vadd.f32 0.0, %v3426
        %v3428 = vpop.f32.mrf.mxu0
        %v3429 = vadd.f32 0.0, %v3428
        %3430 = vmatmul.bf16.gmra.mxu0 %v3306
        %v3431 = vpop.f32.mrf.mxu0
        %v3432 = vadd.f32 0.0, %v3431
        %v3433 = vpop.f32.mrf.mxu0
        %v3434 = vadd.f32 0.0, %v3433
        %3435 = vmatmul.bf16.gmra.mxu0 %v3309
        %v3436 = vpop.f32.mrf.mxu0
        %v3437 = vadd.f32 0.0, %v3436
        %v3438 = vpop.f32.mrf.mxu0
        %v3439 = vadd.f32 0.0, %v3438
        %3440 = vmatmul.bf16.gmra.mxu0 %v3312
        %v3441 = vpop.f32.mrf.mxu0
        %v3442 = vadd.f32 0.0, %v3441
        %v3443 = vpop.f32.mrf.mxu0
        %v3444 = vadd.f32 0.0, %v3443
        %3445 = vmatmul.bf16.gmra.mxu0 %v3315
        %v3446 = vpop.f32.mrf.mxu0
        %v3447 = vadd.f32 0.0, %v3446
        %v3448 = vpop.f32.mrf.mxu0
        %v3449 = vadd.f32 0.0, %v3448
        %3450 = vmatmul.bf16.gmra.mxu0 %v3318
        %v3451 = vpop.f32.mrf.mxu0
        %v3452 = vadd.f32 0.0, %v3451
        %v3453 = vpop.f32.mrf.mxu0
        %v3454 = vadd.f32 0.0, %v3453
        %3455 = vmatmul.bf16.gmra.mxu0 %v3321
        %v3456 = vpop.f32.mrf.mxu0
        %v3457 = vadd.f32 0.0, %v3456
        %v3458 = vpop.f32.mrf.mxu0
        %v3459 = vadd.f32 0.0, %v3458
        %3460 = vmatmul.bf16.gmra.mxu0 %v3324
        %v3461 = vpop.f32.mrf.mxu0
        %v3462 = vadd.f32 0.0, %v3461
        %v3463 = vpop.f32.mrf.mxu0
        %v3464 = vadd.f32 0.0, %v3463
        %3465 = vmatmul.bf16.gmra.mxu0 %v3327
        %v3466 = vpop.f32.mrf.mxu0
        %v3467 = vadd.f32 0.0, %v3466
        %v3468 = vpop.f32.mrf.mxu0
        %v3469 = vadd.f32 0.0, %v3468
        %3470 = vmatmul.bf16.gmra.mxu0 %v3330
        %v3471 = vpop.f32.mrf.mxu0
        %v3472 = vadd.f32 0.0, %v3471
        %v3473 = vpop.f32.mrf.mxu0
        %v3474 = vadd.f32 0.0, %v3473
        %3475 = vmatmul.bf16.gmra.mxu0 %v3333
        %v3476 = vpop.f32.mrf.mxu0
        %v3477 = vadd.f32 0.0, %v3476
        %v3478 = vpop.f32.mrf.mxu0
        %v3479 = vadd.f32 0.0, %v3478
        %3480 = vmatmul.bf16.gmra.mxu0 %v3336
        %v3481 = vpop.f32.mrf.mxu0
        %v3482 = vadd.f32 0.0, %v3481
        %v3483 = vpop.f32.mrf.mxu0
        %v3484 = vadd.f32 0.0, %v3483
        %3485 = vmatmul.bf16.gmra.mxu0 %v3339
        %v3486 = vpop.f32.mrf.mxu0
        %v3487 = vadd.f32 0.0, %v3486
        %v3488 = vpop.f32.mrf.mxu0
        %v3489 = vadd.f32 0.0, %v3488
        %3490 = vmatmul.bf16.gmra.mxu0 %v3342
        %v3491 = vpop.f32.mrf.mxu0
        %v3492 = vadd.f32 0.0, %v3491
        %v3493 = vpop.f32.mrf.mxu0
        %v3494 = vadd.f32 0.0, %v3493
        %3495 = vmatmul.bf16.gmra.mxu0 %v3345
        %v3496 = vpop.f32.mrf.mxu0
        %v3497 = vadd.f32 0.0, %v3496
        %v3498 = vpop.f32.mrf.mxu0
        %v3499 = vadd.f32 0.0, %v3498
        %3500 = vmatmul.bf16.gmra.mxu0 %v3348
        %v3501 = vpop.f32.mrf.mxu0
        %v3502 = vadd.f32 0.0, %v3501
        %v3503 = vpop.f32.mrf.mxu0
        %v3504 = vadd.f32 0.0, %v3503
        %3505 = vmatmul.bf16.gmra.mxu0 %v3351
        %v3506 = vpop.f32.mrf.mxu0
        %v3507 = vadd.f32 0.0, %v3506
        %v3508 = vpop.f32.mrf.mxu0
        %v3509 = vadd.f32 0.0, %v3508
        %3510 = vmatmul.bf16.gmra.mxu0 %v3354
        %v3511 = vpop.f32.mrf.mxu0
        %v3512 = vadd.f32 0.0, %v3511
        %v3513 = vpop.f32.mrf.mxu0
        %v3514 = vadd.f32 0.0, %v3513
        %3515 = vmatmul.bf16.gmra.mxu0 %v3357
        %v3516 = vpop.f32.mrf.mxu0
        %v3517 = vadd.f32 0.0, %v3516
        %v3518 = vpop.f32.mrf.mxu0
        %v3519 = vadd.f32 0.0, %v3518
        %3520 = vmatmul.bf16.gmra.mxu0 %v3360
        %v3521 = vpop.f32.mrf.mxu0
        %v3522 = vadd.f32 0.0, %v3521
        %v3523 = vpop.f32.mrf.mxu0
        %v3524 = vadd.f32 0.0, %v3523
        %3525 = vmatmul.bf16.gmra.mxu0 %v3363
        %v3526 = vpop.f32.mrf.mxu0
        %v3527 = vadd.f32 0.0, %v3526
        %v3528 = vpop.f32.mrf.mxu0
        %v3529 = vadd.f32 0.0, %v3528
        %3530 = vmatmul.bf16.gmra.mxu0 %v3366
        %v3531 = vpop.f32.mrf.mxu0
        %v3532 = vadd.f32 0.0, %v3531
        %v3533 = vpop.f32.mrf.mxu0
        %v3534 = vadd.f32 0.0, %v3533
        %3535 = vmatmul.bf16.gmra.mxu0 %v3369
        %v3536 = vpop.f32.mrf.mxu0
        %v3537 = vadd.f32 0.0, %v3536
        %v3538 = vpop.f32.mrf.mxu0
        %v3539 = vadd.f32 0.0, %v3538
        %3540 = vmatmul.bf16.gmra.mxu0 %v3372
        %v3541 = vpop.f32.mrf.mxu0
        %v3542 = vadd.f32 0.0, %v3541
        %v3543 = vpop.f32.mrf.mxu0
        %v3544 = vadd.f32 0.0, %v3543
        %3545 = vdwg.mxu0
        %v3546 = vadd.f32 %v3075, %v3387
        %v3547 = vadd.f32 %v3076, %v3389
        %v3548 = vadd.f32 %v3077, %v3392
        %v3549 = vadd.f32 %v3078, %v3394
        %v3550 = vadd.f32 %v3079, %v3397
        %v3551 = vadd.f32 %v3080, %v3399
        %v3552 = vadd.f32 %v3081, %v3402
        %v3553 = vadd.f32 %v3082, %v3404
        %v3554 = vadd.f32 %v3083, %v3407
        %v3555 = vadd.f32 %v3084, %v3409
        %v3556 = vadd.f32 %v3085, %v3412
        %v3557 = vadd.f32 %v3086, %v3414
        %v3558 = vadd.f32 %v3087, %v3417
        %v3559 = vadd.f32 %v3088, %v3419
        %v3560 = vadd.f32 %v3089, %v3422
        %v3561 = vadd.f32 %v3090, %v3424
        %v3562 = vadd.f32 %v3091, %v3427
        %v3563 = vadd.f32 %v3092, %v3429
        %v3564 = vadd.f32 %v3093, %v3432
        %v3565 = vadd.f32 %v3094, %v3434
        %v3566 = vadd.f32 %v3095, %v3437
        %v3567 = vadd.f32 %v3096, %v3439
        %v3568 = vadd.f32 %v3097, %v3442
        %v3569 = vadd.f32 %v3098, %v3444
        %v3570 = vadd.f32 %v3099, %v3447
        %v3571 = vadd.f32 %v3100, %v3449
        %v3572 = vadd.f32 %v3101, %v3452
        %v3573 = vadd.f32 %v3102, %v3454
        %v3574 = vadd.f32 %v3103, %v3457
        %v3575 = vadd.f32 %v3104, %v3459
        %v3576 = vadd.f32 %v3105, %v3462
        %v3577 = vadd.f32 %v3106, %v3464
        %v3578 = vadd.f32 %v3107, %v3467
        %v3579 = vadd.f32 %v3108, %v3469
        %v3580 = vadd.f32 %v3109, %v3472
        %v3581 = vadd.f32 %v3110, %v3474
        %v3582 = vadd.f32 %v3111, %v3477
        %v3583 = vadd.f32 %v3112, %v3479
        %v3584 = vadd.f32 %v3113, %v3482
        %v3585 = vadd.f32 %v3114, %v3484
        %v3586 = vadd.f32 %v3115, %v3487
        %v3587 = vadd.f32 %v3116, %v3489
        %v3588 = vadd.f32 %v3117, %v3492
        %v3589 = vadd.f32 %v3118, %v3494
        %v3590 = vadd.f32 %v3119, %v3497
        %v3591 = vadd.f32 %v3120, %v3499
        %v3592 = vadd.f32 %v3121, %v3502
        %v3593 = vadd.f32 %v3122, %v3504
        %v3594 = vadd.f32 %v3123, %v3507
        %v3595 = vadd.f32 %v3124, %v3509
        %v3596 = vadd.f32 %v3125, %v3512
        %v3597 = vadd.f32 %v3126, %v3514
        %v3598 = vadd.f32 %v3127, %v3517
        %v3599 = vadd.f32 %v3128, %v3519
        %v3600 = vadd.f32 %v3129, %v3522
        %v3601 = vadd.f32 %v3130, %v3524
        %v3602 = vadd.f32 %v3131, %v3527
        %v3603 = vadd.f32 %v3132, %v3529
        %v3604 = vadd.f32 %v3133, %v3532
        %v3605 = vadd.f32 %v3134, %v3534
        %v3606 = vadd.f32 %v3135, %v3537
        %v3607 = vadd.f32 %v3136, %v3539
        %v3608 = vadd.f32 %v3137, %v3542
        %v3609 = vadd.f32 %v3138, %v3544
        %s3610 = scalar_lea.vmem %s3, 16
        %v3611 = vld [vmem:[%s3610] sm:$0x3]
        %vm3612 = vcmask 1044480
        %v3613 = vrot.slane %v565, 3
        %v3614 = vrot.slane %v566, 3
        %v3615 = vsel %vm3612, %v3613, %v3614
        %v3616 = vrot.slane %v567, 3
        %v3617 = vsel %vm3612, %v3614, %v3616
        %v3618 = vrot.slane %v568, 3
        %v3619 = vsel %vm3612, %v3616, %v3618
        %v3620 = vrot.slane %v569, 3
        %v3621 = vsel %vm3612, %v3618, %v3620
        %v3622 = vrot.slane %v570, 3
        %v3623 = vsel %vm3612, %v3620, %v3622
        %v3624 = vrot.slane %v571, 3
        %v3625 = vsel %vm3612, %v3622, %v3624
        %v3626 = vrot.slane %v572, 3
        %v3627 = vsel %vm3612, %v3624, %v3626
        %v3628 = vrot.slane %v573, 3
        %v3629 = vsel %vm3612, %v3626, %v3628
        %v3630 = vrot.slane %v574, 3
        %v3631 = vsel %vm3612, %v3628, %v3630
        %v3632 = vrot.slane %v575, 3
        %v3633 = vsel %vm3612, %v3630, %v3632
        %v3634 = vrot.slane %v576, 3
        %v3635 = vsel %vm3612, %v3632, %v3634
        %v3636 = vrot.slane %v577, 3
        %v3637 = vsel %vm3612, %v3634, %v3636
        %v3638 = vrot.slane %v578, 3
        %v3639 = vsel %vm3612, %v3636, %v3638
        %v3640 = vrot.slane %v579, 3
        %v3641 = vsel %vm3612, %v3638, %v3640
        %v3642 = vrot.slane %v580, 3
        %v3643 = vsel %vm3612, %v3640, %v3642
        %v3644 = vrot.slane %v581, 3
        %v3645 = vsel %vm3612, %v3642, %v3644
        %v3646 = vrot.slane %v582, 3
        %v3647 = vsel %vm3612, %v3644, %v3646
        %v3648 = vrot.slane %v583, 3
        %v3649 = vsel %vm3612, %v3646, %v3648
        %v3650 = vrot.slane %v584, 3
        %v3651 = vsel %vm3612, %v3648, %v3650
        %v3652 = vrot.slane %v585, 3
        %v3653 = vsel %vm3612, %v3650, %v3652
        %v3654 = vrot.slane %v586, 3
        %v3655 = vsel %vm3612, %v3652, %v3654
        %v3656 = vrot.slane %v587, 3
        %v3657 = vsel %vm3612, %v3654, %v3656
        %v3658 = vrot.slane %v588, 3
        %v3659 = vsel %vm3612, %v3656, %v3658
        %v3660 = vrot.slane %v589, 3
        %v3661 = vsel %vm3612, %v3658, %v3660
        %v3662 = vrot.slane %v590, 3
        %v3663 = vsel %vm3612, %v3660, %v3662
        %v3664 = vrot.slane %v591, 3
        %v3665 = vsel %vm3612, %v3662, %v3664
        %v3666 = vrot.slane %v592, 3
        %v3667 = vsel %vm3612, %v3664, %v3666
        %v3668 = vrot.slane %v593, 3
        %v3669 = vsel %vm3612, %v3666, %v3668
        %v3670 = vrot.slane %v594, 3
        %v3671 = vsel %vm3612, %v3668, %v3670
        %v3672 = vrot.slane %v607, 3
        %v3673 = vsel %vm3612, %v3670, %v3672
        %v3674 = vrot.slane %v608, 3
        %v3675 = vsel %vm3612, %v3672, %v3674
        %v3676 = vrot.slane %v609, 3
        %v3677 = vsel %vm3612, %v3674, %v3676
        %v3679 = vsel %vm874, %v3615, 0
        %v3682 = vsel %vm874, %v3617, 0
        %v3685 = vsel %vm874, %v3619, 0
        %v3688 = vsel %vm874, %v3621, 0
        %v3691 = vsel %vm874, %v3623, 0
        %v3694 = vsel %vm874, %v3625, 0
        %v3697 = vsel %vm874, %v3627, 0
        %v3700 = vsel %vm874, %v3629, 0
        %v3703 = vsel %vm874, %v3631, 0
        %v3706 = vsel %vm874, %v3633, 0
        %v3709 = vsel %vm874, %v3635, 0
        %v3712 = vsel %vm874, %v3637, 0
        %v3715 = vsel %vm874, %v3639, 0
        %v3718 = vsel %vm874, %v3641, 0
        %v3721 = vsel %vm874, %v3643, 0
        %v3724 = vsel %vm874, %v3645, 0
        %v3727 = vsel %vm874, %v3647, 0
        %v3730 = vsel %vm874, %v3649, 0
        %v3733 = vsel %vm874, %v3651, 0
        %v3736 = vsel %vm874, %v3653, 0
        %v3739 = vsel %vm874, %v3655, 0
        %v3742 = vsel %vm874, %v3657, 0
        %v3745 = vsel %vm874, %v3659, 0
        %v3748 = vsel %vm874, %v3661, 0
        %v3751 = vsel %vm874, %v3663, 0
        %v3754 = vsel %vm874, %v3665, 0
        %v3757 = vsel %vm874, %v3667, 0
        %v3760 = vsel %vm874, %v3669, 0
        %v3763 = vsel %vm874, %v3671, 0
        %v3766 = vsel %vm874, %v3673, 0
        %v3769 = vsel %vm874, %v3675, 0
        %v3772 = vsel %vm874, %v3677, 0
        %v3775 = vsel %vm971, %v3611, 0
        %3777 = vmatpush.bf16.msra.mxu0 0
        %3778 = vmatpush.bf16.msra.mxu0 0
        %3779 = vmatpush.bf16.msra.mxu0 0
        %3780 = vmatpush.bf16.msra.mxu0 0
        %3781 = vmatpush.bf16.msra.mxu0 0
        %3782 = vmatpush.bf16.msra.mxu0 0
        %3783 = vmatpush.bf16.msra.mxu0 0
        %3784 = vmatpush.bf16.msra.mxu0 %v3775
        %3785 = vmatmul.bf16.gmra.mxu0 %v3679
        %v3786 = vpop.f32.mrf.mxu0
        %v3787 = vadd.f32 0.0, %v3786
        %v3788 = vpop.f32.mrf.mxu0
        %v3789 = vadd.f32 0.0, %v3788
        %3790 = vmatmul.bf16.gmra.mxu0 %v3682
        %v3791 = vpop.f32.mrf.mxu0
        %v3792 = vadd.f32 0.0, %v3791
        %v3793 = vpop.f32.mrf.mxu0
        %v3794 = vadd.f32 0.0, %v3793
        %3795 = vmatmul.bf16.gmra.mxu0 %v3685
        %v3796 = vpop.f32.mrf.mxu0
        %v3797 = vadd.f32 0.0, %v3796
        %v3798 = vpop.f32.mrf.mxu0
        %v3799 = vadd.f32 0.0, %v3798
        %3800 = vmatmul.bf16.gmra.mxu0 %v3688
        %v3801 = vpop.f32.mrf.mxu0
        %v3802 = vadd.f32 0.0, %v3801
        %v3803 = vpop.f32.mrf.mxu0
        %v3804 = vadd.f32 0.0, %v3803
        %3805 = vmatmul.bf16.gmra.mxu0 %v3691
        %v3806 = vpop.f32.mrf.mxu0
        %v3807 = vadd.f32 0.0, %v3806
        %v3808 = vpop.f32.mrf.mxu0
        %v3809 = vadd.f32 0.0, %v3808
        %3810 = vmatmul.bf16.gmra.mxu0 %v3694
        %v3811 = vpop.f32.mrf.mxu0
        %v3812 = vadd.f32 0.0, %v3811
        %v3813 = vpop.f32.mrf.mxu0
        %v3814 = vadd.f32 0.0, %v3813
        %3815 = vmatmul.bf16.gmra.mxu0 %v3697
        %v3816 = vpop.f32.mrf.mxu0
        %v3817 = vadd.f32 0.0, %v3816
        %v3818 = vpop.f32.mrf.mxu0
        %v3819 = vadd.f32 0.0, %v3818
        %3820 = vmatmul.bf16.gmra.mxu0 %v3700
        %v3821 = vpop.f32.mrf.mxu0
        %v3822 = vadd.f32 0.0, %v3821
        %v3823 = vpop.f32.mrf.mxu0
        %v3824 = vadd.f32 0.0, %v3823
        %3825 = vmatmul.bf16.gmra.mxu0 %v3703
        %v3826 = vpop.f32.mrf.mxu0
        %v3827 = vadd.f32 0.0, %v3826
        %v3828 = vpop.f32.mrf.mxu0
        %v3829 = vadd.f32 0.0, %v3828
        %3830 = vmatmul.bf16.gmra.mxu0 %v3706
        %v3831 = vpop.f32.mrf.mxu0
        %v3832 = vadd.f32 0.0, %v3831
        %v3833 = vpop.f32.mrf.mxu0
        %v3834 = vadd.f32 0.0, %v3833
        %3835 = vmatmul.bf16.gmra.mxu0 %v3709
        %v3836 = vpop.f32.mrf.mxu0
        %v3837 = vadd.f32 0.0, %v3836
        %v3838 = vpop.f32.mrf.mxu0
        %v3839 = vadd.f32 0.0, %v3838
        %3840 = vmatmul.bf16.gmra.mxu0 %v3712
        %v3841 = vpop.f32.mrf.mxu0
        %v3842 = vadd.f32 0.0, %v3841
        %v3843 = vpop.f32.mrf.mxu0
        %v3844 = vadd.f32 0.0, %v3843
        %3845 = vmatmul.bf16.gmra.mxu0 %v3715
        %v3846 = vpop.f32.mrf.mxu0
        %v3847 = vadd.f32 0.0, %v3846
        %v3848 = vpop.f32.mrf.mxu0
        %v3849 = vadd.f32 0.0, %v3848
        %3850 = vmatmul.bf16.gmra.mxu0 %v3718
        %v3851 = vpop.f32.mrf.mxu0
        %v3852 = vadd.f32 0.0, %v3851
        %v3853 = vpop.f32.mrf.mxu0
        %v3854 = vadd.f32 0.0, %v3853
        %3855 = vmatmul.bf16.gmra.mxu0 %v3721
        %v3856 = vpop.f32.mrf.mxu0
        %v3857 = vadd.f32 0.0, %v3856
        %v3858 = vpop.f32.mrf.mxu0
        %v3859 = vadd.f32 0.0, %v3858
        %3860 = vmatmul.bf16.gmra.mxu0 %v3724
        %v3861 = vpop.f32.mrf.mxu0
        %v3862 = vadd.f32 0.0, %v3861
        %v3863 = vpop.f32.mrf.mxu0
        %v3864 = vadd.f32 0.0, %v3863
        %3865 = vmatmul.bf16.gmra.mxu0 %v3727
        %v3866 = vpop.f32.mrf.mxu0
        %v3867 = vadd.f32 0.0, %v3866
        %v3868 = vpop.f32.mrf.mxu0
        %v3869 = vadd.f32 0.0, %v3868
        %3870 = vmatmul.bf16.gmra.mxu0 %v3730
        %v3871 = vpop.f32.mrf.mxu0
        %v3872 = vadd.f32 0.0, %v3871
        %v3873 = vpop.f32.mrf.mxu0
        %v3874 = vadd.f32 0.0, %v3873
        %3875 = vmatmul.bf16.gmra.mxu0 %v3733
        %v3876 = vpop.f32.mrf.mxu0
        %v3877 = vadd.f32 0.0, %v3876
        %v3878 = vpop.f32.mrf.mxu0
        %v3879 = vadd.f32 0.0, %v3878
        %3880 = vmatmul.bf16.gmra.mxu0 %v3736
        %v3881 = vpop.f32.mrf.mxu0
        %v3882 = vadd.f32 0.0, %v3881
        %v3883 = vpop.f32.mrf.mxu0
        %v3884 = vadd.f32 0.0, %v3883
        %3885 = vmatmul.bf16.gmra.mxu0 %v3739
        %v3886 = vpop.f32.mrf.mxu0
        %v3887 = vadd.f32 0.0, %v3886
        %v3888 = vpop.f32.mrf.mxu0
        %v3889 = vadd.f32 0.0, %v3888
        %3890 = vmatmul.bf16.gmra.mxu0 %v3742
        %v3891 = vpop.f32.mrf.mxu0
        %v3892 = vadd.f32 0.0, %v3891
        %v3893 = vpop.f32.mrf.mxu0
        %v3894 = vadd.f32 0.0, %v3893
        %3895 = vmatmul.bf16.gmra.mxu0 %v3745
        %v3896 = vpop.f32.mrf.mxu0
        %v3897 = vadd.f32 0.0, %v3896
        %v3898 = vpop.f32.mrf.mxu0
        %v3899 = vadd.f32 0.0, %v3898
        %3900 = vmatmul.bf16.gmra.mxu0 %v3748
        %v3901 = vpop.f32.mrf.mxu0
        %v3902 = vadd.f32 0.0, %v3901
        %v3903 = vpop.f32.mrf.mxu0
        %v3904 = vadd.f32 0.0, %v3903
        %3905 = vmatmul.bf16.gmra.mxu0 %v3751
        %v3906 = vpop.f32.mrf.mxu0
        %v3907 = vadd.f32 0.0, %v3906
        %v3908 = vpop.f32.mrf.mxu0
        %v3909 = vadd.f32 0.0, %v3908
        %3910 = vmatmul.bf16.gmra.mxu0 %v3754
        %v3911 = vpop.f32.mrf.mxu0
        %v3912 = vadd.f32 0.0, %v3911
        %v3913 = vpop.f32.mrf.mxu0
        %v3914 = vadd.f32 0.0, %v3913
        %3915 = vmatmul.bf16.gmra.mxu0 %v3757
        %v3916 = vpop.f32.mrf.mxu0
        %v3917 = vadd.f32 0.0, %v3916
        %v3918 = vpop.f32.mrf.mxu0
        %v3919 = vadd.f32 0.0, %v3918
        %3920 = vmatmul.bf16.gmra.mxu0 %v3760
        %v3921 = vpop.f32.mrf.mxu0
        %v3922 = vadd.f32 0.0, %v3921
        %v3923 = vpop.f32.mrf.mxu0
        %v3924 = vadd.f32 0.0, %v3923
        %3925 = vmatmul.bf16.gmra.mxu0 %v3763
        %v3926 = vpop.f32.mrf.mxu0
        %v3927 = vadd.f32 0.0, %v3926
        %v3928 = vpop.f32.mrf.mxu0
        %v3929 = vadd.f32 0.0, %v3928
        %3930 = vmatmul.bf16.gmra.mxu0 %v3766
        %v3931 = vpop.f32.mrf.mxu0
        %v3932 = vadd.f32 0.0, %v3931
        %v3933 = vpop.f32.mrf.mxu0
        %v3934 = vadd.f32 0.0, %v3933
        %3935 = vmatmul.bf16.gmra.mxu0 %v3769
        %v3936 = vpop.f32.mrf.mxu0
        %v3937 = vadd.f32 0.0, %v3936
        %v3938 = vpop.f32.mrf.mxu0
        %v3939 = vadd.f32 0.0, %v3938
        %3940 = vmatmul.bf16.gmra.mxu0 %v3772
        %v3941 = vpop.f32.mrf.mxu0
        %v3942 = vadd.f32 0.0, %v3941
        %v3943 = vpop.f32.mrf.mxu0
        %v3944 = vadd.f32 0.0, %v3943
        %3945 = vdwg.mxu0
        %v3946 = vadd.f32 %v3546, %v3787
        %v3947 = vadd.f32 %v3547, %v3789
        %v3948 = vadd.f32 %v3548, %v3792
        %v3949 = vadd.f32 %v3549, %v3794
        %v3950 = vadd.f32 %v3550, %v3797
        %v3951 = vadd.f32 %v3551, %v3799
        %v3952 = vadd.f32 %v3552, %v3802
        %v3953 = vadd.f32 %v3553, %v3804
        %v3954 = vadd.f32 %v3554, %v3807
        %v3955 = vadd.f32 %v3555, %v3809
        %v3956 = vadd.f32 %v3556, %v3812
        %v3957 = vadd.f32 %v3557, %v3814
        %v3958 = vadd.f32 %v3558, %v3817
        %v3959 = vadd.f32 %v3559, %v3819
        %v3960 = vadd.f32 %v3560, %v3822
        %v3961 = vadd.f32 %v3561, %v3824
        %v3962 = vadd.f32 %v3562, %v3827
        %v3963 = vadd.f32 %v3563, %v3829
        %v3964 = vadd.f32 %v3564, %v3832
        %v3965 = vadd.f32 %v3565, %v3834
        %v3966 = vadd.f32 %v3566, %v3837
        %v3967 = vadd.f32 %v3567, %v3839
        %v3968 = vadd.f32 %v3568, %v3842
        %v3969 = vadd.f32 %v3569, %v3844
        %v3970 = vadd.f32 %v3570, %v3847
        %v3971 = vadd.f32 %v3571, %v3849
        %v3972 = vadd.f32 %v3572, %v3852
        %v3973 = vadd.f32 %v3573, %v3854
        %v3974 = vadd.f32 %v3574, %v3857
        %v3975 = vadd.f32 %v3575, %v3859
        %v3976 = vadd.f32 %v3576, %v3862
        %v3977 = vadd.f32 %v3577, %v3864
        %v3978 = vadd.f32 %v3578, %v3867
        %v3979 = vadd.f32 %v3579, %v3869
        %v3980 = vadd.f32 %v3580, %v3872
        %v3981 = vadd.f32 %v3581, %v3874
        %v3982 = vadd.f32 %v3582, %v3877
        %v3983 = vadd.f32 %v3583, %v3879
        %v3984 = vadd.f32 %v3584, %v3882
        %v3985 = vadd.f32 %v3585, %v3884
        %v3986 = vadd.f32 %v3586, %v3887
        %v3987 = vadd.f32 %v3587, %v3889
        %v3988 = vadd.f32 %v3588, %v3892
        %v3989 = vadd.f32 %v3589, %v3894
        %v3990 = vadd.f32 %v3590, %v3897
        %v3991 = vadd.f32 %v3591, %v3899
        %v3992 = vadd.f32 %v3592, %v3902
        %v3993 = vadd.f32 %v3593, %v3904
        %v3994 = vadd.f32 %v3594, %v3907
        %v3995 = vadd.f32 %v3595, %v3909
        %v3996 = vadd.f32 %v3596, %v3912
        %v3997 = vadd.f32 %v3597, %v3914
        %v3998 = vadd.f32 %v3598, %v3917
        %v3999 = vadd.f32 %v3599, %v3919
        %v4000 = vadd.f32 %v3600, %v3922
        %v4001 = vadd.f32 %v3601, %v3924
        %v4002 = vadd.f32 %v3602, %v3927
        %v4003 = vadd.f32 %v3603, %v3929
        %v4004 = vadd.f32 %v3604, %v3932
        %v4005 = vadd.f32 %v3605, %v3934
        %v4006 = vadd.f32 %v3606, %v3937
        %v4007 = vadd.f32 %v3607, %v3939
        %v4008 = vadd.f32 %v3608, %v3942
        %v4009 = vadd.f32 %v3609, %v3944
        %v4010 = vpack.c.bf16 %v3946, %v3946
        %v4011 = vpack.c.bf16 %v3947, %v3947
        %v4012 = vpack.c.bf16 %v3948, %v3948
        %v4013 = vpack.c.bf16 %v3949, %v3949
        %v4014 = vpack.c.bf16 %v3950, %v3950
        %v4015 = vpack.c.bf16 %v3951, %v3951
        %v4016 = vpack.c.bf16 %v3952, %v3952
        %v4017 = vpack.c.bf16 %v3953, %v3953
        %v4018 = vpack.c.bf16 %v3954, %v3954
        %v4019 = vpack.c.bf16 %v3955, %v3955
        %v4020 = vpack.c.bf16 %v3956, %v3956
        %v4021 = vpack.c.bf16 %v3957, %v3957
        %v4022 = vpack.c.bf16 %v3958, %v3958
        %v4023 = vpack.c.bf16 %v3959, %v3959
        %v4024 = vpack.c.bf16 %v3960, %v3960
        %v4025 = vpack.c.bf16 %v3961, %v3961
        %v4026 = vpack.c.bf16 %v3962, %v3962
        %v4027 = vpack.c.bf16 %v3963, %v3963
        %v4028 = vpack.c.bf16 %v3964, %v3964
        %v4029 = vpack.c.bf16 %v3965, %v3965
        %v4030 = vpack.c.bf16 %v3966, %v3966
        %v4031 = vpack.c.bf16 %v3967, %v3967
        %v4032 = vpack.c.bf16 %v3968, %v3968
        %v4033 = vpack.c.bf16 %v3969, %v3969
        %v4034 = vpack.c.bf16 %v3970, %v3970
        %v4035 = vpack.c.bf16 %v3971, %v3971
        %v4036 = vpack.c.bf16 %v3972, %v3972
        %v4037 = vpack.c.bf16 %v3973, %v3973
        %v4038 = vpack.c.bf16 %v3974, %v3974
        %v4039 = vpack.c.bf16 %v3975, %v3975
        %v4040 = vpack.c.bf16 %v3976, %v3976
        %v4041 = vpack.c.bf16 %v3977, %v3977
        %v4042 = vpack.c.bf16 %v3978, %v3978
        %v4043 = vpack.c.bf16 %v3979, %v3979
        %v4044 = vpack.c.bf16 %v3980, %v3980
        %v4045 = vpack.c.bf16 %v3981, %v3981
        %v4046 = vpack.c.bf16 %v3982, %v3982
        %v4047 = vpack.c.bf16 %v3983, %v3983
        %v4048 = vpack.c.bf16 %v3984, %v3984
        %v4049 = vpack.c.bf16 %v3985, %v3985
        %v4050 = vpack.c.bf16 %v3986, %v3986
        %v4051 = vpack.c.bf16 %v3987, %v3987
        %v4052 = vpack.c.bf16 %v3988, %v3988
        %v4053 = vpack.c.bf16 %v3989, %v3989
        %v4054 = vpack.c.bf16 %v3990, %v3990
        %v4055 = vpack.c.bf16 %v3991, %v3991
        %v4056 = vpack.c.bf16 %v3992, %v3992
        %v4057 = vpack.c.bf16 %v3993, %v3993
        %v4058 = vpack.c.bf16 %v3994, %v3994
        %v4059 = vpack.c.bf16 %v3995, %v3995
        %v4060 = vpack.c.bf16 %v3996, %v3996
        %v4061 = vpack.c.bf16 %v3997, %v3997
        %v4062 = vpack.c.bf16 %v3998, %v3998
        %v4063 = vpack.c.bf16 %v3999, %v3999
        %v4064 = vpack.c.bf16 %v4000, %v4000
        %v4065 = vpack.c.bf16 %v4001, %v4001
        %v4066 = vpack.c.bf16 %v4002, %v4002
        %v4067 = vpack.c.bf16 %v4003, %v4003
        %v4068 = vpack.c.bf16 %v4004, %v4004
        %v4069 = vpack.c.bf16 %v4005, %v4005
        %v4070 = vpack.c.bf16 %v4006, %v4006
        %v4071 = vpack.c.bf16 %v4007, %v4007
        %v4072 = vpack.c.bf16 %v4008, %v4008
        %v4073 = vpack.c.bf16 %v4009, %v4009
        %4074 = vst [vmem:[%s315] sm:$0xf] %v4010
        %4075 = vst [vmem:[%s315 + $0x4] sm:$0xf] %v4011
        %4076 = vst [vmem:[%s315 + $0x8] sm:$0xf] %v4012
        %4077 = vst [vmem:[%s315 + $0xc] sm:$0xf] %v4013
        %4078 = vst [vmem:[%s315 + $0x10] sm:$0xf] %v4014
        %4079 = vst [vmem:[%s315 + $0x14] sm:$0xf] %v4015
        %4080 = vst [vmem:[%s315 + $0x18] sm:$0xf] %v4016
        %4081 = vst [vmem:[%s315 + $0x1c] sm:$0xf] %v4017
        %4082 = vst [vmem:[%s315 + $0x20] sm:$0xf] %v4018
        %4083 = vst [vmem:[%s315 + $0x24] sm:$0xf] %v4019
        %4084 = vst [vmem:[%s315 + $0x28] sm:$0xf] %v4020
        %4085 = vst [vmem:[%s315 + $0x2c] sm:$0xf] %v4021
        %4086 = vst [vmem:[%s315 + $0x30] sm:$0xf] %v4022
        %4087 = vst [vmem:[%s315 + $0x34] sm:$0xf] %v4023
        %4088 = vst [vmem:[%s315 + $0x38] sm:$0xf] %v4024
        %4089 = vst [vmem:[%s315 + $0x3c] sm:$0xf] %v4025
        %4090 = vst [vmem:[%s315 + $0x40] sm:$0xf] %v4026
        %4091 = vst [vmem:[%s315 + $0x44] sm:$0xf] %v4027
        %4092 = vst [vmem:[%s315 + $0x48] sm:$0xf] %v4028
        %4093 = vst [vmem:[%s315 + $0x4c] sm:$0xf] %v4029
        %4094 = vst [vmem:[%s315 + $0x50] sm:$0xf] %v4030
        %4095 = vst [vmem:[%s315 + $0x54] sm:$0xf] %v4031
        %4096 = vst [vmem:[%s315 + $0x58] sm:$0xf] %v4032
        %4097 = vst [vmem:[%s315 + $0x5c] sm:$0xf] %v4033
        %4098 = vst [vmem:[%s315 + $0x60] sm:$0xf] %v4034
        %4099 = vst [vmem:[%s315 + $0x64] sm:$0xf] %v4035
        %4100 = vst [vmem:[%s315 + $0x68] sm:$0xf] %v4036
        %4101 = vst [vmem:[%s315 + $0x6c] sm:$0xf] %v4037
        %4102 = vst [vmem:[%s315 + $0x70] sm:$0xf] %v4038
        %4103 = vst [vmem:[%s315 + $0x74] sm:$0xf] %v4039
        %4104 = vst [vmem:[%s315 + $0x78] sm:$0xf] %v4040
        %4105 = vst [vmem:[%s315 + $0x7c] sm:$0xf] %v4041
        %4106 = vst [vmem:[%s315 + $0x80] sm:$0xf] %v4042
        %4107 = vst [vmem:[%s315 + $0x84] sm:$0xf] %v4043
        %4108 = vst [vmem:[%s315 + $0x88] sm:$0xf] %v4044
        %4109 = vst [vmem:[%s315 + $0x8c] sm:$0xf] %v4045
        %4110 = vst [vmem:[%s315 + $0x90] sm:$0xf] %v4046
        %4111 = vst [vmem:[%s315 + $0x94] sm:$0xf] %v4047
        %4112 = vst [vmem:[%s315 + $0x98] sm:$0xf] %v4048
        %4113 = vst [vmem:[%s315 + $0x9c] sm:$0xf] %v4049
        %4114 = vst [vmem:[%s315 + $0xa0] sm:$0xf] %v4050
        %4115 = vst [vmem:[%s315 + $0xa4] sm:$0xf] %v4051
        %4116 = vst [vmem:[%s315 + $0xa8] sm:$0xf] %v4052
        %4117 = vst [vmem:[%s315 + $0xac] sm:$0xf] %v4053
        %4118 = vst [vmem:[%s315 + $0xb0] sm:$0xf] %v4054
        %4119 = vst [vmem:[%s315 + $0xb4] sm:$0xf] %v4055
        %4120 = vst [vmem:[%s315 + $0xb8] sm:$0xf] %v4056
        %4121 = vst [vmem:[%s315 + $0xbc] sm:$0xf] %v4057
        %4122 = vst [vmem:[%s315 + $0xc0] sm:$0xf] %v4058
        %4123 = vst [vmem:[%s315 + $0xc4] sm:$0xf] %v4059
        %4124 = vst [vmem:[%s315 + $0xc8] sm:$0xf] %v4060
        %4125 = vst [vmem:[%s315 + $0xcc] sm:$0xf] %v4061
        %4126 = vst [vmem:[%s315 + $0xd0] sm:$0xf] %v4062
        %4127 = vst [vmem:[%s315 + $0xd4] sm:$0xf] %v4063
        %4128 = vst [vmem:[%s315 + $0xd8] sm:$0xf] %v4064
        %4129 = vst [vmem:[%s315 + $0xdc] sm:$0xf] %v4065
        %4130 = vst [vmem:[%s315 + $0xe0] sm:$0xf] %v4066
        %4131 = vst [vmem:[%s315 + $0xe4] sm:$0xf] %v4067
        %4132 = vst [vmem:[%s315 + $0xe8] sm:$0xf] %v4068
        %4133 = vst [vmem:[%s315 + $0xec] sm:$0xf] %v4069
        %4134 = vst [vmem:[%s315 + $0xf0] sm:$0xf] %v4070
        %4135 = vst [vmem:[%s315 + $0xf4] sm:$0xf] %v4071
        %4136 = vst [vmem:[%s315 + $0xf8] sm:$0xf] %v4072
        %4137 = vst [vmem:[%s315 + $0xfc] sm:$0xf] %v4073
        %v4138 = vld [vmem:[%s353] sm:$0xff]
        %v4139 = vld [vmem:[%s353 + $0x8] sm:$0xff]
        %v4140 = vld [vmem:[%s353 + $0x10] sm:$0xff]
        %v4141 = vld [vmem:[%s353 + $0x18] sm:$0xff]
        %v4142 = vld [vmem:[%s353 + $0x20] sm:$0xff]
        %v4143 = vld [vmem:[%s353 + $0x28] sm:$0xff]
        %v4144 = vld [vmem:[%s353 + $0x30] sm:$0xff]
        %v4145 = vld [vmem:[%s353 + $0x38] sm:$0xff]
        %v4146 = vld [vmem:[%s353 + $0x40] sm:$0xff]
        %v4147 = vld [vmem:[%s353 + $0x48] sm:$0xff]
        %v4148 = vld [vmem:[%s353 + $0x50] sm:$0xff]
        %v4149 = vld [vmem:[%s353 + $0x58] sm:$0xff]
        %v4150 = vld [vmem:[%s353 + $0x60] sm:$0xff]
        %v4151 = vld [vmem:[%s353 + $0x68] sm:$0xff]
        %v4152 = vld [vmem:[%s353 + $0x70] sm:$0xff]
        %v4153 = vld [vmem:[%s353 + $0x78] sm:$0xff]
        %v4154 = vld [vmem:[%s353 + $0x80] sm:$0xff]
        %v4155 = vld [vmem:[%s353 + $0x88] sm:$0xff]
        %v4156 = vld [vmem:[%s353 + $0x90] sm:$0xff]
        %v4157 = vld [vmem:[%s353 + $0x98] sm:$0xff]
        %v4158 = vld [vmem:[%s353 + $0xa0] sm:$0xff]
        %v4159 = vld [vmem:[%s353 + $0xa8] sm:$0xff]
        %v4160 = vld [vmem:[%s353 + $0xb0] sm:$0xff]
        %v4161 = vld [vmem:[%s353 + $0xb8] sm:$0xff]
        %v4162 = vld [vmem:[%s353 + $0xc0] sm:$0xff]
        %v4163 = vld [vmem:[%s353 + $0xc8] sm:$0xff]
        %v4164 = vld [vmem:[%s353 + $0xd0] sm:$0xff]
        %v4165 = vld [vmem:[%s353 + $0xd8] sm:$0xff]
        %v4166 = vld [vmem:[%s353 + $0xe0] sm:$0xff]
        %v4167 = vld [vmem:[%s353 + $0xe8] sm:$0xff]
        %v4168 = vld [vmem:[%s353 + $0xf0] sm:$0xff]
        %v4169 = vld [vmem:[%s353 + $0xf8] sm:$0xff]
        %v4170 = vld [vmem:[%s353 + $0x100] sm:$0xff]
        %v4171 = vld [vmem:[%s353 + $0x108] sm:$0xff]
        %v4172 = vld [vmem:[%s353 + $0x110] sm:$0xff]
        %v4173 = vld [vmem:[%s353 + $0x118] sm:$0xff]
        %v4174 = vld [vmem:[%s353 + $0x120] sm:$0xff]
        %v4175 = vld [vmem:[%s353 + $0x128] sm:$0xff]
        %v4176 = vld [vmem:[%s353 + $0x130] sm:$0xff]
        %v4177 = vld [vmem:[%s353 + $0x138] sm:$0xff]
        %v4178 = vld [vmem:[%s353 + $0x140] sm:$0xff]
        %v4179 = vld [vmem:[%s353 + $0x148] sm:$0xff]
        %v4180 = vld [vmem:[%s353 + $0x150] sm:$0xff]
        %v4181 = vld [vmem:[%s353 + $0x158] sm:$0xff]
        %v4182 = vld [vmem:[%s353 + $0x160] sm:$0xff]
        %v4183 = vld [vmem:[%s353 + $0x168] sm:$0xff]
        %v4184 = vld [vmem:[%s353 + $0x170] sm:$0xff]
        %v4185 = vld [vmem:[%s353 + $0x178] sm:$0xff]
        %v4186 = vld [vmem:[%s353 + $0x180] sm:$0xff]
        %v4187 = vld [vmem:[%s353 + $0x188] sm:$0xff]
        %v4188 = vld [vmem:[%s353 + $0x190] sm:$0xff]
        %v4189 = vld [vmem:[%s353 + $0x198] sm:$0xff]
        %v4190 = vld [vmem:[%s353 + $0x1a0] sm:$0xff]
        %v4191 = vld [vmem:[%s353 + $0x1a8] sm:$0xff]
        %v4192 = vld [vmem:[%s353 + $0x1b0] sm:$0xff]
        %v4193 = vld [vmem:[%s353 + $0x1b8] sm:$0xff]
        %v4194 = vld [vmem:[%s353 + $0x1c0] sm:$0xff]
        %v4195 = vld [vmem:[%s353 + $0x1c8] sm:$0xff]
        %v4196 = vld [vmem:[%s353 + $0x1d0] sm:$0xff]
        %v4197 = vld [vmem:[%s353 + $0x1d8] sm:$0xff]
        %v4198 = vld [vmem:[%s353 + $0x1e0] sm:$0xff]
        %v4199 = vld [vmem:[%s353 + $0x1e8] sm:$0xff]
        %v4200 = vld [vmem:[%s353 + $0x1f0] sm:$0xff]
        %v4201 = vld [vmem:[%s353 + $0x1f8] sm:$0xff]
        %4203 = vset.pattern.permute.xlu0 0
        %4204 = vperm.xlu0 %4203, %v4138
        %v4205 = vpop.permute.xlu0 %4204
        %4208 = vset.pattern.permute.xlu0 0
        %4209 = vperm.xlu0 %4208, %v4139
        %v4210 = vpop.permute.xlu0 %4209
        %4213 = vset.pattern.permute.xlu0 0
        %4214 = vperm.xlu0 %4213, %v4140
        %v4215 = vpop.permute.xlu0 %4214
        %4218 = vset.pattern.permute.xlu0 0
        %4219 = vperm.xlu0 %4218, %v4141
        %v4220 = vpop.permute.xlu0 %4219
        %4223 = vset.pattern.permute.xlu0 0
        %4224 = vperm.xlu0 %4223, %v4142
        %v4225 = vpop.permute.xlu0 %4224
        %4228 = vset.pattern.permute.xlu0 0
        %4229 = vperm.xlu0 %4228, %v4143
        %v4230 = vpop.permute.xlu0 %4229
        %4233 = vset.pattern.permute.xlu0 0
        %4234 = vperm.xlu0 %4233, %v4144
        %v4235 = vpop.permute.xlu0 %4234
        %4238 = vset.pattern.permute.xlu0 0
        %4239 = vperm.xlu0 %4238, %v4145
        %v4240 = vpop.permute.xlu0 %4239
        %4243 = vset.pattern.permute.xlu0 0
        %4244 = vperm.xlu0 %4243, %v4146
        %v4245 = vpop.permute.xlu0 %4244
        %4248 = vset.pattern.permute.xlu0 0
        %4249 = vperm.xlu0 %4248, %v4147
        %v4250 = vpop.permute.xlu0 %4249
        %4253 = vset.pattern.permute.xlu0 0
        %4254 = vperm.xlu0 %4253, %v4148
        %v4255 = vpop.permute.xlu0 %4254
        %4258 = vset.pattern.permute.xlu0 0
        %4259 = vperm.xlu0 %4258, %v4149
        %v4260 = vpop.permute.xlu0 %4259
        %4263 = vset.pattern.permute.xlu0 0
        %4264 = vperm.xlu0 %4263, %v4150
        %v4265 = vpop.permute.xlu0 %4264
        %4268 = vset.pattern.permute.xlu0 0
        %4269 = vperm.xlu0 %4268, %v4151
        %v4270 = vpop.permute.xlu0 %4269
        %4273 = vset.pattern.permute.xlu0 0
        %4274 = vperm.xlu0 %4273, %v4152
        %v4275 = vpop.permute.xlu0 %4274
        %4278 = vset.pattern.permute.xlu0 0
        %4279 = vperm.xlu0 %4278, %v4153
        %v4280 = vpop.permute.xlu0 %4279
        %4283 = vset.pattern.permute.xlu0 0
        %4284 = vperm.xlu0 %4283, %v4154
        %v4285 = vpop.permute.xlu0 %4284
        %4288 = vset.pattern.permute.xlu0 0
        %4289 = vperm.xlu0 %4288, %v4155
        %v4290 = vpop.permute.xlu0 %4289
        %4293 = vset.pattern.permute.xlu0 0
        %4294 = vperm.xlu0 %4293, %v4156
        %v4295 = vpop.permute.xlu0 %4294
        %4298 = vset.pattern.permute.xlu0 0
        %4299 = vperm.xlu0 %4298, %v4157
        %v4300 = vpop.permute.xlu0 %4299
        %4303 = vset.pattern.permute.xlu0 0
        %4304 = vperm.xlu0 %4303, %v4158
        %v4305 = vpop.permute.xlu0 %4304
        %4308 = vset.pattern.permute.xlu0 0
        %4309 = vperm.xlu0 %4308, %v4159
        %v4310 = vpop.permute.xlu0 %4309
        %4313 = vset.pattern.permute.xlu0 0
        %4314 = vperm.xlu0 %4313, %v4160
        %v4315 = vpop.permute.xlu0 %4314
        %4318 = vset.pattern.permute.xlu0 0
        %4319 = vperm.xlu0 %4318, %v4161
        %v4320 = vpop.permute.xlu0 %4319
        %4323 = vset.pattern.permute.xlu0 0
        %4324 = vperm.xlu0 %4323, %v4162
        %v4325 = vpop.permute.xlu0 %4324
        %4328 = vset.pattern.permute.xlu0 0
        %4329 = vperm.xlu0 %4328, %v4163
        %v4330 = vpop.permute.xlu0 %4329
        %4333 = vset.pattern.permute.xlu0 0
        %4334 = vperm.xlu0 %4333, %v4164
        %v4335 = vpop.permute.xlu0 %4334
        %4338 = vset.pattern.permute.xlu0 0
        %4339 = vperm.xlu0 %4338, %v4165
        %v4340 = vpop.permute.xlu0 %4339
        %4343 = vset.pattern.permute.xlu0 0
        %4344 = vperm.xlu0 %4343, %v4166
        %v4345 = vpop.permute.xlu0 %4344
        %4348 = vset.pattern.permute.xlu0 0
        %4349 = vperm.xlu0 %4348, %v4167
        %v4350 = vpop.permute.xlu0 %4349
        %4353 = vset.pattern.permute.xlu0 0
        %4354 = vperm.xlu0 %4353, %v4168
        %v4355 = vpop.permute.xlu0 %4354
        %4358 = vset.pattern.permute.xlu0 0
        %4359 = vperm.xlu0 %4358, %v4169
        %v4360 = vpop.permute.xlu0 %4359
        %4363 = vset.pattern.permute.xlu0 0
        %4364 = vperm.xlu0 %4363, %v4170
        %v4365 = vpop.permute.xlu0 %4364
        %4368 = vset.pattern.permute.xlu0 0
        %4369 = vperm.xlu0 %4368, %v4171
        %v4370 = vpop.permute.xlu0 %4369
        %4373 = vset.pattern.permute.xlu0 0
        %4374 = vperm.xlu0 %4373, %v4172
        %v4375 = vpop.permute.xlu0 %4374
        %4378 = vset.pattern.permute.xlu0 0
        %4379 = vperm.xlu0 %4378, %v4173
        %v4380 = vpop.permute.xlu0 %4379
        %4383 = vset.pattern.permute.xlu0 0
        %4384 = vperm.xlu0 %4383, %v4174
        %v4385 = vpop.permute.xlu0 %4384
        %4388 = vset.pattern.permute.xlu0 0
        %4389 = vperm.xlu0 %4388, %v4175
        %v4390 = vpop.permute.xlu0 %4389
        %4393 = vset.pattern.permute.xlu0 0
        %4394 = vperm.xlu0 %4393, %v4176
        %v4395 = vpop.permute.xlu0 %4394
        %4398 = vset.pattern.permute.xlu0 0
        %4399 = vperm.xlu0 %4398, %v4177
        %v4400 = vpop.permute.xlu0 %4399
        %4403 = vset.pattern.permute.xlu0 0
        %4404 = vperm.xlu0 %4403, %v4178
        %v4405 = vpop.permute.xlu0 %4404
        %4408 = vset.pattern.permute.xlu0 0
        %4409 = vperm.xlu0 %4408, %v4179
        %v4410 = vpop.permute.xlu0 %4409
        %4413 = vset.pattern.permute.xlu0 0
        %4414 = vperm.xlu0 %4413, %v4180
        %v4415 = vpop.permute.xlu0 %4414
        %4418 = vset.pattern.permute.xlu0 0
        %4419 = vperm.xlu0 %4418, %v4181
        %v4420 = vpop.permute.xlu0 %4419
        %4423 = vset.pattern.permute.xlu0 0
        %4424 = vperm.xlu0 %4423, %v4182
        %v4425 = vpop.permute.xlu0 %4424
        %4428 = vset.pattern.permute.xlu0 0
        %4429 = vperm.xlu0 %4428, %v4183
        %v4430 = vpop.permute.xlu0 %4429
        %4433 = vset.pattern.permute.xlu0 0
        %4434 = vperm.xlu0 %4433, %v4184
        %v4435 = vpop.permute.xlu0 %4434
        %4438 = vset.pattern.permute.xlu0 0
        %4439 = vperm.xlu0 %4438, %v4185
        %v4440 = vpop.permute.xlu0 %4439
        %4443 = vset.pattern.permute.xlu0 0
        %4444 = vperm.xlu0 %4443, %v4186
        %v4445 = vpop.permute.xlu0 %4444
        %4448 = vset.pattern.permute.xlu0 0
        %4449 = vperm.xlu0 %4448, %v4187
        %v4450 = vpop.permute.xlu0 %4449
        %4453 = vset.pattern.permute.xlu0 0
        %4454 = vperm.xlu0 %4453, %v4188
        %v4455 = vpop.permute.xlu0 %4454
        %4458 = vset.pattern.permute.xlu0 0
        %4459 = vperm.xlu0 %4458, %v4189
        %v4460 = vpop.permute.xlu0 %4459
        %4463 = vset.pattern.permute.xlu0 0
        %4464 = vperm.xlu0 %4463, %v4190
        %v4465 = vpop.permute.xlu0 %4464
        %4468 = vset.pattern.permute.xlu0 0
        %4469 = vperm.xlu0 %4468, %v4191
        %v4470 = vpop.permute.xlu0 %4469
        %4473 = vset.pattern.permute.xlu0 0
        %4474 = vperm.xlu0 %4473, %v4192
        %v4475 = vpop.permute.xlu0 %4474
        %4478 = vset.pattern.permute.xlu0 0
        %4479 = vperm.xlu0 %4478, %v4193
        %v4480 = vpop.permute.xlu0 %4479
        %4483 = vset.pattern.permute.xlu0 0
        %4484 = vperm.xlu0 %4483, %v4194
        %v4485 = vpop.permute.xlu0 %4484
        %4488 = vset.pattern.permute.xlu0 0
        %4489 = vperm.xlu0 %4488, %v4195
        %v4490 = vpop.permute.xlu0 %4489
        %4493 = vset.pattern.permute.xlu0 0
        %4494 = vperm.xlu0 %4493, %v4196
        %v4495 = vpop.permute.xlu0 %4494
        %4498 = vset.pattern.permute.xlu0 0
        %4499 = vperm.xlu0 %4498, %v4197
        %v4500 = vpop.permute.xlu0 %4499
        %4503 = vset.pattern.permute.xlu0 0
        %4504 = vperm.xlu0 %4503, %v4198
        %v4505 = vpop.permute.xlu0 %4504
        %4508 = vset.pattern.permute.xlu0 0
        %4509 = vperm.xlu0 %4508, %v4199
        %v4510 = vpop.permute.xlu0 %4509
        %4513 = vset.pattern.permute.xlu0 0
        %4514 = vperm.xlu0 %4513, %v4200
        %v4515 = vpop.permute.xlu0 %4514
        %4518 = vset.pattern.permute.xlu0 0
        %4519 = vperm.xlu0 %4518, %v4201
        %v4520 = vpop.permute.xlu0 %4519
        %v4522 = vmul.f32 %v3946, %v4205
        %v4523 = vmul.f32 %v3947, %v4210
        %v4524 = vmul.f32 %v3948, %v4215
        %v4525 = vmul.f32 %v3949, %v4220
        %v4526 = vmul.f32 %v3950, %v4225
        %v4527 = vmul.f32 %v3951, %v4230
        %v4528 = vmul.f32 %v3952, %v4235
        %v4529 = vmul.f32 %v3953, %v4240
        %v4530 = vmul.f32 %v3954, %v4245
        %v4531 = vmul.f32 %v3955, %v4250
        %v4532 = vmul.f32 %v3956, %v4255
        %v4533 = vmul.f32 %v3957, %v4260
        %v4534 = vmul.f32 %v3958, %v4265
        %v4535 = vmul.f32 %v3959, %v4270
        %v4536 = vmul.f32 %v3960, %v4275
        %v4537 = vmul.f32 %v3961, %v4280
        %v4538 = vmul.f32 %v3962, %v4285
        %v4539 = vmul.f32 %v3963, %v4290
        %v4540 = vmul.f32 %v3964, %v4295
        %v4541 = vmul.f32 %v3965, %v4300
        %v4542 = vmul.f32 %v3966, %v4305
        %v4543 = vmul.f32 %v3967, %v4310
        %v4544 = vmul.f32 %v3968, %v4315
        %v4545 = vmul.f32 %v3969, %v4320
        %v4546 = vmul.f32 %v3970, %v4325
        %v4547 = vmul.f32 %v3971, %v4330
        %v4548 = vmul.f32 %v3972, %v4335
        %v4549 = vmul.f32 %v3973, %v4340
        %v4550 = vmul.f32 %v3974, %v4345
        %v4551 = vmul.f32 %v3975, %v4350
        %v4552 = vmul.f32 %v3976, %v4355
        %v4553 = vmul.f32 %v3977, %v4360
        %v4554 = vmul.f32 %v3978, %v4365
        %v4555 = vmul.f32 %v3979, %v4370
        %v4556 = vmul.f32 %v3980, %v4375
        %v4557 = vmul.f32 %v3981, %v4380
        %v4558 = vmul.f32 %v3982, %v4385
        %v4559 = vmul.f32 %v3983, %v4390
        %v4560 = vmul.f32 %v3984, %v4395
        %v4561 = vmul.f32 %v3985, %v4400
        %v4562 = vmul.f32 %v3986, %v4405
        %v4563 = vmul.f32 %v3987, %v4410
        %v4564 = vmul.f32 %v3988, %v4415
        %v4565 = vmul.f32 %v3989, %v4420
        %v4566 = vmul.f32 %v3990, %v4425
        %v4567 = vmul.f32 %v3991, %v4430
        %v4568 = vmul.f32 %v3992, %v4435
        %v4569 = vmul.f32 %v3993, %v4440
        %v4570 = vmul.f32 %v3994, %v4445
        %v4571 = vmul.f32 %v3995, %v4450
        %v4572 = vmul.f32 %v3996, %v4455
        %v4573 = vmul.f32 %v3997, %v4460
        %v4574 = vmul.f32 %v3998, %v4465
        %v4575 = vmul.f32 %v3999, %v4470
        %v4576 = vmul.f32 %v4000, %v4475
        %v4577 = vmul.f32 %v4001, %v4480
        %v4578 = vmul.f32 %v4002, %v4485
        %v4579 = vmul.f32 %v4003, %v4490
        %v4580 = vmul.f32 %v4004, %v4495
        %v4581 = vmul.f32 %v4005, %v4500
        %v4582 = vmul.f32 %v4006, %v4505
        %v4583 = vmul.f32 %v4007, %v4510
        %v4584 = vmul.f32 %v4008, %v4515
        %v4585 = vmul.f32 %v4009, %v4520
        %v4586 = vld [vmem:[%s322] sm:$0xff]
        %v4587 = vadd.f32 %v4522, %v4523
        %v4588 = vadd.f32 %v4587, %v4524
        %v4589 = vadd.f32 %v4588, %v4525
        %v4590 = vadd.f32 %v4589, %v4526
        %v4591 = vadd.f32 %v4590, %v4527
        %v4592 = vadd.f32 %v4591, %v4528
        %v4593 = vadd.f32 %v4592, %v4529
        %v4594 = vadd.f32 %v4593, %v4530
        %v4595 = vadd.f32 %v4594, %v4531
        %v4596 = vadd.f32 %v4595, %v4532
        %v4597 = vadd.f32 %v4596, %v4533
        %v4598 = vadd.f32 %v4597, %v4534
        %v4599 = vadd.f32 %v4598, %v4535
        %v4600 = vadd.f32 %v4599, %v4536
        %v4601 = vadd.f32 %v4600, %v4537
        %v4602 = vadd.f32 %v4601, %v4538
        %v4603 = vadd.f32 %v4602, %v4539
        %v4604 = vadd.f32 %v4603, %v4540
        %v4605 = vadd.f32 %v4604, %v4541
        %v4606 = vadd.f32 %v4605, %v4542
        %v4607 = vadd.f32 %v4606, %v4543
        %v4608 = vadd.f32 %v4607, %v4544
        %v4609 = vadd.f32 %v4608, %v4545
        %v4610 = vadd.f32 %v4609, %v4546
        %v4611 = vadd.f32 %v4610, %v4547
        %v4612 = vadd.f32 %v4611, %v4548
        %v4613 = vadd.f32 %v4612, %v4549
        %v4614 = vadd.f32 %v4613, %v4550
        %v4615 = vadd.f32 %v4614, %v4551
        %v4616 = vadd.f32 %v4615, %v4552
        %v4617 = vadd.f32 %v4616, %v4553
        %v4618 = vadd.f32 %v4617, %v4554
        %v4619 = vadd.f32 %v4618, %v4555
        %v4620 = vadd.f32 %v4619, %v4556
        %v4621 = vadd.f32 %v4620, %v4557
        %v4622 = vadd.f32 %v4621, %v4558
        %v4623 = vadd.f32 %v4622, %v4559
        %v4624 = vadd.f32 %v4623, %v4560
        %v4625 = vadd.f32 %v4624, %v4561
        %v4626 = vadd.f32 %v4625, %v4562
        %v4627 = vadd.f32 %v4626, %v4563
        %v4628 = vadd.f32 %v4627, %v4564
        %v4629 = vadd.f32 %v4628, %v4565
        %v4630 = vadd.f32 %v4629, %v4566
        %v4631 = vadd.f32 %v4630, %v4567
        %v4632 = vadd.f32 %v4631, %v4568
        %v4633 = vadd.f32 %v4632, %v4569
        %v4634 = vadd.f32 %v4633, %v4570
        %v4635 = vadd.f32 %v4634, %v4571
        %v4636 = vadd.f32 %v4635, %v4572
        %v4637 = vadd.f32 %v4636, %v4573
        %v4638 = vadd.f32 %v4637, %v4574
        %v4639 = vadd.f32 %v4638, %v4575
        %v4640 = vadd.f32 %v4639, %v4576
        %v4641 = vadd.f32 %v4640, %v4577
        %v4642 = vadd.f32 %v4641, %v4578
        %v4643 = vadd.f32 %v4642, %v4579
        %v4644 = vadd.f32 %v4643, %v4580
        %v4645 = vadd.f32 %v4644, %v4581
        %v4646 = vadd.f32 %v4645, %v4582
        %v4647 = vadd.f32 %v4646, %v4583
        %v4648 = vadd.f32 %v4647, %v4584
        %v4649 = vadd.f32 %v4648, %v4585
        %v4650 = vrot.slane %v4649, 4
        %v4651 = vadd.f32 %v4649, %v4650
        %v4652 = vrot.slane %v4651, 2
        %v4653 = vadd.f32 %v4651, %v4652
        %v4654 = vrot.slane %v4653, 1
        %v4655 = vadd.f32 %v4653, %v4654
        %v4656 = vadd.f32 %v4586, %v4655
        %4657 = vst [vmem:[%s322] sm:$0xff] %v4656
        %v4658 = vld [vmem:[%s329] sm:$0xff]
        %v4659 = vmul.f32 %v4522, %v4522
        %v4660 = vmul.f32 %v4523, %v4523
        %v4661 = vmul.f32 %v4524, %v4524
        %v4662 = vmul.f32 %v4525, %v4525
        %v4663 = vmul.f32 %v4526, %v4526
        %v4664 = vmul.f32 %v4527, %v4527
        %v4665 = vmul.f32 %v4528, %v4528
        %v4666 = vmul.f32 %v4529, %v4529
        %v4667 = vmul.f32 %v4530, %v4530
        %v4668 = vmul.f32 %v4531, %v4531
        %v4669 = vmul.f32 %v4532, %v4532
        %v4670 = vmul.f32 %v4533, %v4533
        %v4671 = vmul.f32 %v4534, %v4534
        %v4672 = vmul.f32 %v4535, %v4535
        %v4673 = vmul.f32 %v4536, %v4536
        %v4674 = vmul.f32 %v4537, %v4537
        %v4675 = vmul.f32 %v4538, %v4538
        %v4676 = vmul.f32 %v4539, %v4539
        %v4677 = vmul.f32 %v4540, %v4540
        %v4678 = vmul.f32 %v4541, %v4541
        %v4679 = vmul.f32 %v4542, %v4542
        %v4680 = vmul.f32 %v4543, %v4543
        %v4681 = vmul.f32 %v4544, %v4544
        %v4682 = vmul.f32 %v4545, %v4545
        %v4683 = vmul.f32 %v4546, %v4546
        %v4684 = vmul.f32 %v4547, %v4547
        %v4685 = vmul.f32 %v4548, %v4548
        %v4686 = vmul.f32 %v4549, %v4549
        %v4687 = vmul.f32 %v4550, %v4550
        %v4688 = vmul.f32 %v4551, %v4551
        %v4689 = vmul.f32 %v4552, %v4552
        %v4690 = vmul.f32 %v4553, %v4553
        %v4691 = vmul.f32 %v4554, %v4554
        %v4692 = vmul.f32 %v4555, %v4555
        %v4693 = vmul.f32 %v4556, %v4556
        %v4694 = vmul.f32 %v4557, %v4557
        %v4695 = vmul.f32 %v4558, %v4558
        %v4696 = vmul.f32 %v4559, %v4559
        %v4697 = vmul.f32 %v4560, %v4560
        %v4698 = vmul.f32 %v4561, %v4561
        %v4699 = vmul.f32 %v4562, %v4562
        %v4700 = vmul.f32 %v4563, %v4563
        %v4701 = vmul.f32 %v4564, %v4564
        %v4702 = vmul.f32 %v4565, %v4565
        %v4703 = vmul.f32 %v4566, %v4566
        %v4704 = vmul.f32 %v4567, %v4567
        %v4705 = vmul.f32 %v4568, %v4568
        %v4706 = vmul.f32 %v4569, %v4569
        %v4707 = vmul.f32 %v4570, %v4570
        %v4708 = vmul.f32 %v4571, %v4571
        %v4709 = vmul.f32 %v4572, %v4572
        %v4710 = vmul.f32 %v4573, %v4573
        %v4711 = vmul.f32 %v4574, %v4574
        %v4712 = vmul.f32 %v4575, %v4575
        %v4713 = vmul.f32 %v4576, %v4576
        %v4714 = vmul.f32 %v4577, %v4577
        %v4715 = vmul.f32 %v4578, %v4578
        %v4716 = vmul.f32 %v4579, %v4579
        %v4717 = vmul.f32 %v4580, %v4580
        %v4718 = vmul.f32 %v4581, %v4581
        %v4719 = vmul.f32 %v4582, %v4582
        %v4720 = vmul.f32 %v4583, %v4583
        %v4721 = vmul.f32 %v4584, %v4584
        %v4722 = vmul.f32 %v4585, %v4585
        %v4723 = vadd.f32 %v4659, %v4660
        %v4724 = vadd.f32 %v4723, %v4661
        %v4725 = vadd.f32 %v4724, %v4662
        %v4726 = vadd.f32 %v4725, %v4663
        %v4727 = vadd.f32 %v4726, %v4664
        %v4728 = vadd.f32 %v4727, %v4665
        %v4729 = vadd.f32 %v4728, %v4666
        %v4730 = vadd.f32 %v4729, %v4667
        %v4731 = vadd.f32 %v4730, %v4668
        %v4732 = vadd.f32 %v4731, %v4669
        %v4733 = vadd.f32 %v4732, %v4670
        %v4734 = vadd.f32 %v4733, %v4671
        %v4735 = vadd.f32 %v4734, %v4672
        %v4736 = vadd.f32 %v4735, %v4673
        %v4737 = vadd.f32 %v4736, %v4674
        %v4738 = vadd.f32 %v4737, %v4675
        %v4739 = vadd.f32 %v4738, %v4676
        %v4740 = vadd.f32 %v4739, %v4677
        %v4741 = vadd.f32 %v4740, %v4678
        %v4742 = vadd.f32 %v4741, %v4679
        %v4743 = vadd.f32 %v4742, %v4680
        %v4744 = vadd.f32 %v4743, %v4681
        %v4745 = vadd.f32 %v4744, %v4682
        %v4746 = vadd.f32 %v4745, %v4683
        %v4747 = vadd.f32 %v4746, %v4684
        %v4748 = vadd.f32 %v4747, %v4685
        %v4749 = vadd.f32 %v4748, %v4686
        %v4750 = vadd.f32 %v4749, %v4687
        %v4751 = vadd.f32 %v4750, %v4688
        %v4752 = vadd.f32 %v4751, %v4689
        %v4753 = vadd.f32 %v4752, %v4690
        %v4754 = vadd.f32 %v4753, %v4691
        %v4755 = vadd.f32 %v4754, %v4692
        %v4756 = vadd.f32 %v4755, %v4693
        %v4757 = vadd.f32 %v4756, %v4694
        %v4758 = vadd.f32 %v4757, %v4695
        %v4759 = vadd.f32 %v4758, %v4696
        %v4760 = vadd.f32 %v4759, %v4697
        %v4761 = vadd.f32 %v4760, %v4698
        %v4762 = vadd.f32 %v4761, %v4699
        %v4763 = vadd.f32 %v4762, %v4700
        %v4764 = vadd.f32 %v4763, %v4701
        %v4765 = vadd.f32 %v4764, %v4702
        %v4766 = vadd.f32 %v4765, %v4703
        %v4767 = vadd.f32 %v4766, %v4704
        %v4768 = vadd.f32 %v4767, %v4705
        %v4769 = vadd.f32 %v4768, %v4706
        %v4770 = vadd.f32 %v4769, %v4707
        %v4771 = vadd.f32 %v4770, %v4708
        %v4772 = vadd.f32 %v4771, %v4709
        %v4773 = vadd.f32 %v4772, %v4710
        %v4774 = vadd.f32 %v4773, %v4711
        %v4775 = vadd.f32 %v4774, %v4712
        %v4776 = vadd.f32 %v4775, %v4713
        %v4777 = vadd.f32 %v4776, %v4714
        %v4778 = vadd.f32 %v4777, %v4715
        %v4779 = vadd.f32 %v4778, %v4716
        %v4780 = vadd.f32 %v4779, %v4717
        %v4781 = vadd.f32 %v4780, %v4718
        %v4782 = vadd.f32 %v4781, %v4719
        %v4783 = vadd.f32 %v4782, %v4720
        %v4784 = vadd.f32 %v4783, %v4721
        %v4785 = vadd.f32 %v4784, %v4722
        %v4786 = vrot.slane %v4785, 4
        %v4787 = vadd.f32 %v4785, %v4786
        %v4788 = vrot.slane %v4787, 2
        %v4789 = vadd.f32 %v4787, %v4788
        %v4790 = vrot.slane %v4789, 1
        %v4791 = vadd.f32 %v4789, %v4790
        %v4792 = vadd.f32 %v4658, %v4791
        %4793 = vst [vmem:[%s329] sm:$0xff] %v4792
        %s4794 = sand.u32 %s153, 1
        %s4795 = scalar_lea.sflag [#allocation3], %s4794
        %s4796 = sand.u32 %s153, 1
        %s4797 = smul.addr %s4796, 256
        %s4798 = scalar_lea.vmem [#allocation2], %s4797
        %s4799 = sand.u32 %s24, 1
        %s4800 = scalar_lea.sflag [#allocation5], %s4799
        %s4801 = sand.u32 %s179, 1
        %s4802 = smul.addr %s4801, 8
        %s4803 = scalar_lea.vmem [#allocation4], %s4802
        %s4804 = sand.u32 %s24, 1
        %s4805 = scalar_lea.sflag [#allocation5], %s4804
        %s4806 = sand.u32 %s205, 1
        %s4807 = smul.addr %s4806, 8
        %s4808 = scalar_lea.vmem [#allocation6], %s4807
        // Predicated region
        $region41: #{tpu_custom_call.1} parent=35 // pred_check
          %p4809 = pneg %p163
        $region42: #{tpu_custom_call.1} parent=35 // pred_check_branch
          %4811 = sbr.rel (%p4809) target = $region44
        $region43: #{tpu_custom_call.1} parent=35 // pred_region
          %s4812 = sadd.s32 %s28, %s29
          %s4813 = smul.u32 64, %s4812
          %4815 = vsyncadd %s4795, 0
          %s4816 = smul.addr %s4813, 4
          %s4817 = scalar_lea.hbm %s4, %s4816
          %s4818 = sshll.u32 %s4798, 4
          %s4819 = int_to_ptr.vmem [resolvable:$true] %s4818
          %s4820 = sshll.u32 %s4817, 4
          %s4821 = int_to_ptr.hbm [resolvable:$true] %s4820
          %4826 = dma.vmem_to_hbm [thread:$0]  %s4819, 4096, %s4821, %s4795, 64, 64, 4
        $region44: #{tpu_custom_call.1} parent=35 // pred_fallthru
          _
        // Predicated region
        $region45: #{tpu_custom_call.1} parent=35 // pred_check
          %p4827 = pneg %p189
        $region46: #{tpu_custom_call.1} parent=35 // pred_check_branch
          %4829 = sbr.rel (%p4827) target = $region48
        $region47: #{tpu_custom_call.1} parent=35 // pred_region
          %4831 = vsyncadd %s4800, 0
          %s4832 = smul.addr %s28, 8
          %s4833 = scalar_lea.hbm %s5, %s4832
          %s4835 = sshll.u32 %s4803, 4
          %s4836 = int_to_ptr.vmem [resolvable:$true] %s4835
          %s4837 = sshll.u32 %s4833, 4
          %s4838 = int_to_ptr.hbm [resolvable:$true] %s4837
          %4840 = dma.vmem_to_hbm [thread:$0]  %s4836, 128, %s4838, %s4800
        $region48: #{tpu_custom_call.1} parent=35 // pred_fallthru
          _
        // Predicated region
        $region49: #{tpu_custom_call.1} parent=35 // pred_check
          %p4841 = pneg %p215
        $region50: #{tpu_custom_call.1} parent=35 // pred_check_branch
          %4843 = sbr.rel (%p4841) target = $region52
        $region51: #{tpu_custom_call.1} parent=35 // pred_region
          %4845 = vsyncadd %s4805, 0
          %s4846 = smul.addr %s28, 8
          %s4847 = scalar_lea.hbm %s6, %s4846
          %s4849 = sshll.u32 %s4808, 4
          %s4850 = int_to_ptr.vmem [resolvable:$true] %s4849
          %s4851 = sshll.u32 %s4847, 4
          %s4852 = int_to_ptr.hbm [resolvable:$true] %s4851
          %4854 = dma.vmem_to_hbm [thread:$0]  %s4850, 128, %s4852, %s4805
        $region52: #{tpu_custom_call.1} parent=35 // pred_fallthru
          _
      $region36: #{tpu_custom_call.1} parent=5 // pred_fallthru
        _
      %p4855 = scmp.le.s32.totalorder 2, %s19
      // Predicated region
      $region53: #{tpu_custom_call.1} parent=5 // pred_check
        %p4856 = pneg %p4855
      $region54: #{tpu_custom_call.1} parent=5 // pred_check_branch
        %4858 = sbr.rel (%p4856) target = $region56
      $region55: #{tpu_custom_call.1} parent=5 // pred_region
        %s4859 = ssub.s32 %s19, 2
        // Predicated region
        $region57: #{tpu_custom_call.1} parent=55 // pred_check
          %p4860 = pneg %p169
        $region58: #{tpu_custom_call.1} parent=55 // pred_check_branch
          %4862 = sbr.rel (%p4860) target = $region60
        $region59: #{tpu_custom_call.1} parent=55 // pred_region
          %s4863 = sand.u32 %s154, 1
          %s4864 = scalar_lea.sflag [#allocation3], %s4863
          %s4865 = sand.u32 %s154, 1
          %s4866 = smul.addr %s4865, 256
          %s4867 = scalar_lea.vmem [#allocation2], %s4866
          %4869 = dma.done %s4864, 4096
        $region60: #{tpu_custom_call.1} parent=55 // pred_fallthru
          _
        // Predicated region
        $region61: #{tpu_custom_call.1} parent=55 // pred_check
          %p4870 = pneg %p195
        $region62: #{tpu_custom_call.1} parent=55 // pred_check_branch
          %4872 = sbr.rel (%p4870) target = $region64
        $region63: #{tpu_custom_call.1} parent=55 // pred_region
          %s4873 = sand.u32 %s25, 1
          %s4874 = scalar_lea.sflag [#allocation5], %s4873
          %s4875 = sand.u32 %s180, 1
          %s4876 = smul.addr %s4875, 8
          %s4877 = scalar_lea.vmem [#allocation4], %s4876
          %4879 = dma.done %s4874, 128
        $region64: #{tpu_custom_call.1} parent=55 // pred_fallthru
          _
        // Predicated region
        $region65: #{tpu_custom_call.1} parent=55 // pred_check
          %p4880 = pneg %p221
        $region66: #{tpu_custom_call.1} parent=55 // pred_check_branch
          %4882 = sbr.rel (%p4880) target = $region68
        $region67: #{tpu_custom_call.1} parent=55 // pred_region
          %s4883 = sand.u32 %s25, 1
          %s4884 = scalar_lea.sflag [#allocation5], %s4883
          %s4885 = sand.u32 %s206, 1
          %s4886 = smul.addr %s4885, 8
          %s4887 = scalar_lea.vmem [#allocation6], %s4886
          %4889 = dma.done %s4884, 128
        $region68: #{tpu_custom_call.1} parent=55 // pred_fallthru
          _
      $region56: #{tpu_custom_call.1} parent=5 // pred_fallthru
        _
    $region6: #{tpu_custom_call.1} parent=1 // loop_footer
      %s23 = sadd.s32 1, %s19
    $region7: #{tpu_custom_call.1} parent=1 // loop_footer_branch
      %18 = sbr.rel target = $region3
    $region8: #{tpu_custom_call.1} parent=1 // loop_exit
      _
    %4890 = vsyncpa [#allocation3], 1
    %s4891 = scalar_lea.sflag [#allocation3], 1
    %4892 = vsyncpa %s4891, 1
    %4893 = vsyncpa [#allocation5], 1
    %s4894 = scalar_lea.sflag [#allocation5], 1
    %4895 = vsyncpa %s4894, 1

</llo_original>
